<compile_context>
chip_gen: v7x
topology: tpu7x:2x2x1
jax: 0.10.0
libtpu: 0.0.40
codegen_flags: <defaults>
</compile_context>

<pallas_src>
import jax
import jax.numpy as jnp
from jax.experimental import pallas as pl
from jax.experimental.pallas import tpu as pltpu

H = 256                     # fixed by the module's view(-1, F, 256, 256, 2)
W = 256

_CHUNK = 64                 # image rows per grid step (H // _CHUNK = 4 steps/img)
_SUB = 32                   # rows per inner compute slice (temps stay ~8 vregs)
_PR, _PC = 8, W             # partial-sum slab shape (8, 256)


def _disp_loss_kernel(gt_ref, pred_ref, mask_ref, out_ref):
    # gt_ref/pred_ref: (tb*2, _CHUNK, 256) native dtype, leading index = n*2 + c
    # mask_ref:        (tb,   _CHUNK, 256) int8/bool, leading index = n
    # out_ref:         (1, 1, 24, 256) f32:
    #                  rows 0:8  = channel-0 SmoothL1 partial sums
    #                  rows 8:16 = channel-1 SmoothL1 partial sums
    #                  rows 16:24= nonzero-mask count partial sums
    tb = mask_ref.shape[0]                      # static

    def smooth_l1(d):                           # SmoothL1Loss(reduction='none'), beta=1
        a = jnp.abs(d)
        return jnp.where(a < 1.0, 0.5 * d * d, a - 0.5)

    def fold(x):                                # (32, 256) -> (8, 256), sublane adds only
        return (x[0:8, :] + x[8:16, :]) + (x[16:24, :] + x[24:32, :])

    acc0 = jnp.zeros((_PR, _PC), jnp.float32)
    acc1 = jnp.zeros((_PR, _PC), jnp.float32)
    cnt = jnp.zeros((_PR, _PC), jnp.float32)

    # Fully static loops: tb <= 8 images x 2 row-slices = <=16 unrolled
    # iterations with static offsets (no per-iteration div/mod, no dynamic
    # leading-axis indices).
    for n in range(tb):
        for s in range(_CHUNK // _SUB):
            r0, r1 = s * _SUB, (s + 1) * _SUB
            m_f = mask_ref[n, r0:r1, :].astype(jnp.float32)        # (32, 256)

            # (gt - pred) * mask == gt*mask - pred*mask exactly for the 0/1
            # lidar mask (and within rounding otherwise).
            # channel 0 completely before channel 1 (lower live-vreg pressure).
            d0 = (gt_ref[2 * n, r0:r1, :].astype(jnp.float32)
                  - pred_ref[2 * n, r0:r1, :].astype(jnp.float32)) * m_f
            acc0 = acc0 + fold(smooth_l1(d0))

            d1 = (gt_ref[2 * n + 1, r0:r1, :].astype(jnp.float32)
                  - pred_ref[2 * n + 1, r0:r1, :].astype(jnp.float32)) * m_f
            acc1 = acc1 + fold(smooth_l1(d1))

            # Count of nonzero mask pixels (kept as an explicit compare so a
            # non-binary mask still matches torch.nonzero semantics).
            cnt = cnt + fold((m_f != 0.0).astype(jnp.float32))

    # Single fused, lane-dense output slab -> one output DMA per step.
    out_ref[0, 0, 0:_PR, :] = acc0
    out_ref[0, 0, _PR:2 * _PR, :] = acc1
    out_ref[0, 0, 2 * _PR:3 * _PR, :] = cnt


def disp_loss(all_disp_field_gt, future_frames_num, pixel_lidar_map_gt,
              disp_pred, use_weighted_loss=True):
    # ---- glue (plain JAX): reshape / permute exactly like the module ----
    gt = all_disp_field_gt.reshape(-1, future_frames_num, H, W, 2)
    gt = gt[:, -future_frames_num:, ...]
    gt = gt.reshape(-1, H, W, 2)
    # TODO(synk): this NHWC->NCHW permute of gt is one extra HBM pass; doing
    # the channel split in-kernel needs a stride-2 lane de-interleave whose
    # Mosaic lowering is not guaranteed (see header).  It runs in gt's native
    # dtype (no wrapper f32 cast), so it costs half for bf16 inputs.
    gt = jnp.transpose(gt, (0, 3, 1, 2))                    # (N, 2, H, W)
    n = gt.shape[0]
    assert disp_pred.shape == (n, 2, H, W)

    # Mask stays in the caller's dtype (int8/bool = 4x fewer HBM bytes than
    # f32); the kernel casts on the fly.
    valid_mask = pixel_lidar_map_gt[:, 0, :, :]             # (N, H, W)

    # TODO(synk): the use_weighted_loss=False branch depends on the criterion's
    # reduction mode being passed at call time; only the weighted branch is
    # implemented.
    assert use_weighted_loss

    # Largest image-block <= 8 that divides N (avoids padding/masking).
    tb = max(t for t in range(1, min(8, n) + 1) if n % t == 0)
    g = n // tb
    n_chunks = H // _CHUNK                                   # 4 row-chunk steps/img

    # Free, contiguous reshapes: leading dim = image*channel row-slabs.
    gt_r = gt.reshape(n * 2, H, W)
    pred_r = disp_pred.reshape(n * 2, H, W)

    parts = pl.pallas_call(
        _disp_loss_kernel,
        out_shape=jax.ShapeDtypeStruct((g, n_chunks, 3 * _PR, _PC), jnp.float32),
        grid=(g, n_chunks),
        in_specs=[
            pl.BlockSpec((tb * 2, _CHUNK, W), lambda i, j: (i, j, 0)),
            pl.BlockSpec((tb * 2, _CHUNK, W), lambda i, j: (i, j, 0)),
            pl.BlockSpec((tb, _CHUNK, W), lambda i, j: (i, j, 0)),
        ],
        out_specs=pl.BlockSpec((1, 1, 3 * _PR, _PC), lambda i, j: (i, j, 0, 0)),
        # Every step writes its own partial-sum block -> both axes parallel
        # (v7x megacore can split either); per-step VMEM ~2-4.3 MiB double
        # buffered, within default scoped limits on v5e/v6e/v7x.
        compiler_params=pltpu.CompilerParams(
            dimension_semantics=("parallel", "parallel")),
    )(gt_r, pred_r, valid_mask)

    # Final channel weighting + cross-lane reduction: tiny XLA glue over the
    # (g, 4, 24, 256) partials.
    loss0 = jnp.sum(parts[:, :, 0:_PR, :])
    loss1 = jnp.sum(parts[:, :, _PR:2 * _PR, :])
    cnt = jnp.sum(parts[:, :, 2 * _PR:3 * _PR, :])
    # nonzero(valid_mask).size(0) != 0 is assumed (module asserts otherwise).
    return (loss0 + 0.5 * loss1) / cnt


def _disp_loss_ref(all_disp_field_gt, future_frames_num, pixel_lidar_map_gt,
                   disp_pred):
    gt = all_disp_field_gt.reshape(-1, future_frames_num, H, W, 2)
    gt = gt[:, -future_frames_num:, ...]
    gt = gt.reshape(-1, H, W, 2)
    gt = jnp.transpose(gt, (0, 3, 1, 2)).astype(jnp.float32)
    mask = pixel_lidar_map_gt[:, 0:1, :, :].astype(jnp.float32)
    pred = disp_pred.astype(jnp.float32)
    diff = gt * mask - pred * mask
    ad = jnp.abs(diff)
    loss = jnp.where(ad < 1.0, 0.5 * diff * diff, ad - 0.5)
    w = jnp.array([1.0, 0.5], jnp.float32).reshape(1, 2, 1, 1)
    num = jnp.sum(loss * w)
    cnt = jnp.sum((mask != 0.0).astype(jnp.float32))
    return num / cnt


if __name__ == "__main__":
    key = jax.random.PRNGKey(0)
    k1, k2, k3 = jax.random.split(key, 3)

    B = 2                    # batch of sequences
    F = 2                    # future_frames_num
    N = B * F                # flattened batch seen by the loss

    all_disp_field_gt = jax.random.normal(k1, (B, F, H, W, 2), jnp.float32)
    disp_pred = jax.random.normal(k2, (N, 2, H, W), jnp.float32)
    # Binary lidar occupancy map; int8 so the kernel reads 4x fewer mask bytes.
    pixel_lidar_map_gt = jax.random.bernoulli(k3, 0.3, (N, 1, H, W)).astype(
        jnp.int8)

    out = disp_loss(all_disp_field_gt, F, pixel_lidar_map_gt, disp_pred,
                    use_weighted_loss=True)
    out = jax.block_until_ready(out)

    ref = _disp_loss_ref(all_disp_field_gt, F, pixel_lidar_map_gt, disp_pred)
    assert jnp.isfinite(out), "loss is not finite"
    assert jnp.allclose(out, ref, rtol=2e-5, atol=2e-5), (out, ref)

    print("KERNEL_OK")
</pallas_src>

<mosaic_0001>
module attributes {stable_mosaic.version = 11 : i64} {
  func.func @_disp_loss_kernel(%arg0: i32, %arg1: i32, %arg2: memref<8x64x256xf32, #tpu.memory_space<vmem>>, %arg3: memref<8x64x256xf32, #tpu.memory_space<vmem>>, %arg4: memref<4x64x256xi8, #tpu.memory_space<vmem>>, %arg5: memref<1x1x24x256xf32, #tpu.memory_space<vmem>>) attributes {dimension_semantics = [#tpu.dimension_semantics<parallel>, #tpu.dimension_semantics<parallel>], iteration_bounds = array<i64: 1, 4>, scalar_prefetch = 0 : i64, scratch_operands = 0 : i64, tpu.core_type = #tpu.core_type<tc>, window_params = [{transform_indices = @transform_0, window_bounds = array<i64: 8, 64, 256>}, {transform_indices = @transform_1, window_bounds = array<i64: 8, 64, 256>}, {transform_indices = @transform_2, window_bounds = array<i64: 4, 64, 256>}, {transform_indices = @transform_3, window_bounds = array<i64: 1, 1, 24, 256>}]} {
    %cst = arith.constant 0.000000e+00 : f32
    %0 = vector.broadcast %cst : f32 to vector<8x256xf32>
    %cst_0 = arith.constant 0.000000e+00 : f32
    %1 = vector.broadcast %cst_0 : f32 to vector<8x256xf32>
    %cst_1 = arith.constant 0.000000e+00 : f32
    %2 = vector.broadcast %cst_1 : f32 to vector<8x256xf32>
    %c0 = arith.constant 0 : index
    %c0_2 = arith.constant 0 : index
    %c0_3 = arith.constant 0 : index
    %3 = vector.load %arg4[%c0, %c0_2, %c0_3] : memref<4x64x256xi8, #tpu.memory_space<vmem>>, vector<1x32x256xi8>
    %4 = vector.shape_cast %3 : vector<1x32x256xi8> to vector<32x256xi8>
    %5 = arith.sitofp %4 : vector<32x256xi8> to vector<32x256xf32>
    %c0_4 = arith.constant 0 : index
    %c0_5 = arith.constant 0 : index
    %c0_6 = arith.constant 0 : index
    %6 = vector.load %arg2[%c0_4, %c0_5, %c0_6] : memref<8x64x256xf32, #tpu.memory_space<vmem>>, vector<1x32x256xf32>
    %7 = vector.shape_cast %6 : vector<1x32x256xf32> to vector<32x256xf32>
    %c0_7 = arith.constant 0 : index
    %c0_8 = arith.constant 0 : index
    %c0_9 = arith.constant 0 : index
    %8 = vector.load %arg3[%c0_7, %c0_8, %c0_9] : memref<8x64x256xf32, #tpu.memory_space<vmem>>, vector<1x32x256xf32>
    %9 = vector.shape_cast %8 : vector<1x32x256xf32> to vector<32x256xf32>
    %10 = arith.subf %7, %9 : vector<32x256xf32>
    %11 = arith.mulf %10, %5 : vector<32x256xf32>
    %12 = math.absf %11 : vector<32x256xf32>
    %cst_10 = arith.constant 1.000000e+00 : f32
    %13 = vector.broadcast %cst_10 : f32 to vector<32x256xf32>
    %14 = arith.cmpf olt, %12, %13 : vector<32x256xf32>
    %cst_11 = arith.constant 5.000000e-01 : f32
    %15 = vector.broadcast %cst_11 : f32 to vector<32x256xf32>
    %16 = arith.mulf %15, %11 : vector<32x256xf32>
    %17 = arith.mulf %16, %11 : vector<32x256xf32>
    %cst_12 = arith.constant 5.000000e-01 : f32
    %18 = vector.broadcast %cst_12 : f32 to vector<32x256xf32>
    %19 = arith.subf %12, %18 : vector<32x256xf32>
    %20 = arith.select %14, %17, %19 : vector<32x256xi1>, vector<32x256xf32>
    %21 = vector.extract_strided_slice %20 {offsets = [0, 0], sizes = [8, 256], strides = [1, 1]} : vector<32x256xf32> to vector<8x256xf32>
    %22 = vector.extract_strided_slice %20 {offsets = [8, 0], sizes = [8, 256], strides = [1, 1]} : vector<32x256xf32> to vector<8x256xf32>
    %23 = arith.addf %21, %22 : vector<8x256xf32>
    %24 = vector.extract_strided_slice %20 {offsets = [16, 0], sizes = [8, 256], strides = [1, 1]} : vector<32x256xf32> to vector<8x256xf32>
    %25 = vector.extract_strided_slice %20 {offsets = [24, 0], sizes = [8, 256], strides = [1, 1]} : vector<32x256xf32> to vector<8x256xf32>
    %26 = arith.addf %24, %25 : vector<8x256xf32>
    %27 = arith.addf %23, %26 : vector<8x256xf32>
    %28 = arith.addf %0, %27 : vector<8x256xf32>
    %c1 = arith.constant 1 : index
    %c0_13 = arith.constant 0 : index
    %c0_14 = arith.constant 0 : index
    %29 = vector.load %arg2[%c1, %c0_13, %c0_14] : memref<8x64x256xf32, #tpu.memory_space<vmem>>, vector<1x32x256xf32>
    %30 = vector.shape_cast %29 : vector<1x32x256xf32> to vector<32x256xf32>
    %c1_15 = arith.constant 1 : index
    %c0_16 = arith.constant 0 : index
    %c0_17 = arith.constant 0 : index
    %31 = vector.load %arg3[%c1_15, %c0_16, %c0_17] : memref<8x64x256xf32, #tpu.memory_space<vmem>>, vector<1x32x256xf32>
    %32 = vector.shape_cast %31 : vector<1x32x256xf32> to vector<32x256xf32>
    %33 = arith.subf %30, %32 : vector<32x256xf32>
    %34 = arith.mulf %33, %5 : vector<32x256xf32>
    %35 = math.absf %34 : vector<32x256xf32>
    %cst_18 = arith.constant 1.000000e+00 : f32
    %36 = vector.broadcast %cst_18 : f32 to vector<32x256xf32>
    %37 = arith.cmpf olt, %35, %36 : vector<32x256xf32>
    %cst_19 = arith.constant 5.000000e-01 : f32
    %38 = vector.broadcast %cst_19 : f32 to vector<32x256xf32>
    %39 = arith.mulf %38, %34 : vector<32x256xf32>
    %40 = arith.mulf %39, %34 : vector<32x256xf32>
    %cst_20 = arith.constant 5.000000e-01 : f32
    %41 = vector.broadcast %cst_20 : f32 to vector<32x256xf32>
    %42 = arith.subf %35, %41 : vector<32x256xf32>
    %43 = arith.select %37, %40, %42 : vector<32x256xi1>, vector<32x256xf32>
    %44 = vector.extract_strided_slice %43 {offsets = [0, 0], sizes = [8, 256], strides = [1, 1]} : vector<32x256xf32> to vector<8x256xf32>
    %45 = vector.extract_strided_slice %43 {offsets = [8, 0], sizes = [8, 256], strides = [1, 1]} : vector<32x256xf32> to vector<8x256xf32>
    %46 = arith.addf %44, %45 : vector<8x256xf32>
    %47 = vector.extract_strided_slice %43 {offsets = [16, 0], sizes = [8, 256], strides = [1, 1]} : vector<32x256xf32> to vector<8x256xf32>
    %48 = vector.extract_strided_slice %43 {offsets = [24, 0], sizes = [8, 256], strides = [1, 1]} : vector<32x256xf32> to vector<8x256xf32>
    %49 = arith.addf %47, %48 : vector<8x256xf32>
    %50 = arith.addf %46, %49 : vector<8x256xf32>
    %51 = arith.addf %1, %50 : vector<8x256xf32>
    %cst_21 = arith.constant 0.000000e+00 : f32
    %52 = vector.broadcast %cst_21 : f32 to vector<32x256xf32>
    %53 = arith.cmpf one, %5, %52 : vector<32x256xf32>
    %54 = arith.extui %53 : vector<32x256xi1> to vector<32x256xi32>
    %55 = arith.sitofp %54 : vector<32x256xi32> to vector<32x256xf32>
    %56 = vector.extract_strided_slice %55 {offsets = [0, 0], sizes = [8, 256], strides = [1, 1]} : vector<32x256xf32> to vector<8x256xf32>
    %57 = vector.extract_strided_slice %55 {offsets = [8, 0], sizes = [8, 256], strides = [1, 1]} : vector<32x256xf32> to vector<8x256xf32>
    %58 = arith.addf %56, %57 : vector<8x256xf32>
    %59 = vector.extract_strided_slice %55 {offsets = [16, 0], sizes = [8, 256], strides = [1, 1]} : vector<32x256xf32> to vector<8x256xf32>
    %60 = vector.extract_strided_slice %55 {offsets = [24, 0], sizes = [8, 256], strides = [1, 1]} : vector<32x256xf32> to vector<8x256xf32>
    %61 = arith.addf %59, %60 : vector<8x256xf32>
    %62 = arith.addf %58, %61 : vector<8x256xf32>
    %63 = arith.addf %2, %62 : vector<8x256xf32>
    %c0_22 = arith.constant 0 : index
    %c32 = arith.constant 32 : index
    %c0_23 = arith.constant 0 : index
    %64 = vector.load %arg4[%c0_22, %c32, %c0_23] : memref<4x64x256xi8, #tpu.memory_space<vmem>>, vector<1x32x256xi8>
    %65 = vector.shape_cast %64 : vector<1x32x256xi8> to vector<32x256xi8>
    %66 = arith.sitofp %65 : vector<32x256xi8> to vector<32x256xf32>
    %c0_24 = arith.constant 0 : index
    %c32_25 = arith.constant 32 : index
    %c0_26 = arith.constant 0 : index
    %67 = vector.load %arg2[%c0_24, %c32_25, %c0_26] : memref<8x64x256xf32, #tpu.memory_space<vmem>>, vector<1x32x256xf32>
    %68 = vector.shape_cast %67 : vector<1x32x256xf32> to vector<32x256xf32>
    %c0_27 = arith.constant 0 : index
    %c32_28 = arith.constant 32 : index
    %c0_29 = arith.constant 0 : index
    %69 = vector.load %arg3[%c0_27, %c32_28, %c0_29] : memref<8x64x256xf32, #tpu.memory_space<vmem>>, vector<1x32x256xf32>
    %70 = vector.shape_cast %69 : vector<1x32x256xf32> to vector<32x256xf32>
    %71 = arith.subf %68, %70 : vector<32x256xf32>
    %72 = arith.mulf %71, %66 : vector<32x256xf32>
    %73 = math.absf %72 : vector<32x256xf32>
    %cst_30 = arith.constant 1.000000e+00 : f32
    %74 = vector.broadcast %cst_30 : f32 to vector<32x256xf32>
    %75 = arith.cmpf olt, %73, %74 : vector<32x256xf32>
    %cst_31 = arith.constant 5.000000e-01 : f32
    %76 = vector.broadcast %cst_31 : f32 to vector<32x256xf32>
    %77 = arith.mulf %76, %72 : vector<32x256xf32>
    %78 = arith.mulf %77, %72 : vector<32x256xf32>
    %cst_32 = arith.constant 5.000000e-01 : f32
    %79 = vector.broadcast %cst_32 : f32 to vector<32x256xf32>
    %80 = arith.subf %73, %79 : vector<32x256xf32>
    %81 = arith.select %75, %78, %80 : vector<32x256xi1>, vector<32x256xf32>
    %82 = vector.extract_strided_slice %81 {offsets = [0, 0], sizes = [8, 256], strides = [1, 1]} : vector<32x256xf32> to vector<8x256xf32>
    %83 = vector.extract_strided_slice %81 {offsets = [8, 0], sizes = [8, 256], strides = [1, 1]} : vector<32x256xf32> to vector<8x256xf32>
    %84 = arith.addf %82, %83 : vector<8x256xf32>
    %85 = vector.extract_strided_slice %81 {offsets = [16, 0], sizes = [8, 256], strides = [1, 1]} : vector<32x256xf32> to vector<8x256xf32>
    %86 = vector.extract_strided_slice %81 {offsets = [24, 0], sizes = [8, 256], strides = [1, 1]} : vector<32x256xf32> to vector<8x256xf32>
    %87 = arith.addf %85, %86 : vector<8x256xf32>
    %88 = arith.addf %84, %87 : vector<8x256xf32>
    %89 = arith.addf %28, %88 : vector<8x256xf32>
    %c1_33 = arith.constant 1 : index
    %c32_34 = arith.constant 32 : index
    %c0_35 = arith.constant 0 : index
    %90 = vector.load %arg2[%c1_33, %c32_34, %c0_35] : memref<8x64x256xf32, #tpu.memory_space<vmem>>, vector<1x32x256xf32>
    %91 = vector.shape_cast %90 : vector<1x32x256xf32> to vector<32x256xf32>
    %c1_36 = arith.constant 1 : index
    %c32_37 = arith.constant 32 : index
    %c0_38 = arith.constant 0 : index
    %92 = vector.load %arg3[%c1_36, %c32_37, %c0_38] : memref<8x64x256xf32, #tpu.memory_space<vmem>>, vector<1x32x256xf32>
    %93 = vector.shape_cast %92 : vector<1x32x256xf32> to vector<32x256xf32>
    %94 = arith.subf %91, %93 : vector<32x256xf32>
    %95 = arith.mulf %94, %66 : vector<32x256xf32>
    %96 = math.absf %95 : vector<32x256xf32>
    %cst_39 = arith.constant 1.000000e+00 : f32
    %97 = vector.broadcast %cst_39 : f32 to vector<32x256xf32>
    %98 = arith.cmpf olt, %96, %97 : vector<32x256xf32>
    %cst_40 = arith.constant 5.000000e-01 : f32
    %99 = vector.broadcast %cst_40 : f32 to vector<32x256xf32>
    %100 = arith.mulf %99, %95 : vector<32x256xf32>
    %101 = arith.mulf %100, %95 : vector<32x256xf32>
    %cst_41 = arith.constant 5.000000e-01 : f32
    %102 = vector.broadcast %cst_41 : f32 to vector<32x256xf32>
    %103 = arith.subf %96, %102 : vector<32x256xf32>
    %104 = arith.select %98, %101, %103 : vector<32x256xi1>, vector<32x256xf32>
    %105 = vector.extract_strided_slice %104 {offsets = [0, 0], sizes = [8, 256], strides = [1, 1]} : vector<32x256xf32> to vector<8x256xf32>
    %106 = vector.extract_strided_slice %104 {offsets = [8, 0], sizes = [8, 256], strides = [1, 1]} : vector<32x256xf32> to vector<8x256xf32>
    %107 = arith.addf %105, %106 : vector<8x256xf32>
    %108 = vector.extract_strided_slice %104 {offsets = [16, 0], sizes = [8, 256], strides = [1, 1]} : vector<32x256xf32> to vector<8x256xf32>
    %109 = vector.extract_strided_slice %104 {offsets = [24, 0], sizes = [8, 256], strides = [1, 1]} : vector<32x256xf32> to vector<8x256xf32>
    %110 = arith.addf %108, %109 : vector<8x256xf32>
    %111 = arith.addf %107, %110 : vector<8x256xf32>
    %112 = arith.addf %51, %111 : vector<8x256xf32>
    %cst_42 = arith.constant 0.000000e+00 : f32
    %113 = vector.broadcast %cst_42 : f32 to vector<32x256xf32>
    %114 = arith.cmpf one, %66, %113 : vector<32x256xf32>
    %115 = arith.extui %114 : vector<32x256xi1> to vector<32x256xi32>
    %116 = arith.sitofp %115 : vector<32x256xi32> to vector<32x256xf32>
    %117 = vector.extract_strided_slice %116 {offsets = [0, 0], sizes = [8, 256], strides = [1, 1]} : vector<32x256xf32> to vector<8x256xf32>
    %118 = vector.extract_strided_slice %116 {offsets = [8, 0], sizes = [8, 256], strides = [1, 1]} : vector<32x256xf32> to vector<8x256xf32>
    %119 = arith.addf %117, %118 : vector<8x256xf32>
    %120 = vector.extract_strided_slice %116 {offsets = [16, 0], sizes = [8, 256], strides = [1, 1]} : vector<32x256xf32> to vector<8x256xf32>
    %121 = vector.extract_strided_slice %116 {offsets = [24, 0], sizes = [8, 256], strides = [1, 1]} : vector<32x256xf32> to vector<8x256xf32>
    %122 = arith.addf %120, %121 : vector<8x256xf32>
    %123 = arith.addf %119, %122 : vector<8x256xf32>
    %124 = arith.addf %63, %123 : vector<8x256xf32>
    %c1_43 = arith.constant 1 : index
    %c0_44 = arith.constant 0 : index
    %c0_45 = arith.constant 0 : index
    %125 = vector.load %arg4[%c1_43, %c0_44, %c0_45] : memref<4x64x256xi8, #tpu.memory_space<vmem>>, vector<1x32x256xi8>
    %126 = vector.shape_cast %125 : vector<1x32x256xi8> to vector<32x256xi8>
    %127 = arith.sitofp %126 : vector<32x256xi8> to vector<32x256xf32>
    %c2 = arith.constant 2 : index
    %c0_46 = arith.constant 0 : index
    %c0_47 = arith.constant 0 : index
    %128 = vector.load %arg2[%c2, %c0_46, %c0_47] : memref<8x64x256xf32, #tpu.memory_space<vmem>>, vector<1x32x256xf32>
    %129 = vector.shape_cast %128 : vector<1x32x256xf32> to vector<32x256xf32>
    %c2_48 = arith.constant 2 : index
    %c0_49 = arith.constant 0 : index
    %c0_50 = arith.constant 0 : index
    %130 = vector.load %arg3[%c2_48, %c0_49, %c0_50] : memref<8x64x256xf32, #tpu.memory_space<vmem>>, vector<1x32x256xf32>
    %131 = vector.shape_cast %130 : vector<1x32x256xf32> to vector<32x256xf32>
    %132 = arith.subf %129, %131 : vector<32x256xf32>
    %133 = arith.mulf %132, %127 : vector<32x256xf32>
    %134 = math.absf %133 : vector<32x256xf32>
    %cst_51 = arith.constant 1.000000e+00 : f32
    %135 = vector.broadcast %cst_51 : f32 to vector<32x256xf32>
    %136 = arith.cmpf olt, %134, %135 : vector<32x256xf32>
    %cst_52 = arith.constant 5.000000e-01 : f32
    %137 = vector.broadcast %cst_52 : f32 to vector<32x256xf32>
    %138 = arith.mulf %137, %133 : vector<32x256xf32>
    %139 = arith.mulf %138, %133 : vector<32x256xf32>
    %cst_53 = arith.constant 5.000000e-01 : f32
    %140 = vector.broadcast %cst_53 : f32 to vector<32x256xf32>
    %141 = arith.subf %134, %140 : vector<32x256xf32>
    %142 = arith.select %136, %139, %141 : vector<32x256xi1>, vector<32x256xf32>
    %143 = vector.extract_strided_slice %142 {offsets = [0, 0], sizes = [8, 256], strides = [1, 1]} : vector<32x256xf32> to vector<8x256xf32>
    %144 = vector.extract_strided_slice %142 {offsets = [8, 0], sizes = [8, 256], strides = [1, 1]} : vector<32x256xf32> to vector<8x256xf32>
    %145 = arith.addf %143, %144 : vector<8x256xf32>
    %146 = vector.extract_strided_slice %142 {offsets = [16, 0], sizes = [8, 256], strides = [1, 1]} : vector<32x256xf32> to vector<8x256xf32>
    %147 = vector.extract_strided_slice %142 {offsets = [24, 0], sizes = [8, 256], strides = [1, 1]} : vector<32x256xf32> to vector<8x256xf32>
    %148 = arith.addf %146, %147 : vector<8x256xf32>
    %149 = arith.addf %145, %148 : vector<8x256xf32>
    %150 = arith.addf %89, %149 : vector<8x256xf32>
    %c3 = arith.constant 3 : index
    %c0_54 = arith.constant 0 : index
    %c0_55 = arith.constant 0 : index
    %151 = vector.load %arg2[%c3, %c0_54, %c0_55] : memref<8x64x256xf32, #tpu.memory_space<vmem>>, vector<1x32x256xf32>
    %152 = vector.shape_cast %151 : vector<1x32x256xf32> to vector<32x256xf32>
    %c3_56 = arith.constant 3 : index
    %c0_57 = arith.constant 0 : index
    %c0_58 = arith.constant 0 : index
    %153 = vector.load %arg3[%c3_56, %c0_57, %c0_58] : memref<8x64x256xf32, #tpu.memory_space<vmem>>, vector<1x32x256xf32>
    %154 = vector.shape_cast %153 : vector<1x32x256xf32> to vector<32x256xf32>
    %155 = arith.subf %152, %154 : vector<32x256xf32>
    %156 = arith.mulf %155, %127 : vector<32x256xf32>
    %157 = math.absf %156 : vector<32x256xf32>
    %cst_59 = arith.constant 1.000000e+00 : f32
    %158 = vector.broadcast %cst_59 : f32 to vector<32x256xf32>
    %159 = arith.cmpf olt, %157, %158 : vector<32x256xf32>
    %cst_60 = arith.constant 5.000000e-01 : f32
    %160 = vector.broadcast %cst_60 : f32 to vector<32x256xf32>
    %161 = arith.mulf %160, %156 : vector<32x256xf32>
    %162 = arith.mulf %161, %156 : vector<32x256xf32>
    %cst_61 = arith.constant 5.000000e-01 : f32
    %163 = vector.broadcast %cst_61 : f32 to vector<32x256xf32>
    %164 = arith.subf %157, %163 : vector<32x256xf32>
    %165 = arith.select %159, %162, %164 : vector<32x256xi1>, vector<32x256xf32>
    %166 = vector.extract_strided_slice %165 {offsets = [0, 0], sizes = [8, 256], strides = [1, 1]} : vector<32x256xf32> to vector<8x256xf32>
    %167 = vector.extract_strided_slice %165 {offsets = [8, 0], sizes = [8, 256], strides = [1, 1]} : vector<32x256xf32> to vector<8x256xf32>
    %168 = arith.addf %166, %167 : vector<8x256xf32>
    %169 = vector.extract_strided_slice %165 {offsets = [16, 0], sizes = [8, 256], strides = [1, 1]} : vector<32x256xf32> to vector<8x256xf32>
    %170 = vector.extract_strided_slice %165 {offsets = [24, 0], sizes = [8, 256], strides = [1, 1]} : vector<32x256xf32> to vector<8x256xf32>
    %171 = arith.addf %169, %170 : vector<8x256xf32>
    %172 = arith.addf %168, %171 : vector<8x256xf32>
    %173 = arith.addf %112, %172 : vector<8x256xf32>
    %cst_62 = arith.constant 0.000000e+00 : f32
    %174 = vector.broadcast %cst_62 : f32 to vector<32x256xf32>
    %175 = arith.cmpf one, %127, %174 : vector<32x256xf32>
    %176 = arith.extui %175 : vector<32x256xi1> to vector<32x256xi32>
    %177 = arith.sitofp %176 : vector<32x256xi32> to vector<32x256xf32>
    %178 = vector.extract_strided_slice %177 {offsets = [0, 0], sizes = [8, 256], strides = [1, 1]} : vector<32x256xf32> to vector<8x256xf32>
    %179 = vector.extract_strided_slice %177 {offsets = [8, 0], sizes = [8, 256], strides = [1, 1]} : vector<32x256xf32> to vector<8x256xf32>
    %180 = arith.addf %178, %179 : vector<8x256xf32>
    %181 = vector.extract_strided_slice %177 {offsets = [16, 0], sizes = [8, 256], strides = [1, 1]} : vector<32x256xf32> to vector<8x256xf32>
    %182 = vector.extract_strided_slice %177 {offsets = [24, 0], sizes = [8, 256], strides = [1, 1]} : vector<32x256xf32> to vector<8x256xf32>
    %183 = arith.addf %181, %182 : vector<8x256xf32>
    %184 = arith.addf %180, %183 : vector<8x256xf32>
    %185 = arith.addf %124, %184 : vector<8x256xf32>
    %c1_63 = arith.constant 1 : index
    %c32_64 = arith.constant 32 : index
    %c0_65 = arith.constant 0 : index
    %186 = vector.load %arg4[%c1_63, %c32_64, %c0_65] : memref<4x64x256xi8, #tpu.memory_space<vmem>>, vector<1x32x256xi8>
    %187 = vector.shape_cast %186 : vector<1x32x256xi8> to vector<32x256xi8>
    %188 = arith.sitofp %187 : vector<32x256xi8> to vector<32x256xf32>
    %c2_66 = arith.constant 2 : index
    %c32_67 = arith.constant 32 : index
    %c0_68 = arith.constant 0 : index
    %189 = vector.load %arg2[%c2_66, %c32_67, %c0_68] : memref<8x64x256xf32, #tpu.memory_space<vmem>>, vector<1x32x256xf32>
    %190 = vector.shape_cast %189 : vector<1x32x256xf32> to vector<32x256xf32>
    %c2_69 = arith.constant 2 : index
    %c32_70 = arith.constant 32 : index
    %c0_71 = arith.constant 0 : index
    %191 = vector.load %arg3[%c2_69, %c32_70, %c0_71] : memref<8x64x256xf32, #tpu.memory_space<vmem>>, vector<1x32x256xf32>
    %192 = vector.shape_cast %191 : vector<1x32x256xf32> to vector<32x256xf32>
    %193 = arith.subf %190, %192 : vector<32x256xf32>
    %194 = arith.mulf %193, %188 : vector<32x256xf32>
    %195 = math.absf %194 : vector<32x256xf32>
    %cst_72 = arith.constant 1.000000e+00 : f32
    %196 = vector.broadcast %cst_72 : f32 to vector<32x256xf32>
    %197 = arith.cmpf olt, %195, %196 : vector<32x256xf32>
    %cst_73 = arith.constant 5.000000e-01 : f32
    %198 = vector.broadcast %cst_73 : f32 to vector<32x256xf32>
    %199 = arith.mulf %198, %194 : vector<32x256xf32>
    %200 = arith.mulf %199, %194 : vector<32x256xf32>
    %cst_74 = arith.constant 5.000000e-01 : f32
    %201 = vector.broadcast %cst_74 : f32 to vector<32x256xf32>
    %202 = arith.subf %195, %201 : vector<32x256xf32>
    %203 = arith.select %197, %200, %202 : vector<32x256xi1>, vector<32x256xf32>
    %204 = vector.extract_strided_slice %203 {offsets = [0, 0], sizes = [8, 256], strides = [1, 1]} : vector<32x256xf32> to vector<8x256xf32>
    %205 = vector.extract_strided_slice %203 {offsets = [8, 0], sizes = [8, 256], strides = [1, 1]} : vector<32x256xf32> to vector<8x256xf32>
    %206 = arith.addf %204, %205 : vector<8x256xf32>
    %207 = vector.extract_strided_slice %203 {offsets = [16, 0], sizes = [8, 256], strides = [1, 1]} : vector<32x256xf32> to vector<8x256xf32>
    %208 = vector.extract_strided_slice %203 {offsets = [24, 0], sizes = [8, 256], strides = [1, 1]} : vector<32x256xf32> to vector<8x256xf32>
    %209 = arith.addf %207, %208 : vector<8x256xf32>
    %210 = arith.addf %206, %209 : vector<8x256xf32>
    %211 = arith.addf %150, %210 : vector<8x256xf32>
    %c3_75 = arith.constant 3 : index
    %c32_76 = arith.constant 32 : index
    %c0_77 = arith.constant 0 : index
    %212 = vector.load %arg2[%c3_75, %c32_76, %c0_77] : memref<8x64x256xf32, #tpu.memory_space<vmem>>, vector<1x32x256xf32>
    %213 = vector.shape_cast %212 : vector<1x32x256xf32> to vector<32x256xf32>
    %c3_78 = arith.constant 3 : index
    %c32_79 = arith.constant 32 : index
    %c0_80 = arith.constant 0 : index
    %214 = vector.load %arg3[%c3_78, %c32_79, %c0_80] : memref<8x64x256xf32, #tpu.memory_space<vmem>>, vector<1x32x256xf32>
    %215 = vector.shape_cast %214 : vector<1x32x256xf32> to vector<32x256xf32>
    %216 = arith.subf %213, %215 : vector<32x256xf32>
    %217 = arith.mulf %216, %188 : vector<32x256xf32>
    %218 = math.absf %217 : vector<32x256xf32>
    %cst_81 = arith.constant 1.000000e+00 : f32
    %219 = vector.broadcast %cst_81 : f32 to vector<32x256xf32>
    %220 = arith.cmpf olt, %218, %219 : vector<32x256xf32>
    %cst_82 = arith.constant 5.000000e-01 : f32
    %221 = vector.broadcast %cst_82 : f32 to vector<32x256xf32>
    %222 = arith.mulf %221, %217 : vector<32x256xf32>
    %223 = arith.mulf %222, %217 : vector<32x256xf32>
    %cst_83 = arith.constant 5.000000e-01 : f32
    %224 = vector.broadcast %cst_83 : f32 to vector<32x256xf32>
    %225 = arith.subf %218, %224 : vector<32x256xf32>
    %226 = arith.select %220, %223, %225 : vector<32x256xi1>, vector<32x256xf32>
    %227 = vector.extract_strided_slice %226 {offsets = [0, 0], sizes = [8, 256], strides = [1, 1]} : vector<32x256xf32> to vector<8x256xf32>
    %228 = vector.extract_strided_slice %226 {offsets = [8, 0], sizes = [8, 256], strides = [1, 1]} : vector<32x256xf32> to vector<8x256xf32>
    %229 = arith.addf %227, %228 : vector<8x256xf32>
    %230 = vector.extract_strided_slice %226 {offsets = [16, 0], sizes = [8, 256], strides = [1, 1]} : vector<32x256xf32> to vector<8x256xf32>
    %231 = vector.extract_strided_slice %226 {offsets = [24, 0], sizes = [8, 256], strides = [1, 1]} : vector<32x256xf32> to vector<8x256xf32>
    %232 = arith.addf %230, %231 : vector<8x256xf32>
    %233 = arith.addf %229, %232 : vector<8x256xf32>
    %234 = arith.addf %173, %233 : vector<8x256xf32>
    %cst_84 = arith.constant 0.000000e+00 : f32
    %235 = vector.broadcast %cst_84 : f32 to vector<32x256xf32>
    %236 = arith.cmpf one, %188, %235 : vector<32x256xf32>
    %237 = arith.extui %236 : vector<32x256xi1> to vector<32x256xi32>
    %238 = arith.sitofp %237 : vector<32x256xi32> to vector<32x256xf32>
    %239 = vector.extract_strided_slice %238 {offsets = [0, 0], sizes = [8, 256], strides = [1, 1]} : vector<32x256xf32> to vector<8x256xf32>
    %240 = vector.extract_strided_slice %238 {offsets = [8, 0], sizes = [8, 256], strides = [1, 1]} : vector<32x256xf32> to vector<8x256xf32>
    %241 = arith.addf %239, %240 : vector<8x256xf32>
    %242 = vector.extract_strided_slice %238 {offsets = [16, 0], sizes = [8, 256], strides = [1, 1]} : vector<32x256xf32> to vector<8x256xf32>
    %243 = vector.extract_strided_slice %238 {offsets = [24, 0], sizes = [8, 256], strides = [1, 1]} : vector<32x256xf32> to vector<8x256xf32>
    %244 = arith.addf %242, %243 : vector<8x256xf32>
    %245 = arith.addf %241, %244 : vector<8x256xf32>
    %246 = arith.addf %185, %245 : vector<8x256xf32>
    %c2_85 = arith.constant 2 : index
    %c0_86 = arith.constant 0 : index
    %c0_87 = arith.constant 0 : index
    %247 = vector.load %arg4[%c2_85, %c0_86, %c0_87] : memref<4x64x256xi8, #tpu.memory_space<vmem>>, vector<1x32x256xi8>
    %248 = vector.shape_cast %247 : vector<1x32x256xi8> to vector<32x256xi8>
    %249 = arith.sitofp %248 : vector<32x256xi8> to vector<32x256xf32>
    %c4 = arith.constant 4 : index
    %c0_88 = arith.constant 0 : index
    %c0_89 = arith.constant 0 : index
    %250 = vector.load %arg2[%c4, %c0_88, %c0_89] : memref<8x64x256xf32, #tpu.memory_space<vmem>>, vector<1x32x256xf32>
    %251 = vector.shape_cast %250 : vector<1x32x256xf32> to vector<32x256xf32>
    %c4_90 = arith.constant 4 : index
    %c0_91 = arith.constant 0 : index
    %c0_92 = arith.constant 0 : index
    %252 = vector.load %arg3[%c4_90, %c0_91, %c0_92] : memref<8x64x256xf32, #tpu.memory_space<vmem>>, vector<1x32x256xf32>
    %253 = vector.shape_cast %252 : vector<1x32x256xf32> to vector<32x256xf32>
    %254 = arith.subf %251, %253 : vector<32x256xf32>
    %255 = arith.mulf %254, %249 : vector<32x256xf32>
    %256 = math.absf %255 : vector<32x256xf32>
    %cst_93 = arith.constant 1.000000e+00 : f32
    %257 = vector.broadcast %cst_93 : f32 to vector<32x256xf32>
    %258 = arith.cmpf olt, %256, %257 : vector<32x256xf32>
    %cst_94 = arith.constant 5.000000e-01 : f32
    %259 = vector.broadcast %cst_94 : f32 to vector<32x256xf32>
    %260 = arith.mulf %259, %255 : vector<32x256xf32>
    %261 = arith.mulf %260, %255 : vector<32x256xf32>
    %cst_95 = arith.constant 5.000000e-01 : f32
    %262 = vector.broadcast %cst_95 : f32 to vector<32x256xf32>
    %263 = arith.subf %256, %262 : vector<32x256xf32>
    %264 = arith.select %258, %261, %263 : vector<32x256xi1>, vector<32x256xf32>
    %265 = vector.extract_strided_slice %264 {offsets = [0, 0], sizes = [8, 256], strides = [1, 1]} : vector<32x256xf32> to vector<8x256xf32>
    %266 = vector.extract_strided_slice %264 {offsets = [8, 0], sizes = [8, 256], strides = [1, 1]} : vector<32x256xf32> to vector<8x256xf32>
    %267 = arith.addf %265, %266 : vector<8x256xf32>
    %268 = vector.extract_strided_slice %264 {offsets = [16, 0], sizes = [8, 256], strides = [1, 1]} : vector<32x256xf32> to vector<8x256xf32>
    %269 = vector.extract_strided_slice %264 {offsets = [24, 0], sizes = [8, 256], strides = [1, 1]} : vector<32x256xf32> to vector<8x256xf32>
    %270 = arith.addf %268, %269 : vector<8x256xf32>
    %271 = arith.addf %267, %270 : vector<8x256xf32>
    %272 = arith.addf %211, %271 : vector<8x256xf32>
    %c5 = arith.constant 5 : index
    %c0_96 = arith.constant 0 : index
    %c0_97 = arith.constant 0 : index
    %273 = vector.load %arg2[%c5, %c0_96, %c0_97] : memref<8x64x256xf32, #tpu.memory_space<vmem>>, vector<1x32x256xf32>
    %274 = vector.shape_cast %273 : vector<1x32x256xf32> to vector<32x256xf32>
    %c5_98 = arith.constant 5 : index
    %c0_99 = arith.constant 0 : index
    %c0_100 = arith.constant 0 : index
    %275 = vector.load %arg3[%c5_98, %c0_99, %c0_100] : memref<8x64x256xf32, #tpu.memory_space<vmem>>, vector<1x32x256xf32>
    %276 = vector.shape_cast %275 : vector<1x32x256xf32> to vector<32x256xf32>
    %277 = arith.subf %274, %276 : vector<32x256xf32>
    %278 = arith.mulf %277, %249 : vector<32x256xf32>
    %279 = math.absf %278 : vector<32x256xf32>
    %cst_101 = arith.constant 1.000000e+00 : f32
    %280 = vector.broadcast %cst_101 : f32 to vector<32x256xf32>
    %281 = arith.cmpf olt, %279, %280 : vector<32x256xf32>
    %cst_102 = arith.constant 5.000000e-01 : f32
    %282 = vector.broadcast %cst_102 : f32 to vector<32x256xf32>
    %283 = arith.mulf %282, %278 : vector<32x256xf32>
    %284 = arith.mulf %283, %278 : vector<32x256xf32>
    %cst_103 = arith.constant 5.000000e-01 : f32
    %285 = vector.broadcast %cst_103 : f32 to vector<32x256xf32>
    %286 = arith.subf %279, %285 : vector<32x256xf32>
    %287 = arith.select %281, %284, %286 : vector<32x256xi1>, vector<32x256xf32>
    %288 = vector.extract_strided_slice %287 {offsets = [0, 0], sizes = [8, 256], strides = [1, 1]} : vector<32x256xf32> to vector<8x256xf32>
    %289 = vector.extract_strided_slice %287 {offsets = [8, 0], sizes = [8, 256], strides = [1, 1]} : vector<32x256xf32> to vector<8x256xf32>
    %290 = arith.addf %288, %289 : vector<8x256xf32>
    %291 = vector.extract_strided_slice %287 {offsets = [16, 0], sizes = [8, 256], strides = [1, 1]} : vector<32x256xf32> to vector<8x256xf32>
    %292 = vector.extract_strided_slice %287 {offsets = [24, 0], sizes = [8, 256], strides = [1, 1]} : vector<32x256xf32> to vector<8x256xf32>
    %293 = arith.addf %291, %292 : vector<8x256xf32>
    %294 = arith.addf %290, %293 : vector<8x256xf32>
    %295 = arith.addf %234, %294 : vector<8x256xf32>
    %cst_104 = arith.constant 0.000000e+00 : f32
    %296 = vector.broadcast %cst_104 : f32 to vector<32x256xf32>
    %297 = arith.cmpf one, %249, %296 : vector<32x256xf32>
    %298 = arith.extui %297 : vector<32x256xi1> to vector<32x256xi32>
    %299 = arith.sitofp %298 : vector<32x256xi32> to vector<32x256xf32>
    %300 = vector.extract_strided_slice %299 {offsets = [0, 0], sizes = [8, 256], strides = [1, 1]} : vector<32x256xf32> to vector<8x256xf32>
    %301 = vector.extract_strided_slice %299 {offsets = [8, 0], sizes = [8, 256], strides = [1, 1]} : vector<32x256xf32> to vector<8x256xf32>
    %302 = arith.addf %300, %301 : vector<8x256xf32>
    %303 = vector.extract_strided_slice %299 {offsets = [16, 0], sizes = [8, 256], strides = [1, 1]} : vector<32x256xf32> to vector<8x256xf32>
    %304 = vector.extract_strided_slice %299 {offsets = [24, 0], sizes = [8, 256], strides = [1, 1]} : vector<32x256xf32> to vector<8x256xf32>
    %305 = arith.addf %303, %304 : vector<8x256xf32>
    %306 = arith.addf %302, %305 : vector<8x256xf32>
    %307 = arith.addf %246, %306 : vector<8x256xf32>
    %c2_105 = arith.constant 2 : index
    %c32_106 = arith.constant 32 : index
    %c0_107 = arith.constant 0 : index
    %308 = vector.load %arg4[%c2_105, %c32_106, %c0_107] : memref<4x64x256xi8, #tpu.memory_space<vmem>>, vector<1x32x256xi8>
    %309 = vector.shape_cast %308 : vector<1x32x256xi8> to vector<32x256xi8>
    %310 = arith.sitofp %309 : vector<32x256xi8> to vector<32x256xf32>
    %c4_108 = arith.constant 4 : index
    %c32_109 = arith.constant 32 : index
    %c0_110 = arith.constant 0 : index
    %311 = vector.load %arg2[%c4_108, %c32_109, %c0_110] : memref<8x64x256xf32, #tpu.memory_space<vmem>>, vector<1x32x256xf32>
    %312 = vector.shape_cast %311 : vector<1x32x256xf32> to vector<32x256xf32>
    %c4_111 = arith.constant 4 : index
    %c32_112 = arith.constant 32 : index
    %c0_113 = arith.constant 0 : index
    %313 = vector.load %arg3[%c4_111, %c32_112, %c0_113] : memref<8x64x256xf32, #tpu.memory_space<vmem>>, vector<1x32x256xf32>
    %314 = vector.shape_cast %313 : vector<1x32x256xf32> to vector<32x256xf32>
    %315 = arith.subf %312, %314 : vector<32x256xf32>
    %316 = arith.mulf %315, %310 : vector<32x256xf32>
    %317 = math.absf %316 : vector<32x256xf32>
    %cst_114 = arith.constant 1.000000e+00 : f32
    %318 = vector.broadcast %cst_114 : f32 to vector<32x256xf32>
    %319 = arith.cmpf olt, %317, %318 : vector<32x256xf32>
    %cst_115 = arith.constant 5.000000e-01 : f32
    %320 = vector.broadcast %cst_115 : f32 to vector<32x256xf32>
    %321 = arith.mulf %320, %316 : vector<32x256xf32>
    %322 = arith.mulf %321, %316 : vector<32x256xf32>
    %cst_116 = arith.constant 5.000000e-01 : f32
    %323 = vector.broadcast %cst_116 : f32 to vector<32x256xf32>
    %324 = arith.subf %317, %323 : vector<32x256xf32>
    %325 = arith.select %319, %322, %324 : vector<32x256xi1>, vector<32x256xf32>
    %326 = vector.extract_strided_slice %325 {offsets = [0, 0], sizes = [8, 256], strides = [1, 1]} : vector<32x256xf32> to vector<8x256xf32>
    %327 = vector.extract_strided_slice %325 {offsets = [8, 0], sizes = [8, 256], strides = [1, 1]} : vector<32x256xf32> to vector<8x256xf32>
    %328 = arith.addf %326, %327 : vector<8x256xf32>
    %329 = vector.extract_strided_slice %325 {offsets = [16, 0], sizes = [8, 256], strides = [1, 1]} : vector<32x256xf32> to vector<8x256xf32>
    %330 = vector.extract_strided_slice %325 {offsets = [24, 0], sizes = [8, 256], strides = [1, 1]} : vector<32x256xf32> to vector<8x256xf32>
    %331 = arith.addf %329, %330 : vector<8x256xf32>
    %332 = arith.addf %328, %331 : vector<8x256xf32>
    %333 = arith.addf %272, %332 : vector<8x256xf32>
    %c5_117 = arith.constant 5 : index
    %c32_118 = arith.constant 32 : index
    %c0_119 = arith.constant 0 : index
    %334 = vector.load %arg2[%c5_117, %c32_118, %c0_119] : memref<8x64x256xf32, #tpu.memory_space<vmem>>, vector<1x32x256xf32>
    %335 = vector.shape_cast %334 : vector<1x32x256xf32> to vector<32x256xf32>
    %c5_120 = arith.constant 5 : index
    %c32_121 = arith.constant 32 : index
    %c0_122 = arith.constant 0 : index
    %336 = vector.load %arg3[%c5_120, %c32_121, %c0_122] : memref<8x64x256xf32, #tpu.memory_space<vmem>>, vector<1x32x256xf32>
    %337 = vector.shape_cast %336 : vector<1x32x256xf32> to vector<32x256xf32>
    %338 = arith.subf %335, %337 : vector<32x256xf32>
    %339 = arith.mulf %338, %310 : vector<32x256xf32>
    %340 = math.absf %339 : vector<32x256xf32>
    %cst_123 = arith.constant 1.000000e+00 : f32
    %341 = vector.broadcast %cst_123 : f32 to vector<32x256xf32>
    %342 = arith.cmpf olt, %340, %341 : vector<32x256xf32>
    %cst_124 = arith.constant 5.000000e-01 : f32
    %343 = vector.broadcast %cst_124 : f32 to vector<32x256xf32>
    %344 = arith.mulf %343, %339 : vector<32x256xf32>
    %345 = arith.mulf %344, %339 : vector<32x256xf32>
    %cst_125 = arith.constant 5.000000e-01 : f32
    %346 = vector.broadcast %cst_125 : f32 to vector<32x256xf32>
    %347 = arith.subf %340, %346 : vector<32x256xf32>
    %348 = arith.select %342, %345, %347 : vector<32x256xi1>, vector<32x256xf32>
    %349 = vector.extract_strided_slice %348 {offsets = [0, 0], sizes = [8, 256], strides = [1, 1]} : vector<32x256xf32> to vector<8x256xf32>
    %350 = vector.extract_strided_slice %348 {offsets = [8, 0], sizes = [8, 256], strides = [1, 1]} : vector<32x256xf32> to vector<8x256xf32>
    %351 = arith.addf %349, %350 : vector<8x256xf32>
    %352 = vector.extract_strided_slice %348 {offsets = [16, 0], sizes = [8, 256], strides = [1, 1]} : vector<32x256xf32> to vector<8x256xf32>
    %353 = vector.extract_strided_slice %348 {offsets = [24, 0], sizes = [8, 256], strides = [1, 1]} : vector<32x256xf32> to vector<8x256xf32>
    %354 = arith.addf %352, %353 : vector<8x256xf32>
    %355 = arith.addf %351, %354 : vector<8x256xf32>
    %356 = arith.addf %295, %355 : vector<8x256xf32>
    %cst_126 = arith.constant 0.000000e+00 : f32
    %357 = vector.broadcast %cst_126 : f32 to vector<32x256xf32>
    %358 = arith.cmpf one, %310, %357 : vector<32x256xf32>
    %359 = arith.extui %358 : vector<32x256xi1> to vector<32x256xi32>
    %360 = arith.sitofp %359 : vector<32x256xi32> to vector<32x256xf32>
    %361 = vector.extract_strided_slice %360 {offsets = [0, 0], sizes = [8, 256], strides = [1, 1]} : vector<32x256xf32> to vector<8x256xf32>
    %362 = vector.extract_strided_slice %360 {offsets = [8, 0], sizes = [8, 256], strides = [1, 1]} : vector<32x256xf32> to vector<8x256xf32>
    %363 = arith.addf %361, %362 : vector<8x256xf32>
    %364 = vector.extract_strided_slice %360 {offsets = [16, 0], sizes = [8, 256], strides = [1, 1]} : vector<32x256xf32> to vector<8x256xf32>
    %365 = vector.extract_strided_slice %360 {offsets = [24, 0], sizes = [8, 256], strides = [1, 1]} : vector<32x256xf32> to vector<8x256xf32>
    %366 = arith.addf %364, %365 : vector<8x256xf32>
    %367 = arith.addf %363, %366 : vector<8x256xf32>
    %368 = arith.addf %307, %367 : vector<8x256xf32>
    %c3_127 = arith.constant 3 : index
    %c0_128 = arith.constant 0 : index
    %c0_129 = arith.constant 0 : index
    %369 = vector.load %arg4[%c3_127, %c0_128, %c0_129] : memref<4x64x256xi8, #tpu.memory_space<vmem>>, vector<1x32x256xi8>
    %370 = vector.shape_cast %369 : vector<1x32x256xi8> to vector<32x256xi8>
    %371 = arith.sitofp %370 : vector<32x256xi8> to vector<32x256xf32>
    %c6 = arith.constant 6 : index
    %c0_130 = arith.constant 0 : index
    %c0_131 = arith.constant 0 : index
    %372 = vector.load %arg2[%c6, %c0_130, %c0_131] : memref<8x64x256xf32, #tpu.memory_space<vmem>>, vector<1x32x256xf32>
    %373 = vector.shape_cast %372 : vector<1x32x256xf32> to vector<32x256xf32>
    %c6_132 = arith.constant 6 : index
    %c0_133 = arith.constant 0 : index
    %c0_134 = arith.constant 0 : index
    %374 = vector.load %arg3[%c6_132, %c0_133, %c0_134] : memref<8x64x256xf32, #tpu.memory_space<vmem>>, vector<1x32x256xf32>
    %375 = vector.shape_cast %374 : vector<1x32x256xf32> to vector<32x256xf32>
    %376 = arith.subf %373, %375 : vector<32x256xf32>
    %377 = arith.mulf %376, %371 : vector<32x256xf32>
    %378 = math.absf %377 : vector<32x256xf32>
    %cst_135 = arith.constant 1.000000e+00 : f32
    %379 = vector.broadcast %cst_135 : f32 to vector<32x256xf32>
    %380 = arith.cmpf olt, %378, %379 : vector<32x256xf32>
    %cst_136 = arith.constant 5.000000e-01 : f32
    %381 = vector.broadcast %cst_136 : f32 to vector<32x256xf32>
    %382 = arith.mulf %381, %377 : vector<32x256xf32>
    %383 = arith.mulf %382, %377 : vector<32x256xf32>
    %cst_137 = arith.constant 5.000000e-01 : f32
    %384 = vector.broadcast %cst_137 : f32 to vector<32x256xf32>
    %385 = arith.subf %378, %384 : vector<32x256xf32>
    %386 = arith.select %380, %383, %385 : vector<32x256xi1>, vector<32x256xf32>
    %387 = vector.extract_strided_slice %386 {offsets = [0, 0], sizes = [8, 256], strides = [1, 1]} : vector<32x256xf32> to vector<8x256xf32>
    %388 = vector.extract_strided_slice %386 {offsets = [8, 0], sizes = [8, 256], strides = [1, 1]} : vector<32x256xf32> to vector<8x256xf32>
    %389 = arith.addf %387, %388 : vector<8x256xf32>
    %390 = vector.extract_strided_slice %386 {offsets = [16, 0], sizes = [8, 256], strides = [1, 1]} : vector<32x256xf32> to vector<8x256xf32>
    %391 = vector.extract_strided_slice %386 {offsets = [24, 0], sizes = [8, 256], strides = [1, 1]} : vector<32x256xf32> to vector<8x256xf32>
    %392 = arith.addf %390, %391 : vector<8x256xf32>
    %393 = arith.addf %389, %392 : vector<8x256xf32>
    %394 = arith.addf %333, %393 : vector<8x256xf32>
    %c7 = arith.constant 7 : index
    %c0_138 = arith.constant 0 : index
    %c0_139 = arith.constant 0 : index
    %395 = vector.load %arg2[%c7, %c0_138, %c0_139] : memref<8x64x256xf32, #tpu.memory_space<vmem>>, vector<1x32x256xf32>
    %396 = vector.shape_cast %395 : vector<1x32x256xf32> to vector<32x256xf32>
    %c7_140 = arith.constant 7 : index
    %c0_141 = arith.constant 0 : index
    %c0_142 = arith.constant 0 : index
    %397 = vector.load %arg3[%c7_140, %c0_141, %c0_142] : memref<8x64x256xf32, #tpu.memory_space<vmem>>, vector<1x32x256xf32>
    %398 = vector.shape_cast %397 : vector<1x32x256xf32> to vector<32x256xf32>
    %399 = arith.subf %396, %398 : vector<32x256xf32>
    %400 = arith.mulf %399, %371 : vector<32x256xf32>
    %401 = math.absf %400 : vector<32x256xf32>
    %cst_143 = arith.constant 1.000000e+00 : f32
    %402 = vector.broadcast %cst_143 : f32 to vector<32x256xf32>
    %403 = arith.cmpf olt, %401, %402 : vector<32x256xf32>
    %cst_144 = arith.constant 5.000000e-01 : f32
    %404 = vector.broadcast %cst_144 : f32 to vector<32x256xf32>
    %405 = arith.mulf %404, %400 : vector<32x256xf32>
    %406 = arith.mulf %405, %400 : vector<32x256xf32>
    %cst_145 = arith.constant 5.000000e-01 : f32
    %407 = vector.broadcast %cst_145 : f32 to vector<32x256xf32>
    %408 = arith.subf %401, %407 : vector<32x256xf32>
    %409 = arith.select %403, %406, %408 : vector<32x256xi1>, vector<32x256xf32>
    %410 = vector.extract_strided_slice %409 {offsets = [0, 0], sizes = [8, 256], strides = [1, 1]} : vector<32x256xf32> to vector<8x256xf32>
    %411 = vector.extract_strided_slice %409 {offsets = [8, 0], sizes = [8, 256], strides = [1, 1]} : vector<32x256xf32> to vector<8x256xf32>
    %412 = arith.addf %410, %411 : vector<8x256xf32>
    %413 = vector.extract_strided_slice %409 {offsets = [16, 0], sizes = [8, 256], strides = [1, 1]} : vector<32x256xf32> to vector<8x256xf32>
    %414 = vector.extract_strided_slice %409 {offsets = [24, 0], sizes = [8, 256], strides = [1, 1]} : vector<32x256xf32> to vector<8x256xf32>
    %415 = arith.addf %413, %414 : vector<8x256xf32>
    %416 = arith.addf %412, %415 : vector<8x256xf32>
    %417 = arith.addf %356, %416 : vector<8x256xf32>
    %cst_146 = arith.constant 0.000000e+00 : f32
    %418 = vector.broadcast %cst_146 : f32 to vector<32x256xf32>
    %419 = arith.cmpf one, %371, %418 : vector<32x256xf32>
    %420 = arith.extui %419 : vector<32x256xi1> to vector<32x256xi32>
    %421 = arith.sitofp %420 : vector<32x256xi32> to vector<32x256xf32>
    %422 = vector.extract_strided_slice %421 {offsets = [0, 0], sizes = [8, 256], strides = [1, 1]} : vector<32x256xf32> to vector<8x256xf32>
    %423 = vector.extract_strided_slice %421 {offsets = [8, 0], sizes = [8, 256], strides = [1, 1]} : vector<32x256xf32> to vector<8x256xf32>
    %424 = arith.addf %422, %423 : vector<8x256xf32>
    %425 = vector.extract_strided_slice %421 {offsets = [16, 0], sizes = [8, 256], strides = [1, 1]} : vector<32x256xf32> to vector<8x256xf32>
    %426 = vector.extract_strided_slice %421 {offsets = [24, 0], sizes = [8, 256], strides = [1, 1]} : vector<32x256xf32> to vector<8x256xf32>
    %427 = arith.addf %425, %426 : vector<8x256xf32>
    %428 = arith.addf %424, %427 : vector<8x256xf32>
    %429 = arith.addf %368, %428 : vector<8x256xf32>
    %c3_147 = arith.constant 3 : index
    %c32_148 = arith.constant 32 : index
    %c0_149 = arith.constant 0 : index
    %430 = vector.load %arg4[%c3_147, %c32_148, %c0_149] : memref<4x64x256xi8, #tpu.memory_space<vmem>>, vector<1x32x256xi8>
    %431 = vector.shape_cast %430 : vector<1x32x256xi8> to vector<32x256xi8>
    %432 = arith.sitofp %431 : vector<32x256xi8> to vector<32x256xf32>
    %c6_150 = arith.constant 6 : index
    %c32_151 = arith.constant 32 : index
    %c0_152 = arith.constant 0 : index
    %433 = vector.load %arg2[%c6_150, %c32_151, %c0_152] : memref<8x64x256xf32, #tpu.memory_space<vmem>>, vector<1x32x256xf32>
    %434 = vector.shape_cast %433 : vector<1x32x256xf32> to vector<32x256xf32>
    %c6_153 = arith.constant 6 : index
    %c32_154 = arith.constant 32 : index
    %c0_155 = arith.constant 0 : index
    %435 = vector.load %arg3[%c6_153, %c32_154, %c0_155] : memref<8x64x256xf32, #tpu.memory_space<vmem>>, vector<1x32x256xf32>
    %436 = vector.shape_cast %435 : vector<1x32x256xf32> to vector<32x256xf32>
    %437 = arith.subf %434, %436 : vector<32x256xf32>
    %438 = arith.mulf %437, %432 : vector<32x256xf32>
    %439 = math.absf %438 : vector<32x256xf32>
    %cst_156 = arith.constant 1.000000e+00 : f32
    %440 = vector.broadcast %cst_156 : f32 to vector<32x256xf32>
    %441 = arith.cmpf olt, %439, %440 : vector<32x256xf32>
    %cst_157 = arith.constant 5.000000e-01 : f32
    %442 = vector.broadcast %cst_157 : f32 to vector<32x256xf32>
    %443 = arith.mulf %442, %438 : vector<32x256xf32>
    %444 = arith.mulf %443, %438 : vector<32x256xf32>
    %cst_158 = arith.constant 5.000000e-01 : f32
    %445 = vector.broadcast %cst_158 : f32 to vector<32x256xf32>
    %446 = arith.subf %439, %445 : vector<32x256xf32>
    %447 = arith.select %441, %444, %446 : vector<32x256xi1>, vector<32x256xf32>
    %448 = vector.extract_strided_slice %447 {offsets = [0, 0], sizes = [8, 256], strides = [1, 1]} : vector<32x256xf32> to vector<8x256xf32>
    %449 = vector.extract_strided_slice %447 {offsets = [8, 0], sizes = [8, 256], strides = [1, 1]} : vector<32x256xf32> to vector<8x256xf32>
    %450 = arith.addf %448, %449 : vector<8x256xf32>
    %451 = vector.extract_strided_slice %447 {offsets = [16, 0], sizes = [8, 256], strides = [1, 1]} : vector<32x256xf32> to vector<8x256xf32>
    %452 = vector.extract_strided_slice %447 {offsets = [24, 0], sizes = [8, 256], strides = [1, 1]} : vector<32x256xf32> to vector<8x256xf32>
    %453 = arith.addf %451, %452 : vector<8x256xf32>
    %454 = arith.addf %450, %453 : vector<8x256xf32>
    %455 = arith.addf %394, %454 : vector<8x256xf32>
    %c7_159 = arith.constant 7 : index
    %c32_160 = arith.constant 32 : index
    %c0_161 = arith.constant 0 : index
    %456 = vector.load %arg2[%c7_159, %c32_160, %c0_161] : memref<8x64x256xf32, #tpu.memory_space<vmem>>, vector<1x32x256xf32>
    %457 = vector.shape_cast %456 : vector<1x32x256xf32> to vector<32x256xf32>
    %c7_162 = arith.constant 7 : index
    %c32_163 = arith.constant 32 : index
    %c0_164 = arith.constant 0 : index
    %458 = vector.load %arg3[%c7_162, %c32_163, %c0_164] : memref<8x64x256xf32, #tpu.memory_space<vmem>>, vector<1x32x256xf32>
    %459 = vector.shape_cast %458 : vector<1x32x256xf32> to vector<32x256xf32>
    %460 = arith.subf %457, %459 : vector<32x256xf32>
    %461 = arith.mulf %460, %432 : vector<32x256xf32>
    %462 = math.absf %461 : vector<32x256xf32>
    %cst_165 = arith.constant 1.000000e+00 : f32
    %463 = vector.broadcast %cst_165 : f32 to vector<32x256xf32>
    %464 = arith.cmpf olt, %462, %463 : vector<32x256xf32>
    %cst_166 = arith.constant 5.000000e-01 : f32
    %465 = vector.broadcast %cst_166 : f32 to vector<32x256xf32>
    %466 = arith.mulf %465, %461 : vector<32x256xf32>
    %467 = arith.mulf %466, %461 : vector<32x256xf32>
    %cst_167 = arith.constant 5.000000e-01 : f32
    %468 = vector.broadcast %cst_167 : f32 to vector<32x256xf32>
    %469 = arith.subf %462, %468 : vector<32x256xf32>
    %470 = arith.select %464, %467, %469 : vector<32x256xi1>, vector<32x256xf32>
    %471 = vector.extract_strided_slice %470 {offsets = [0, 0], sizes = [8, 256], strides = [1, 1]} : vector<32x256xf32> to vector<8x256xf32>
    %472 = vector.extract_strided_slice %470 {offsets = [8, 0], sizes = [8, 256], strides = [1, 1]} : vector<32x256xf32> to vector<8x256xf32>
    %473 = arith.addf %471, %472 : vector<8x256xf32>
    %474 = vector.extract_strided_slice %470 {offsets = [16, 0], sizes = [8, 256], strides = [1, 1]} : vector<32x256xf32> to vector<8x256xf32>
    %475 = vector.extract_strided_slice %470 {offsets = [24, 0], sizes = [8, 256], strides = [1, 1]} : vector<32x256xf32> to vector<8x256xf32>
    %476 = arith.addf %474, %475 : vector<8x256xf32>
    %477 = arith.addf %473, %476 : vector<8x256xf32>
    %478 = arith.addf %417, %477 : vector<8x256xf32>
    %cst_168 = arith.constant 0.000000e+00 : f32
    %479 = vector.broadcast %cst_168 : f32 to vector<32x256xf32>
    %480 = arith.cmpf one, %432, %479 : vector<32x256xf32>
    %481 = arith.extui %480 : vector<32x256xi1> to vector<32x256xi32>
    %482 = arith.sitofp %481 : vector<32x256xi32> to vector<32x256xf32>
    %483 = vector.extract_strided_slice %482 {offsets = [0, 0], sizes = [8, 256], strides = [1, 1]} : vector<32x256xf32> to vector<8x256xf32>
    %484 = vector.extract_strided_slice %482 {offsets = [8, 0], sizes = [8, 256], strides = [1, 1]} : vector<32x256xf32> to vector<8x256xf32>
    %485 = arith.addf %483, %484 : vector<8x256xf32>
    %486 = vector.extract_strided_slice %482 {offsets = [16, 0], sizes = [8, 256], strides = [1, 1]} : vector<32x256xf32> to vector<8x256xf32>
    %487 = vector.extract_strided_slice %482 {offsets = [24, 0], sizes = [8, 256], strides = [1, 1]} : vector<32x256xf32> to vector<8x256xf32>
    %488 = arith.addf %486, %487 : vector<8x256xf32>
    %489 = arith.addf %485, %488 : vector<8x256xf32>
    %490 = arith.addf %429, %489 : vector<8x256xf32>
    %c0_169 = arith.constant 0 : index
    %c0_170 = arith.constant 0 : index
    %c0_171 = arith.constant 0 : index
    %c0_172 = arith.constant 0 : index
    %491 = vector.load %arg5[%c0_169, %c0_170, %c0_171, %c0_172] : memref<1x1x24x256xf32, #tpu.memory_space<vmem>>, vector<1x1x8x256xf32>
    %492 = vector.shape_cast %491 : vector<1x1x8x256xf32> to vector<8x256xf32>
    %493 = vector.shape_cast %455 : vector<8x256xf32> to vector<1x1x8x256xf32>
    tpu.vector_store %arg5[%c0_169, %c0_170, %c0_171, %c0_172], %493 {strides = array<i32>} : memref<1x1x24x256xf32, #tpu.memory_space<vmem>>, vector<1x1x8x256xf32>,
    %c0_173 = arith.constant 0 : index
    %c0_174 = arith.constant 0 : index
    %c8 = arith.constant 8 : index
    %c0_175 = arith.constant 0 : index
    %494 = vector.load %arg5[%c0_173, %c0_174, %c8, %c0_175] : memref<1x1x24x256xf32, #tpu.memory_space<vmem>>, vector<1x1x8x256xf32>
    %495 = vector.shape_cast %494 : vector<1x1x8x256xf32> to vector<8x256xf32>
    %496 = vector.shape_cast %478 : vector<8x256xf32> to vector<1x1x8x256xf32>
    tpu.vector_store %arg5[%c0_173, %c0_174, %c8, %c0_175], %496 {strides = array<i32>} : memref<1x1x24x256xf32, #tpu.memory_space<vmem>>, vector<1x1x8x256xf32>,
    %c0_176 = arith.constant 0 : index
    %c0_177 = arith.constant 0 : index
    %c16 = arith.constant 16 : index
    %c0_178 = arith.constant 0 : index
    %497 = vector.load %arg5[%c0_176, %c0_177, %c16, %c0_178] : memref<1x1x24x256xf32, #tpu.memory_space<vmem>>, vector<1x1x8x256xf32>
    %498 = vector.shape_cast %497 : vector<1x1x8x256xf32> to vector<8x256xf32>
    %499 = vector.shape_cast %490 : vector<8x256xf32> to vector<1x1x8x256xf32>
    tpu.vector_store %arg5[%c0_176, %c0_177, %c16, %c0_178], %499 {strides = array<i32>} : memref<1x1x24x256xf32, #tpu.memory_space<vmem>>, vector<1x1x8x256xf32>,
    return
  }
  func.func @transform_0(%arg0: i32, %arg1: i32) -> (i32, i32, i32) {
    %c0_i32 = arith.constant 0 : i32
    %c0_i32_0 = arith.constant 0 : i32
    return %arg0, %arg1, %c0_i32 : i32, i32, i32
  }
  func.func @transform_1(%arg0: i32, %arg1: i32) -> (i32, i32, i32) {
    %c0_i32 = arith.constant 0 : i32
    %c0_i32_0 = arith.constant 0 : i32
    return %arg0, %arg1, %c0_i32 : i32, i32, i32
  }
  func.func @transform_2(%arg0: i32, %arg1: i32) -> (i32, i32, i32) {
    %c0_i32 = arith.constant 0 : i32
    %c0_i32_0 = arith.constant 0 : i32
    return %arg0, %arg1, %c0_i32 : i32, i32, i32
  }
  func.func @transform_3(%arg0: i32, %arg1: i32) -> (i32, i32, i32, i32) {
    %c0_i32 = arith.constant 0 : i32
    %c0_i32_0 = arith.constant 0 : i32
    %c0_i32_1 = arith.constant 0 : i32
    return %arg0, %arg1, %c0_i32, %c0_i32_0 : i32, i32, i32, i32
  }
}

</mosaic_0001>

<llo_original>
// kernel: tpu_custom_call.1
$region0: #{tpu_custom_call.1}
  #allocation0 [shape = 'u32[]', space=smem, size = 0x4, offset = 0x4, fixed_abs, tag = 'smem constant byte address 0x4 - core index']
  #allocation1 [shape = 'u32[144,128]{1,0:T(1,128)}', space=vmem, size = 0x12000, scoped, tag = 'internal scratch']
  #allocation9 [shape = 's32[]', space=sflag, size = 0x4, offset = 0, fixed_abs, tag = 'sflag constant byte address 0x0 - dummy sync flag']
  #allocation11 [shape = 's32[]', space=sflag, size = 0x4, offset = 0, fixed_abs, tag = 'sflag constant byte address 0x0 - dummy sync flag']
  #allocation13 [shape = 's32[]', space=sflag, size = 0x4, offset = 0, fixed_abs, tag = 'sflag constant byte address 0x0 - dummy sync flag']
  %s0 = inlined_call_operand.hbm [shape: f32[8,256,256], index: 0, kind: input, shape index: {}]
  %s1 = inlined_call_operand.hbm [shape: f32[8,256,256], index: 1, kind: input, shape index: {}]
  %s2 = inlined_call_operand.hbm [shape: s8[4,256,256], index: 2, kind: input, shape index: {}]
  %s3 = inlined_call_operand.hbm [shape: f32[1,4,24,256], index: 3, kind: output, shape index: {}]
  %s4 = sld [smem:[#allocation0]]
  $region57: #{tpu_custom_call.1} parent=0
    _
  %s6 = ssub.s32 1, %s4
  %s7 = scalar_select 0, %s6, %s4
  $region1: #{tpu_custom_call.1} parent=0
    #allocation2 [shape = 'u8[1048576]{0}', space=vmem, size = 0x100000, scoped, tag = 'input window, operand 0']
    #allocation3 [shape = 's32[2]{0}', space=sflag, size = 0x8, scoped, tag = 'scoped memory for tpu_custom_call.1']
    #allocation4 [shape = 's32[2]{0}', space=sflag, size = 0x8, scoped, tag = 'scoped memory for tpu_custom_call.1']
    #allocation5 [shape = 'u8[1048576]{0}', space=vmem, size = 0x100000, scoped, tag = 'input window, operand 1']
    #allocation6 [shape = 's32[2]{0}', space=sflag, size = 0x8, scoped, tag = 'scoped memory for tpu_custom_call.1']
    #allocation7 [shape = 'u8[131072]{0}', space=vmem, size = 0x20000, scoped, tag = 'input window, operand 2']
    #allocation8 [shape = 'u8[49152]{0}', space=vmem, size = 0xc000, scoped, tag = 'output window, operand 0']
    %8 = vsyncpa [#allocation3], 0
    %s9 = scalar_lea.sflag [#allocation3], 1
    %10 = vsyncpa %s9, 0
    %11 = vsyncpa [#allocation6], 0
    %s12 = scalar_lea.sflag [#allocation6], 1
    %13 = vsyncpa %s12, 0
    %14 = vsyncpa [#allocation4], 0
    %s15 = scalar_lea.sflag [#allocation4], 1
    %16 = vsyncpa %s15, 0
    loop: start=0, step=1, limit=6
    $region2: #{tpu_custom_call.1} parent=1 // loop_pre_header
      _
    $region3: #{tpu_custom_call.1} parent=1 // loop_header
      %s18 = sphi 0, %s22
      %p19 = scmp.ge.s32.totalorder %s18, 6
      %s25 = sphi 0, %s37
      %s26 = sphi 0, %s33
      %s27 = sphi 0, %s25
      %s28 = sphi 0, %s26
      %s29 = sphi 0, %s27
      %s30 = sphi 0, %s28
      %s42 = sphi 0, %s44
      %s45 = sphi 0, %s42
      %s46 = sphi 0, %s45
      %s62 = sphi 0, %s46
      %s70 = sphi 0, %s72
      %s73 = sphi 0, %s70
      %s74 = sphi 0, %s73
      %s90 = sphi 0, %s74
      %s98 = sphi 0, %s100
      %s101 = sphi 0, %s98
      %s102 = sphi 0, %s101
      %s118 = sphi 0, %s102
      %s126 = sphi 0, %s128
      %s129 = sphi 0, %s126
      %s130 = sphi 0, %s129
      %s146 = sphi 0, %s130
    $region4: #{tpu_custom_call.1} parent=1 // loop_header_branch
      %21 = sbr.rel (%p19) target = $region8
    $region5: #{tpu_custom_call.1} parent=1 // loop_body
      %s23 = ssub.s32 %s18, 1
      %s24 = ssub.s32 %s18, 2
      %s31 = sadd.s32 1, %s26
      %p32 = scmp.ge.s32.totalorder %s31, 4
      %s33 = scalar_select %p32, 0, %s31
      %s34 = sadd.s32 1, %s25
      %s35 = scalar_select %p32, %s34, %s25
      %p36 = scmp.ge.s32.totalorder %s35, 1
      %s37 = scalar_select %p36, 0, %s35
      %s38 = ssub.s32 %s25, %s37
      %s39 = ssub.s32 %s26, %s33
      %s40 = sor.u32 %s38, %s39
      %p41 = scmp.eq.s32.totalorder %s40, 0
      %s43 = sadd.s32 %s42, 1
      %s44 = scalar_select %p41, %s42, %s43
      %p47 = pneg %p41
      %p48 = scmp.eq.s32.totalorder %s18, 3
      %p49 = por %p47, %p48
      %p50 = scmp.ne.s32.totalorder %s42, %s45
      %p51 = scmp.eq.s32.totalorder %s18, 0
      %p52 = por %p50, %p51
      %p53 = scmp.ne.s32.totalorder %s42, %s45
      %p54 = scmp.eq.s32.totalorder %s23, 3
      %p55 = por %p53, %p54
      %p56 = scmp.ne.s32.totalorder %s45, %s46
      %p57 = scmp.eq.s32.totalorder %s23, 0
      %p58 = por %p56, %p57
      %p59 = scmp.ne.s32.totalorder %s45, %s46
      %p60 = scmp.eq.s32.totalorder %s24, 3
      %p61 = por %p59, %p60
      %p63 = scmp.ne.s32.totalorder %s46, %s62
      %p64 = scmp.eq.s32.totalorder %s24, 0
      %p65 = por %p63, %p64
      %s66 = ssub.s32 %s25, %s37
      %s67 = ssub.s32 %s26, %s33
      %s68 = sor.u32 %s66, %s67
      %p69 = scmp.eq.s32.totalorder %s68, 0
      %s71 = sadd.s32 %s70, 1
      %s72 = scalar_select %p69, %s70, %s71
      %p75 = pneg %p69
      %p76 = scmp.eq.s32.totalorder %s18, 3
      %p77 = por %p75, %p76
      %p78 = scmp.ne.s32.totalorder %s70, %s73
      %p79 = scmp.eq.s32.totalorder %s18, 0
      %p80 = por %p78, %p79
      %p81 = scmp.ne.s32.totalorder %s70, %s73
      %p82 = scmp.eq.s32.totalorder %s23, 3
      %p83 = por %p81, %p82
      %p84 = scmp.ne.s32.totalorder %s73, %s74
      %p85 = scmp.eq.s32.totalorder %s23, 0
      %p86 = por %p84, %p85
      %p87 = scmp.ne.s32.totalorder %s73, %s74
      %p88 = scmp.eq.s32.totalorder %s24, 3
      %p89 = por %p87, %p88
      %p91 = scmp.ne.s32.totalorder %s74, %s90
      %p92 = scmp.eq.s32.totalorder %s24, 0
      %p93 = por %p91, %p92
      %s94 = ssub.s32 %s25, %s37
      %s95 = ssub.s32 %s26, %s33
      %s96 = sor.u32 %s94, %s95
      %p97 = scmp.eq.s32.totalorder %s96, 0
      %s99 = sadd.s32 %s98, 1
      %s100 = scalar_select %p97, %s98, %s99
      %p103 = pneg %p97
      %p104 = scmp.eq.s32.totalorder %s18, 3
      %p105 = por %p103, %p104
      %p106 = scmp.ne.s32.totalorder %s98, %s101
      %p107 = scmp.eq.s32.totalorder %s18, 0
      %p108 = por %p106, %p107
      %p109 = scmp.ne.s32.totalorder %s98, %s101
      %p110 = scmp.eq.s32.totalorder %s23, 3
      %p111 = por %p109, %p110
      %p112 = scmp.ne.s32.totalorder %s101, %s102
      %p113 = scmp.eq.s32.totalorder %s23, 0
      %p114 = por %p112, %p113
      %p115 = scmp.ne.s32.totalorder %s101, %s102
      %p116 = scmp.eq.s32.totalorder %s24, 3
      %p117 = por %p115, %p116
      %p119 = scmp.ne.s32.totalorder %s102, %s118
      %p120 = scmp.eq.s32.totalorder %s24, 0
      %p121 = por %p119, %p120
      %s122 = ssub.s32 %s25, %s37
      %s123 = ssub.s32 %s26, %s33
      %s124 = sor.u32 %s122, %s123
      %p125 = scmp.eq.s32.totalorder %s124, 0
      %s127 = sadd.s32 %s126, 1
      %s128 = scalar_select %p125, %s126, %s127
      %p131 = pneg %p125
      %p132 = scmp.eq.s32.totalorder %s18, 3
      %p133 = por %p131, %p132
      %p134 = scmp.ne.s32.totalorder %s126, %s129
      %p135 = scmp.eq.s32.totalorder %s18, 0
      %p136 = por %p134, %p135
      %p137 = scmp.ne.s32.totalorder %s126, %s129
      %p138 = scmp.eq.s32.totalorder %s23, 3
      %p139 = por %p137, %p138
      %p140 = scmp.ne.s32.totalorder %s129, %s130
      %p141 = scmp.eq.s32.totalorder %s23, 0
      %p142 = por %p140, %p141
      %p143 = scmp.ne.s32.totalorder %s129, %s130
      %p144 = scmp.eq.s32.totalorder %s24, 3
      %p145 = por %p143, %p144
      %p147 = scmp.ne.s32.totalorder %s130, %s146
      %p148 = scmp.eq.s32.totalorder %s24, 0
      %p149 = por %p147, %p148
      %p150 = scmp.le.s32.totalorder 1, %s18
      %p151 = scmp.lt.s32.totalorder %s18, 5
      %p152 = pnand %p150, %p151
      %p153 = pneg %p152
      // Predicated region
      $region9: #{tpu_custom_call.1} parent=5 // pred_check
        _
      $region10: #{tpu_custom_call.1} parent=5 // pred_check_branch
        %155 = sbr.rel (%p152) target = $region12
      $region11: #{tpu_custom_call.1} parent=5 // pred_region
        %s156 = ssub.s32 %s18, 1
      $region12: #{tpu_custom_call.1} parent=5 // pred_fallthru
        _
      %p157 = scmp.lt.s32.totalorder %s18, 4
      // Predicated region
      $region13: #{tpu_custom_call.1} parent=5 // pred_check
        %p158 = pneg %p157
      $region14: #{tpu_custom_call.1} parent=5 // pred_check_branch
        %160 = sbr.rel (%p158) target = $region16
      $region15: #{tpu_custom_call.1} parent=5 // pred_region
        // Predicated region
        $region17: #{tpu_custom_call.1} parent=15 // pred_check
          %p161 = pneg %p52
        $region18: #{tpu_custom_call.1} parent=15 // pred_check_branch
          %163 = sbr.rel (%p161) target = $region20
        $region19: #{tpu_custom_call.1} parent=15 // pred_region
          #allocation10 [shape = 'u32[6]{0}', space=smem, size = 0x18, scoped, tag = 'DMA stride descriptor']
          %s164 = sand.u32 %s42, 1
          %s165 = scalar_lea.sflag [#allocation3], %s164
          %s166 = sand.u32 %s42, 1
          %s167 = smul.addr %s166, 1024
          %s168 = scalar_lea.vmem [#allocation2], %s167
          %s169 = smul.u32 8, %s25
          %s170 = smul.u32 8, %s26
          %s172 = ssub.s32 16384, 16384
          %173 = vsyncadd %s165, %s172
          %s174 = smul.addr %s170, 2
          %s175 = smul.addr %s169, 64
          %s176 = sadd.s32 %s174, %s175
          %s177 = smul.addr %s176, 128
          %s178 = scalar_lea.hbm %s0, %s177
          %s180 = sshll.u32 1, 14
          %s181 = sxor.u32 4294967295, %s180
          %s183 = sld [smem:[#allocation0]]
          %s184 = sadd.s32 2, %s183
          %s186 = sshll.u32 7, 26
          %s187 = sxor.u32 4294967295, %s186
          %s188 = sand.u32 0, %s187
          %s189 = sshll.u32 %s184, 26
          %s190 = sor.u32 %s188, %s189
          %s191 = sshll.u32 %s168, 4
          %s192 = int_to_ptr.vmem [resolvable:$true] %s191
          %198 = sst [smem:[#allocation10]] 8192
          %s199 = scalar_lea.smem [#allocation10], 1
          %200 = sst [smem:[%s199]] 2048
          %s201 = scalar_lea.smem [#allocation10], 2
          %202 = sst [smem:[%s201]] 8
          %s203 = scalar_lea.smem [#allocation10], 3
          %204 = sst [smem:[%s203]] 256
          %s205 = scalar_lea.smem [#allocation10], 4
          %206 = sst [smem:[%s205]] 256
          %s207 = scalar_lea.smem [#allocation10], 5
          %208 = sst [smem:[%s207]] 16
          %210 = dma.general %s178, 16384, %s192, %s165, [#allocation9], [#allocation10], %s190, 0
        $region20: #{tpu_custom_call.1} parent=15 // pred_fallthru
          _
        // Predicated region
        $region21: #{tpu_custom_call.1} parent=15 // pred_check
          %p211 = pneg %p80
        $region22: #{tpu_custom_call.1} parent=15 // pred_check_branch
          %213 = sbr.rel (%p211) target = $region24
        $region23: #{tpu_custom_call.1} parent=15 // pred_region
          #allocation12 [shape = 'u32[6]{0}', space=smem, size = 0x18, scoped, tag = 'DMA stride descriptor']
          %s214 = sand.u32 %s18, 1
          %s215 = scalar_lea.sflag [#allocation6], %s214
          %s216 = sand.u32 %s70, 1
          %s217 = smul.addr %s216, 1024
          %s218 = scalar_lea.vmem [#allocation5], %s217
          %s219 = smul.u32 8, %s25
          %s220 = smul.u32 8, %s26
          %s222 = ssub.s32 16384, 16384
          %223 = vsyncadd %s215, %s222
          %s224 = smul.addr %s220, 2
          %s225 = smul.addr %s219, 64
          %s226 = sadd.s32 %s224, %s225
          %s227 = smul.addr %s226, 128
          %s228 = scalar_lea.hbm %s1, %s227
          %s230 = sshll.u32 1, 14
          %s231 = sxor.u32 4294967295, %s230
          %s233 = sld [smem:[#allocation0]]
          %s234 = sadd.s32 2, %s233
          %s236 = sshll.u32 7, 26
          %s237 = sxor.u32 4294967295, %s236
          %s238 = sand.u32 0, %s237
          %s239 = sshll.u32 %s234, 26
          %s240 = sor.u32 %s238, %s239
          %s241 = sshll.u32 %s218, 4
          %s242 = int_to_ptr.vmem [resolvable:$true] %s241
          %248 = sst [smem:[#allocation12]] 8192
          %s249 = scalar_lea.smem [#allocation12], 1
          %250 = sst [smem:[%s249]] 2048
          %s251 = scalar_lea.smem [#allocation12], 2
          %252 = sst [smem:[%s251]] 8
          %s253 = scalar_lea.smem [#allocation12], 3
          %254 = sst [smem:[%s253]] 256
          %s255 = scalar_lea.smem [#allocation12], 4
          %256 = sst [smem:[%s255]] 256
          %s257 = scalar_lea.smem [#allocation12], 5
          %258 = sst [smem:[%s257]] 16
          %260 = dma.general %s228, 16384, %s242, %s215, [#allocation11], [#allocation12], %s240, 0
        $region24: #{tpu_custom_call.1} parent=15 // pred_fallthru
          _
        // Predicated region
        $region25: #{tpu_custom_call.1} parent=15 // pred_check
          %p261 = pneg %p108
        $region26: #{tpu_custom_call.1} parent=15 // pred_check_branch
          %263 = sbr.rel (%p261) target = $region28
        $region27: #{tpu_custom_call.1} parent=15 // pred_region
          #allocation14 [shape = 'u32[6]{0}', space=smem, size = 0x18, scoped, tag = 'DMA stride descriptor']
          %s264 = sand.u32 %s18, 1
          %s265 = scalar_lea.sflag [#allocation6], %s264
          %s266 = sand.u32 %s98, 1
          %s267 = smul.addr %s266, 128
          %s268 = scalar_lea.vmem [#allocation7], %s267
          %s269 = smul.u32 4, %s25
          %s270 = smul.u32 2, %s26
          %s272 = ssub.s32 2048, 2048
          %273 = vsyncadd %s265, %s272
          %s274 = smul.addr %s270, 2
          %s275 = smul.addr %s269, 16
          %s276 = sadd.s32 %s274, %s275
          %s277 = smul.addr %s276, 128
          %s278 = scalar_lea.hbm %s2, %s277
          %s280 = sshll.u32 1, 14
          %s281 = sxor.u32 4294967295, %s280
          %s283 = sld [smem:[#allocation0]]
          %s284 = sadd.s32 2, %s283
          %s286 = sshll.u32 7, 26
          %s287 = sxor.u32 4294967295, %s286
          %s288 = sand.u32 0, %s287
          %s289 = sshll.u32 %s284, 26
          %s290 = sor.u32 %s288, %s289
          %s291 = sshll.u32 %s268, 4
          %s292 = int_to_ptr.vmem [resolvable:$true] %s291
          %298 = sst [smem:[#allocation14]] 2048
          %s299 = scalar_lea.smem [#allocation14], 1
          %300 = sst [smem:[%s299]] 512
          %s301 = scalar_lea.smem [#allocation14], 2
          %302 = sst [smem:[%s301]] 2
          %s303 = scalar_lea.smem [#allocation14], 3
          %304 = sst [smem:[%s303]] 256
          %s305 = scalar_lea.smem [#allocation14], 4
          %306 = sst [smem:[%s305]] 256
          %s307 = scalar_lea.smem [#allocation14], 5
          %308 = sst [smem:[%s307]] 16
          %310 = dma.general %s278, 2048, %s292, %s265, [#allocation13], [#allocation14], %s290, 0
        $region28: #{tpu_custom_call.1} parent=15 // pred_fallthru
          _
      $region16: #{tpu_custom_call.1} parent=5 // pred_fallthru
        _
      %p311 = scmp.le.s32.totalorder 1, %s18
      %p312 = scmp.lt.s32.totalorder %s18, 5
      %p313 = pnand %p311, %p312
      %p314 = pneg %p313
      // Predicated region
      $region29: #{tpu_custom_call.1} parent=5 // pred_check
        _
      $region30: #{tpu_custom_call.1} parent=5 // pred_check_branch
        %316 = sbr.rel (%p313) target = $region32
      $region31: #{tpu_custom_call.1} parent=5 // pred_region
        %s317 = ssub.s32 %s18, 1
        %s318 = sand.u32 %s45, 1
        %s319 = scalar_lea.sflag [#allocation3], %s318
        %s320 = sand.u32 %s45, 1
        %s321 = smul.addr %s320, 1024
        %s322 = scalar_lea.vmem [#allocation2], %s321
        // Predicated region
        $region33: #{tpu_custom_call.1} parent=31 // pred_check
          %p323 = pneg %p58
        $region34: #{tpu_custom_call.1} parent=31 // pred_check_branch
          %325 = sbr.rel (%p323) target = $region36
        $region35: #{tpu_custom_call.1} parent=31 // pred_region
          %326 = dma.done %s319, 16384
        $region36: #{tpu_custom_call.1} parent=31 // pred_fallthru
          _
        %s327 = sand.u32 %s23, 1
        %s328 = scalar_lea.sflag [#allocation6], %s327
        %s329 = sand.u32 %s73, 1
        %s330 = smul.addr %s329, 1024
        %s331 = scalar_lea.vmem [#allocation5], %s330
        // Predicated region
        $region37: #{tpu_custom_call.1} parent=31 // pred_check
          %p332 = pneg %p86
        $region38: #{tpu_custom_call.1} parent=31 // pred_check_branch
          %334 = sbr.rel (%p332) target = $region40
        $region39: #{tpu_custom_call.1} parent=31 // pred_region
          %335 = dma.done %s328, 16384
        $region40: #{tpu_custom_call.1} parent=31 // pred_fallthru
          _
        %s336 = sand.u32 %s23, 1
        %s337 = scalar_lea.sflag [#allocation6], %s336
        %s338 = sand.u32 %s101, 1
        %s339 = smul.addr %s338, 128
        %s340 = scalar_lea.vmem [#allocation7], %s339
        // Predicated region
        $region41: #{tpu_custom_call.1} parent=31 // pred_check
          %p341 = pneg %p114
        $region42: #{tpu_custom_call.1} parent=31 // pred_check_branch
          %343 = sbr.rel (%p341) target = $region44
        $region43: #{tpu_custom_call.1} parent=31 // pred_region
          %344 = dma.done %s337, 2048
        $region44: #{tpu_custom_call.1} parent=31 // pred_fallthru
          _
        %s345 = sand.u32 %s45, 1
        %s346 = scalar_lea.sflag [#allocation3], %s345
        %s347 = sand.u32 %s45, 1
        %s348 = smul.addr %s347, 1024
        %s349 = scalar_lea.vmem [#allocation2], %s348
        %p350 = pneg %p58
        %p351 = pneg %p55
        %s352 = sand.u32 %s23, 1
        %s353 = scalar_lea.sflag [#allocation6], %s352
        %s354 = sand.u32 %s73, 1
        %s355 = smul.addr %s354, 1024
        %s356 = scalar_lea.vmem [#allocation5], %s355
        %p357 = pneg %p86
        %p358 = pneg %p83
        %s359 = sand.u32 %s23, 1
        %s360 = scalar_lea.sflag [#allocation6], %s359
        %s361 = sand.u32 %s101, 1
        %s362 = smul.addr %s361, 128
        %s363 = scalar_lea.vmem [#allocation7], %s362
        %p364 = pneg %p114
        %p365 = pneg %p111
        %p366 = pneg %p142
        %p367 = pneg %p139
        %s368 = sand.u32 %s129, 1
        %s369 = scalar_lea.sflag [#allocation4], %s368
        %s370 = sand.u32 %s129, 1
        %s371 = smul.addr %s370, 48
        %s372 = scalar_lea.vmem [#allocation8], %s371
        %s373 = smul.u32 8, %s27
        %s374 = smul.u32 8, %s28
        %s375 = smul.u32 8, %s27
        %s376 = smul.u32 8, %s28
        %s377 = smul.u32 4, %s27
        %s378 = smul.u32 2, %s28
        %v379 = vld [vmem:[%s340] sm:$0xff]
        %v380 = vld [vmem:[%s340 + $0x8] sm:$0xff]
        %v381 = vunpack.c.0.s8 %v379
        %v382 = vunpack.c.0.s8 %v380
        %v383 = vunpack.c.1.s8 %v379
        %v384 = vunpack.c.1.s8 %v380
        %v385 = vunpack.c.2.s8 %v379
        %v386 = vunpack.c.2.s8 %v380
        %v387 = vunpack.c.3.s8 %v379
        %v388 = vunpack.c.3.s8 %v380
        %v389 = vcvt.s32.f32 %v381
        %v390 = vcvt.s32.f32 %v382
        %v391 = vcvt.s32.f32 %v383
        %v392 = vcvt.s32.f32 %v384
        %v393 = vcvt.s32.f32 %v385
        %v394 = vcvt.s32.f32 %v386
        %v395 = vcvt.s32.f32 %v387
        %v396 = vcvt.s32.f32 %v388
        %v397 = vld [vmem:[%s322] sm:$0xff]
        %v398 = vld [vmem:[%s322 + $0x8] sm:$0xff]
        %v399 = vld [vmem:[%s322 + $0x10] sm:$0xff]
        %v400 = vld [vmem:[%s322 + $0x18] sm:$0xff]
        %v401 = vld [vmem:[%s322 + $0x20] sm:$0xff]
        %v402 = vld [vmem:[%s322 + $0x28] sm:$0xff]
        %v403 = vld [vmem:[%s322 + $0x30] sm:$0xff]
        %v404 = vld [vmem:[%s322 + $0x38] sm:$0xff]
        %v405 = vld [vmem:[%s331] sm:$0xff]
        %v406 = vld [vmem:[%s331 + $0x8] sm:$0xff]
        %v407 = vld [vmem:[%s331 + $0x10] sm:$0xff]
        %v408 = vld [vmem:[%s331 + $0x18] sm:$0xff]
        %v409 = vld [vmem:[%s331 + $0x20] sm:$0xff]
        %v410 = vld [vmem:[%s331 + $0x28] sm:$0xff]
        %v411 = vld [vmem:[%s331 + $0x30] sm:$0xff]
        %v412 = vld [vmem:[%s331 + $0x38] sm:$0xff]
        %v413 = vsub.f32 %v397, %v405
        %v414 = vsub.f32 %v398, %v406
        %v415 = vsub.f32 %v399, %v407
        %v416 = vsub.f32 %v400, %v408
        %v417 = vsub.f32 %v401, %v409
        %v418 = vsub.f32 %v402, %v410
        %v419 = vsub.f32 %v403, %v411
        %v420 = vsub.f32 %v404, %v412
        %v421 = vmul.f32 %v413, %v389
        %v422 = vmul.f32 %v414, %v390
        %v423 = vmul.f32 %v415, %v391
        %v424 = vmul.f32 %v416, %v392
        %v425 = vmul.f32 %v417, %v393
        %v426 = vmul.f32 %v418, %v394
        %v427 = vmul.f32 %v419, %v395
        %v428 = vmul.f32 %v420, %v396
        %v429 = vand.u32 2147483647, %v421
        %v430 = vand.u32 2147483647, %v422
        %v431 = vand.u32 2147483647, %v423
        %v432 = vand.u32 2147483647, %v424
        %v433 = vand.u32 2147483647, %v425
        %v434 = vand.u32 2147483647, %v426
        %v435 = vand.u32 2147483647, %v427
        %v436 = vand.u32 2147483647, %v428
        %vm437 = vcmp.lt.f32.partialorder %v429, 1.0
        %vm438 = vcmp.lt.f32.partialorder %v430, 1.0
        %vm439 = vcmp.lt.f32.partialorder %v431, 1.0
        %vm440 = vcmp.lt.f32.partialorder %v432, 1.0
        %vm441 = vcmp.lt.f32.partialorder %v433, 1.0
        %vm442 = vcmp.lt.f32.partialorder %v434, 1.0
        %vm443 = vcmp.lt.f32.partialorder %v435, 1.0
        %vm444 = vcmp.lt.f32.partialorder %v436, 1.0
        %v445 = vmul.f32 %v421, 0.5
        %v446 = vmul.f32 %v422, 0.5
        %v447 = vmul.f32 %v423, 0.5
        %v448 = vmul.f32 %v424, 0.5
        %v449 = vmul.f32 %v425, 0.5
        %v450 = vmul.f32 %v426, 0.5
        %v451 = vmul.f32 %v427, 0.5
        %v452 = vmul.f32 %v428, 0.5
        %v453 = vmul.f32 %v445, %v421
        %v454 = vmul.f32 %v446, %v422
        %v455 = vmul.f32 %v447, %v423
        %v456 = vmul.f32 %v448, %v424
        %v457 = vmul.f32 %v449, %v425
        %v458 = vmul.f32 %v450, %v426
        %v459 = vmul.f32 %v451, %v427
        %v460 = vmul.f32 %v452, %v428
        %v461 = vsub.f32 %v429, 0.5
        %v462 = vsub.f32 %v430, 0.5
        %v463 = vsub.f32 %v431, 0.5
        %v464 = vsub.f32 %v432, 0.5
        %v465 = vsub.f32 %v433, 0.5
        %v466 = vsub.f32 %v434, 0.5
        %v467 = vsub.f32 %v435, 0.5
        %v468 = vsub.f32 %v436, 0.5
        %v469 = vsel %vm437, %v453, %v461
        %v470 = vsel %vm438, %v454, %v462
        %v471 = vsel %vm439, %v455, %v463
        %v472 = vsel %vm440, %v456, %v464
        %v473 = vsel %vm441, %v457, %v465
        %v474 = vsel %vm442, %v458, %v466
        %v475 = vsel %vm443, %v459, %v467
        %v476 = vsel %vm444, %v460, %v468
        %v477 = vadd.f32 %v469, %v471
        %v478 = vadd.f32 %v470, %v472
        %v479 = vadd.f32 %v473, %v475
        %v480 = vadd.f32 %v474, %v476
        %v481 = vadd.f32 %v477, %v479
        %v482 = vadd.f32 %v478, %v480
        %v483 = vadd.f32 %v481, 0.0
        %v484 = vadd.f32 %v482, 0.0
        %s485 = scalar_lea.vmem %s322, 128 [#allocation2]
        %v486 = vld [vmem:[%s485] sm:$0xff]
        %v487 = vld [vmem:[%s485 + $0x8] sm:$0xff]
        %v488 = vld [vmem:[%s485 + $0x10] sm:$0xff]
        %v489 = vld [vmem:[%s485 + $0x18] sm:$0xff]
        %v490 = vld [vmem:[%s485 + $0x20] sm:$0xff]
        %v491 = vld [vmem:[%s485 + $0x28] sm:$0xff]
        %v492 = vld [vmem:[%s485 + $0x30] sm:$0xff]
        %v493 = vld [vmem:[%s485 + $0x38] sm:$0xff]
        %s494 = scalar_lea.vmem %s331, 128 [#allocation5]
        %v495 = vld [vmem:[%s494] sm:$0xff]
        %v496 = vld [vmem:[%s494 + $0x8] sm:$0xff]
        %v497 = vld [vmem:[%s494 + $0x10] sm:$0xff]
        %v498 = vld [vmem:[%s494 + $0x18] sm:$0xff]
        %v499 = vld [vmem:[%s494 + $0x20] sm:$0xff]
        %v500 = vld [vmem:[%s494 + $0x28] sm:$0xff]
        %v501 = vld [vmem:[%s494 + $0x30] sm:$0xff]
        %v502 = vld [vmem:[%s494 + $0x38] sm:$0xff]
        %v503 = vsub.f32 %v486, %v495
        %v504 = vsub.f32 %v487, %v496
        %v505 = vsub.f32 %v488, %v497
        %v506 = vsub.f32 %v489, %v498
        %v507 = vsub.f32 %v490, %v499
        %v508 = vsub.f32 %v491, %v500
        %v509 = vsub.f32 %v492, %v501
        %v510 = vsub.f32 %v493, %v502
        %v511 = vmul.f32 %v503, %v389
        %v512 = vmul.f32 %v504, %v390
        %v513 = vmul.f32 %v505, %v391
        %v514 = vmul.f32 %v506, %v392
        %v515 = vmul.f32 %v507, %v393
        %v516 = vmul.f32 %v508, %v394
        %v517 = vmul.f32 %v509, %v395
        %v518 = vmul.f32 %v510, %v396
        %v519 = vand.u32 2147483647, %v511
        %v520 = vand.u32 2147483647, %v512
        %v521 = vand.u32 2147483647, %v513
        %v522 = vand.u32 2147483647, %v514
        %v523 = vand.u32 2147483647, %v515
        %v524 = vand.u32 2147483647, %v516
        %v525 = vand.u32 2147483647, %v517
        %v526 = vand.u32 2147483647, %v518
        %vm527 = vcmp.lt.f32.partialorder %v519, 1.0
        %vm528 = vcmp.lt.f32.partialorder %v520, 1.0
        %vm529 = vcmp.lt.f32.partialorder %v521, 1.0
        %vm530 = vcmp.lt.f32.partialorder %v522, 1.0
        %vm531 = vcmp.lt.f32.partialorder %v523, 1.0
        %vm532 = vcmp.lt.f32.partialorder %v524, 1.0
        %vm533 = vcmp.lt.f32.partialorder %v525, 1.0
        %vm534 = vcmp.lt.f32.partialorder %v526, 1.0
        %v535 = vmul.f32 %v511, 0.5
        %v536 = vmul.f32 %v512, 0.5
        %v537 = vmul.f32 %v513, 0.5
        %v538 = vmul.f32 %v514, 0.5
        %v539 = vmul.f32 %v515, 0.5
        %v540 = vmul.f32 %v516, 0.5
        %v541 = vmul.f32 %v517, 0.5
        %v542 = vmul.f32 %v518, 0.5
        %v543 = vmul.f32 %v535, %v511
        %v544 = vmul.f32 %v536, %v512
        %v545 = vmul.f32 %v537, %v513
        %v546 = vmul.f32 %v538, %v514
        %v547 = vmul.f32 %v539, %v515
        %v548 = vmul.f32 %v540, %v516
        %v549 = vmul.f32 %v541, %v517
        %v550 = vmul.f32 %v542, %v518
        %v551 = vsub.f32 %v519, 0.5
        %v552 = vsub.f32 %v520, 0.5
        %v553 = vsub.f32 %v521, 0.5
        %v554 = vsub.f32 %v522, 0.5
        %v555 = vsub.f32 %v523, 0.5
        %v556 = vsub.f32 %v524, 0.5
        %v557 = vsub.f32 %v525, 0.5
        %v558 = vsub.f32 %v526, 0.5
        %v559 = vsel %vm527, %v543, %v551
        %v560 = vsel %vm528, %v544, %v552
        %v561 = vsel %vm529, %v545, %v553
        %v562 = vsel %vm530, %v546, %v554
        %v563 = vsel %vm531, %v547, %v555
        %v564 = vsel %vm532, %v548, %v556
        %v565 = vsel %vm533, %v549, %v557
        %v566 = vsel %vm534, %v550, %v558
        %v567 = vadd.f32 %v559, %v561
        %v568 = vadd.f32 %v560, %v562
        %v569 = vadd.f32 %v563, %v565
        %v570 = vadd.f32 %v564, %v566
        %v571 = vadd.f32 %v567, %v569
        %v572 = vadd.f32 %v568, %v570
        %v573 = vadd.f32 %v571, 0.0
        %v574 = vadd.f32 %v572, 0.0
        %vm575 = vcmp.ne.f32.partialorder %v389, 0.0
        %vm576 = vcmp.ne.f32.partialorder %v390, 0.0
        %vm577 = vcmp.ne.f32.partialorder %v391, 0.0
        %vm578 = vcmp.ne.f32.partialorder %v392, 0.0
        %vm579 = vcmp.ne.f32.partialorder %v393, 0.0
        %vm580 = vcmp.ne.f32.partialorder %v394, 0.0
        %vm581 = vcmp.ne.f32.partialorder %v395, 0.0
        %vm582 = vcmp.ne.f32.partialorder %v396, 0.0
        %v583 = vsel %vm575, 1, 0
        %v584 = vsel %vm576, 1, 0
        %v585 = vsel %vm577, 1, 0
        %v586 = vsel %vm578, 1, 0
        %v587 = vsel %vm579, 1, 0
        %v588 = vsel %vm580, 1, 0
        %v589 = vsel %vm581, 1, 0
        %v590 = vsel %vm582, 1, 0
        %v591 = vcvt.s32.f32 %v583
        %v592 = vcvt.s32.f32 %v584
        %v593 = vcvt.s32.f32 %v585
        %v594 = vcvt.s32.f32 %v586
        %v595 = vcvt.s32.f32 %v587
        %v596 = vcvt.s32.f32 %v588
        %v597 = vcvt.s32.f32 %v589
        %v598 = vcvt.s32.f32 %v590
        %v599 = vadd.f32 %v591, %v593
        %v600 = vadd.f32 %v592, %v594
        %v601 = vadd.f32 %v595, %v597
        %v602 = vadd.f32 %v596, %v598
        %v603 = vadd.f32 %v599, %v601
        %v604 = vadd.f32 %v600, %v602
        %v605 = vadd.f32 %v603, 0.0
        %v606 = vadd.f32 %v604, 0.0
        %v607 = vld [vmem:[%s340 + $0x10] sm:$0xff]
        %v608 = vld [vmem:[%s340 + $0x18] sm:$0xff]
        %v609 = vunpack.c.0.s8 %v607
        %v610 = vunpack.c.0.s8 %v608
        %v611 = vunpack.c.1.s8 %v607
        %v612 = vunpack.c.1.s8 %v608
        %v613 = vunpack.c.2.s8 %v607
        %v614 = vunpack.c.2.s8 %v608
        %v615 = vunpack.c.3.s8 %v607
        %v616 = vunpack.c.3.s8 %v608
        %v617 = vcvt.s32.f32 %v609
        %v618 = vcvt.s32.f32 %v610
        %v619 = vcvt.s32.f32 %v611
        %v620 = vcvt.s32.f32 %v612
        %v621 = vcvt.s32.f32 %v613
        %v622 = vcvt.s32.f32 %v614
        %v623 = vcvt.s32.f32 %v615
        %v624 = vcvt.s32.f32 %v616
        %v625 = vld [vmem:[%s322 + $0x40] sm:$0xff]
        %v626 = vld [vmem:[%s322 + $0x48] sm:$0xff]
        %v627 = vld [vmem:[%s322 + $0x50] sm:$0xff]
        %v628 = vld [vmem:[%s322 + $0x58] sm:$0xff]
        %v629 = vld [vmem:[%s322 + $0x60] sm:$0xff]
        %v630 = vld [vmem:[%s322 + $0x68] sm:$0xff]
        %v631 = vld [vmem:[%s322 + $0x70] sm:$0xff]
        %v632 = vld [vmem:[%s322 + $0x78] sm:$0xff]
        %v633 = vld [vmem:[%s331 + $0x40] sm:$0xff]
        %v634 = vld [vmem:[%s331 + $0x48] sm:$0xff]
        %v635 = vld [vmem:[%s331 + $0x50] sm:$0xff]
        %v636 = vld [vmem:[%s331 + $0x58] sm:$0xff]
        %v637 = vld [vmem:[%s331 + $0x60] sm:$0xff]
        %v638 = vld [vmem:[%s331 + $0x68] sm:$0xff]
        %v639 = vld [vmem:[%s331 + $0x70] sm:$0xff]
        %v640 = vld [vmem:[%s331 + $0x78] sm:$0xff]
        %v641 = vsub.f32 %v625, %v633
        %v642 = vsub.f32 %v626, %v634
        %v643 = vsub.f32 %v627, %v635
        %v644 = vsub.f32 %v628, %v636
        %v645 = vsub.f32 %v629, %v637
        %v646 = vsub.f32 %v630, %v638
        %v647 = vsub.f32 %v631, %v639
        %v648 = vsub.f32 %v632, %v640
        %v649 = vmul.f32 %v641, %v617
        %v650 = vmul.f32 %v642, %v618
        %v651 = vmul.f32 %v643, %v619
        %v652 = vmul.f32 %v644, %v620
        %v653 = vmul.f32 %v645, %v621
        %v654 = vmul.f32 %v646, %v622
        %v655 = vmul.f32 %v647, %v623
        %v656 = vmul.f32 %v648, %v624
        %v657 = vand.u32 2147483647, %v649
        %v658 = vand.u32 2147483647, %v650
        %v659 = vand.u32 2147483647, %v651
        %v660 = vand.u32 2147483647, %v652
        %v661 = vand.u32 2147483647, %v653
        %v662 = vand.u32 2147483647, %v654
        %v663 = vand.u32 2147483647, %v655
        %v664 = vand.u32 2147483647, %v656
        %vm665 = vcmp.lt.f32.partialorder %v657, 1.0
        %vm666 = vcmp.lt.f32.partialorder %v658, 1.0
        %vm667 = vcmp.lt.f32.partialorder %v659, 1.0
        %vm668 = vcmp.lt.f32.partialorder %v660, 1.0
        %vm669 = vcmp.lt.f32.partialorder %v661, 1.0
        %vm670 = vcmp.lt.f32.partialorder %v662, 1.0
        %vm671 = vcmp.lt.f32.partialorder %v663, 1.0
        %vm672 = vcmp.lt.f32.partialorder %v664, 1.0
        %v673 = vmul.f32 %v649, 0.5
        %v674 = vmul.f32 %v650, 0.5
        %v675 = vmul.f32 %v651, 0.5
        %v676 = vmul.f32 %v652, 0.5
        %v677 = vmul.f32 %v653, 0.5
        %v678 = vmul.f32 %v654, 0.5
        %v679 = vmul.f32 %v655, 0.5
        %v680 = vmul.f32 %v656, 0.5
        %v681 = vmul.f32 %v673, %v649
        %v682 = vmul.f32 %v674, %v650
        %v683 = vmul.f32 %v675, %v651
        %v684 = vmul.f32 %v676, %v652
        %v685 = vmul.f32 %v677, %v653
        %v686 = vmul.f32 %v678, %v654
        %v687 = vmul.f32 %v679, %v655
        %v688 = vmul.f32 %v680, %v656
        %v689 = vsub.f32 %v657, 0.5
        %v690 = vsub.f32 %v658, 0.5
        %v691 = vsub.f32 %v659, 0.5
        %v692 = vsub.f32 %v660, 0.5
        %v693 = vsub.f32 %v661, 0.5
        %v694 = vsub.f32 %v662, 0.5
        %v695 = vsub.f32 %v663, 0.5
        %v696 = vsub.f32 %v664, 0.5
        %v697 = vsel %vm665, %v681, %v689
        %v698 = vsel %vm666, %v682, %v690
        %v699 = vsel %vm667, %v683, %v691
        %v700 = vsel %vm668, %v684, %v692
        %v701 = vsel %vm669, %v685, %v693
        %v702 = vsel %vm670, %v686, %v694
        %v703 = vsel %vm671, %v687, %v695
        %v704 = vsel %vm672, %v688, %v696
        %v705 = vadd.f32 %v697, %v699
        %v706 = vadd.f32 %v698, %v700
        %v707 = vadd.f32 %v701, %v703
        %v708 = vadd.f32 %v702, %v704
        %v709 = vadd.f32 %v705, %v707
        %v710 = vadd.f32 %v706, %v708
        %v711 = vadd.f32 %v483, %v709
        %v712 = vadd.f32 %v484, %v710
        %v713 = vld [vmem:[%s485 + $0x40] sm:$0xff]
        %v714 = vld [vmem:[%s485 + $0x48] sm:$0xff]
        %v715 = vld [vmem:[%s485 + $0x50] sm:$0xff]
        %v716 = vld [vmem:[%s485 + $0x58] sm:$0xff]
        %v717 = vld [vmem:[%s485 + $0x60] sm:$0xff]
        %v718 = vld [vmem:[%s485 + $0x68] sm:$0xff]
        %v719 = vld [vmem:[%s485 + $0x70] sm:$0xff]
        %v720 = vld [vmem:[%s485 + $0x78] sm:$0xff]
        %v721 = vld [vmem:[%s494 + $0x40] sm:$0xff]
        %v722 = vld [vmem:[%s494 + $0x48] sm:$0xff]
        %v723 = vld [vmem:[%s494 + $0x50] sm:$0xff]
        %v724 = vld [vmem:[%s494 + $0x58] sm:$0xff]
        %v725 = vld [vmem:[%s494 + $0x60] sm:$0xff]
        %v726 = vld [vmem:[%s494 + $0x68] sm:$0xff]
        %v727 = vld [vmem:[%s494 + $0x70] sm:$0xff]
        %v728 = vld [vmem:[%s494 + $0x78] sm:$0xff]
        %v729 = vsub.f32 %v713, %v721
        %v730 = vsub.f32 %v714, %v722
        %v731 = vsub.f32 %v715, %v723
        %v732 = vsub.f32 %v716, %v724
        %v733 = vsub.f32 %v717, %v725
        %v734 = vsub.f32 %v718, %v726
        %v735 = vsub.f32 %v719, %v727
        %v736 = vsub.f32 %v720, %v728
        %v737 = vmul.f32 %v729, %v617
        %v738 = vmul.f32 %v730, %v618
        %v739 = vmul.f32 %v731, %v619
        %v740 = vmul.f32 %v732, %v620
        %v741 = vmul.f32 %v733, %v621
        %v742 = vmul.f32 %v734, %v622
        %v743 = vmul.f32 %v735, %v623
        %v744 = vmul.f32 %v736, %v624
        %v745 = vand.u32 2147483647, %v737
        %v746 = vand.u32 2147483647, %v738
        %v747 = vand.u32 2147483647, %v739
        %v748 = vand.u32 2147483647, %v740
        %v749 = vand.u32 2147483647, %v741
        %v750 = vand.u32 2147483647, %v742
        %v751 = vand.u32 2147483647, %v743
        %v752 = vand.u32 2147483647, %v744
        %vm753 = vcmp.lt.f32.partialorder %v745, 1.0
        %vm754 = vcmp.lt.f32.partialorder %v746, 1.0
        %vm755 = vcmp.lt.f32.partialorder %v747, 1.0
        %vm756 = vcmp.lt.f32.partialorder %v748, 1.0
        %vm757 = vcmp.lt.f32.partialorder %v749, 1.0
        %vm758 = vcmp.lt.f32.partialorder %v750, 1.0
        %vm759 = vcmp.lt.f32.partialorder %v751, 1.0
        %vm760 = vcmp.lt.f32.partialorder %v752, 1.0
        %v761 = vmul.f32 %v737, 0.5
        %v762 = vmul.f32 %v738, 0.5
        %v763 = vmul.f32 %v739, 0.5
        %v764 = vmul.f32 %v740, 0.5
        %v765 = vmul.f32 %v741, 0.5
        %v766 = vmul.f32 %v742, 0.5
        %v767 = vmul.f32 %v743, 0.5
        %v768 = vmul.f32 %v744, 0.5
        %v769 = vmul.f32 %v761, %v737
        %v770 = vmul.f32 %v762, %v738
        %v771 = vmul.f32 %v763, %v739
        %v772 = vmul.f32 %v764, %v740
        %v773 = vmul.f32 %v765, %v741
        %v774 = vmul.f32 %v766, %v742
        %v775 = vmul.f32 %v767, %v743
        %v776 = vmul.f32 %v768, %v744
        %v777 = vsub.f32 %v745, 0.5
        %v778 = vsub.f32 %v746, 0.5
        %v779 = vsub.f32 %v747, 0.5
        %v780 = vsub.f32 %v748, 0.5
        %v781 = vsub.f32 %v749, 0.5
        %v782 = vsub.f32 %v750, 0.5
        %v783 = vsub.f32 %v751, 0.5
        %v784 = vsub.f32 %v752, 0.5
        %v785 = vsel %vm753, %v769, %v777
        %v786 = vsel %vm754, %v770, %v778
        %v787 = vsel %vm755, %v771, %v779
        %v788 = vsel %vm756, %v772, %v780
        %v789 = vsel %vm757, %v773, %v781
        %v790 = vsel %vm758, %v774, %v782
        %v791 = vsel %vm759, %v775, %v783
        %v792 = vsel %vm760, %v776, %v784
        %v793 = vadd.f32 %v785, %v787
        %v794 = vadd.f32 %v786, %v788
        %v795 = vadd.f32 %v789, %v791
        %v796 = vadd.f32 %v790, %v792
        %v797 = vadd.f32 %v793, %v795
        %v798 = vadd.f32 %v794, %v796
        %v799 = vadd.f32 %v573, %v797
        %v800 = vadd.f32 %v574, %v798
        %vm801 = vcmp.ne.f32.partialorder %v617, 0.0
        %vm802 = vcmp.ne.f32.partialorder %v618, 0.0
        %vm803 = vcmp.ne.f32.partialorder %v619, 0.0
        %vm804 = vcmp.ne.f32.partialorder %v620, 0.0
        %vm805 = vcmp.ne.f32.partialorder %v621, 0.0
        %vm806 = vcmp.ne.f32.partialorder %v622, 0.0
        %vm807 = vcmp.ne.f32.partialorder %v623, 0.0
        %vm808 = vcmp.ne.f32.partialorder %v624, 0.0
        %v809 = vsel %vm801, 1, 0
        %v810 = vsel %vm802, 1, 0
        %v811 = vsel %vm803, 1, 0
        %v812 = vsel %vm804, 1, 0
        %v813 = vsel %vm805, 1, 0
        %v814 = vsel %vm806, 1, 0
        %v815 = vsel %vm807, 1, 0
        %v816 = vsel %vm808, 1, 0
        %v817 = vcvt.s32.f32 %v809
        %v818 = vcvt.s32.f32 %v810
        %v819 = vcvt.s32.f32 %v811
        %v820 = vcvt.s32.f32 %v812
        %v821 = vcvt.s32.f32 %v813
        %v822 = vcvt.s32.f32 %v814
        %v823 = vcvt.s32.f32 %v815
        %v824 = vcvt.s32.f32 %v816
        %v825 = vadd.f32 %v817, %v819
        %v826 = vadd.f32 %v818, %v820
        %v827 = vadd.f32 %v821, %v823
        %v828 = vadd.f32 %v822, %v824
        %v829 = vadd.f32 %v825, %v827
        %v830 = vadd.f32 %v826, %v828
        %v831 = vadd.f32 %v605, %v829
        %v832 = vadd.f32 %v606, %v830
        %s833 = scalar_lea.vmem %s340, 32 [#allocation7]
        %v834 = vld [vmem:[%s833] sm:$0xff]
        %v835 = vld [vmem:[%s833 + $0x8] sm:$0xff]
        %v836 = vunpack.c.0.s8 %v834
        %v837 = vunpack.c.0.s8 %v835
        %v838 = vunpack.c.1.s8 %v834
        %v839 = vunpack.c.1.s8 %v835
        %v840 = vunpack.c.2.s8 %v834
        %v841 = vunpack.c.2.s8 %v835
        %v842 = vunpack.c.3.s8 %v834
        %v843 = vunpack.c.3.s8 %v835
        %v844 = vcvt.s32.f32 %v836
        %v845 = vcvt.s32.f32 %v837
        %v846 = vcvt.s32.f32 %v838
        %v847 = vcvt.s32.f32 %v839
        %v848 = vcvt.s32.f32 %v840
        %v849 = vcvt.s32.f32 %v841
        %v850 = vcvt.s32.f32 %v842
        %v851 = vcvt.s32.f32 %v843
        %s852 = scalar_lea.vmem %s322, 256 [#allocation2]
        %v853 = vld [vmem:[%s852] sm:$0xff]
        %v854 = vld [vmem:[%s852 + $0x8] sm:$0xff]
        %v855 = vld [vmem:[%s852 + $0x10] sm:$0xff]
        %v856 = vld [vmem:[%s852 + $0x18] sm:$0xff]
        %v857 = vld [vmem:[%s852 + $0x20] sm:$0xff]
        %v858 = vld [vmem:[%s852 + $0x28] sm:$0xff]
        %v859 = vld [vmem:[%s852 + $0x30] sm:$0xff]
        %v860 = vld [vmem:[%s852 + $0x38] sm:$0xff]
        %s861 = scalar_lea.vmem %s331, 256 [#allocation5]
        %v862 = vld [vmem:[%s861] sm:$0xff]
        %v863 = vld [vmem:[%s861 + $0x8] sm:$0xff]
        %v864 = vld [vmem:[%s861 + $0x10] sm:$0xff]
        %v865 = vld [vmem:[%s861 + $0x18] sm:$0xff]
        %v866 = vld [vmem:[%s861 + $0x20] sm:$0xff]
        %v867 = vld [vmem:[%s861 + $0x28] sm:$0xff]
        %v868 = vld [vmem:[%s861 + $0x30] sm:$0xff]
        %v869 = vld [vmem:[%s861 + $0x38] sm:$0xff]
        %v870 = vsub.f32 %v853, %v862
        %v871 = vsub.f32 %v854, %v863
        %v872 = vsub.f32 %v855, %v864
        %v873 = vsub.f32 %v856, %v865
        %v874 = vsub.f32 %v857, %v866
        %v875 = vsub.f32 %v858, %v867
        %v876 = vsub.f32 %v859, %v868
        %v877 = vsub.f32 %v860, %v869
        %v878 = vmul.f32 %v870, %v844
        %v879 = vmul.f32 %v871, %v845
        %v880 = vmul.f32 %v872, %v846
        %v881 = vmul.f32 %v873, %v847
        %v882 = vmul.f32 %v874, %v848
        %v883 = vmul.f32 %v875, %v849
        %v884 = vmul.f32 %v876, %v850
        %v885 = vmul.f32 %v877, %v851
        %v886 = vand.u32 2147483647, %v878
        %v887 = vand.u32 2147483647, %v879
        %v888 = vand.u32 2147483647, %v880
        %v889 = vand.u32 2147483647, %v881
        %v890 = vand.u32 2147483647, %v882
        %v891 = vand.u32 2147483647, %v883
        %v892 = vand.u32 2147483647, %v884
        %v893 = vand.u32 2147483647, %v885
        %vm894 = vcmp.lt.f32.partialorder %v886, 1.0
        %vm895 = vcmp.lt.f32.partialorder %v887, 1.0
        %vm896 = vcmp.lt.f32.partialorder %v888, 1.0
        %vm897 = vcmp.lt.f32.partialorder %v889, 1.0
        %vm898 = vcmp.lt.f32.partialorder %v890, 1.0
        %vm899 = vcmp.lt.f32.partialorder %v891, 1.0
        %vm900 = vcmp.lt.f32.partialorder %v892, 1.0
        %vm901 = vcmp.lt.f32.partialorder %v893, 1.0
        %v902 = vmul.f32 %v878, 0.5
        %v903 = vmul.f32 %v879, 0.5
        %v904 = vmul.f32 %v880, 0.5
        %v905 = vmul.f32 %v881, 0.5
        %v906 = vmul.f32 %v882, 0.5
        %v907 = vmul.f32 %v883, 0.5
        %v908 = vmul.f32 %v884, 0.5
        %v909 = vmul.f32 %v885, 0.5
        %v910 = vmul.f32 %v902, %v878
        %v911 = vmul.f32 %v903, %v879
        %v912 = vmul.f32 %v904, %v880
        %v913 = vmul.f32 %v905, %v881
        %v914 = vmul.f32 %v906, %v882
        %v915 = vmul.f32 %v907, %v883
        %v916 = vmul.f32 %v908, %v884
        %v917 = vmul.f32 %v909, %v885
        %v918 = vsub.f32 %v886, 0.5
        %v919 = vsub.f32 %v887, 0.5
        %v920 = vsub.f32 %v888, 0.5
        %v921 = vsub.f32 %v889, 0.5
        %v922 = vsub.f32 %v890, 0.5
        %v923 = vsub.f32 %v891, 0.5
        %v924 = vsub.f32 %v892, 0.5
        %v925 = vsub.f32 %v893, 0.5
        %v926 = vsel %vm894, %v910, %v918
        %v927 = vsel %vm895, %v911, %v919
        %v928 = vsel %vm896, %v912, %v920
        %v929 = vsel %vm897, %v913, %v921
        %v930 = vsel %vm898, %v914, %v922
        %v931 = vsel %vm899, %v915, %v923
        %v932 = vsel %vm900, %v916, %v924
        %v933 = vsel %vm901, %v917, %v925
        %v934 = vadd.f32 %v926, %v928
        %v935 = vadd.f32 %v927, %v929
        %v936 = vadd.f32 %v930, %v932
        %v937 = vadd.f32 %v931, %v933
        %v938 = vadd.f32 %v934, %v936
        %v939 = vadd.f32 %v935, %v937
        %v940 = vadd.f32 %v711, %v938
        %v941 = vadd.f32 %v712, %v939
        %s942 = scalar_lea.vmem %s322, 384 [#allocation2]
        %v943 = vld [vmem:[%s942] sm:$0xff]
        %v944 = vld [vmem:[%s942 + $0x8] sm:$0xff]
        %v945 = vld [vmem:[%s942 + $0x10] sm:$0xff]
        %v946 = vld [vmem:[%s942 + $0x18] sm:$0xff]
        %v947 = vld [vmem:[%s942 + $0x20] sm:$0xff]
        %v948 = vld [vmem:[%s942 + $0x28] sm:$0xff]
        %v949 = vld [vmem:[%s942 + $0x30] sm:$0xff]
        %v950 = vld [vmem:[%s942 + $0x38] sm:$0xff]
        %s951 = scalar_lea.vmem %s331, 384 [#allocation5]
        %v952 = vld [vmem:[%s951] sm:$0xff]
        %v953 = vld [vmem:[%s951 + $0x8] sm:$0xff]
        %v954 = vld [vmem:[%s951 + $0x10] sm:$0xff]
        %v955 = vld [vmem:[%s951 + $0x18] sm:$0xff]
        %v956 = vld [vmem:[%s951 + $0x20] sm:$0xff]
        %v957 = vld [vmem:[%s951 + $0x28] sm:$0xff]
        %v958 = vld [vmem:[%s951 + $0x30] sm:$0xff]
        %v959 = vld [vmem:[%s951 + $0x38] sm:$0xff]
        %v960 = vsub.f32 %v943, %v952
        %v961 = vsub.f32 %v944, %v953
        %v962 = vsub.f32 %v945, %v954
        %v963 = vsub.f32 %v946, %v955
        %v964 = vsub.f32 %v947, %v956
        %v965 = vsub.f32 %v948, %v957
        %v966 = vsub.f32 %v949, %v958
        %v967 = vsub.f32 %v950, %v959
        %v968 = vmul.f32 %v960, %v844
        %v969 = vmul.f32 %v961, %v845
        %v970 = vmul.f32 %v962, %v846
        %v971 = vmul.f32 %v963, %v847
        %v972 = vmul.f32 %v964, %v848
        %v973 = vmul.f32 %v965, %v849
        %v974 = vmul.f32 %v966, %v850
        %v975 = vmul.f32 %v967, %v851
        %v976 = vand.u32 2147483647, %v968
        %v977 = vand.u32 2147483647, %v969
        %v978 = vand.u32 2147483647, %v970
        %v979 = vand.u32 2147483647, %v971
        %v980 = vand.u32 2147483647, %v972
        %v981 = vand.u32 2147483647, %v973
        %v982 = vand.u32 2147483647, %v974
        %v983 = vand.u32 2147483647, %v975
        %vm984 = vcmp.lt.f32.partialorder %v976, 1.0
        %vm985 = vcmp.lt.f32.partialorder %v977, 1.0
        %vm986 = vcmp.lt.f32.partialorder %v978, 1.0
        %vm987 = vcmp.lt.f32.partialorder %v979, 1.0
        %vm988 = vcmp.lt.f32.partialorder %v980, 1.0
        %vm989 = vcmp.lt.f32.partialorder %v981, 1.0
        %vm990 = vcmp.lt.f32.partialorder %v982, 1.0
        %vm991 = vcmp.lt.f32.partialorder %v983, 1.0
        %v992 = vmul.f32 %v968, 0.5
        %v993 = vmul.f32 %v969, 0.5
        %v994 = vmul.f32 %v970, 0.5
        %v995 = vmul.f32 %v971, 0.5
        %v996 = vmul.f32 %v972, 0.5
        %v997 = vmul.f32 %v973, 0.5
        %v998 = vmul.f32 %v974, 0.5
        %v999 = vmul.f32 %v975, 0.5
        %v1000 = vmul.f32 %v992, %v968
        %v1001 = vmul.f32 %v993, %v969
        %v1002 = vmul.f32 %v994, %v970
        %v1003 = vmul.f32 %v995, %v971
        %v1004 = vmul.f32 %v996, %v972
        %v1005 = vmul.f32 %v997, %v973
        %v1006 = vmul.f32 %v998, %v974
        %v1007 = vmul.f32 %v999, %v975
        %v1008 = vsub.f32 %v976, 0.5
        %v1009 = vsub.f32 %v977, 0.5
        %v1010 = vsub.f32 %v978, 0.5
        %v1011 = vsub.f32 %v979, 0.5
        %v1012 = vsub.f32 %v980, 0.5
        %v1013 = vsub.f32 %v981, 0.5
        %v1014 = vsub.f32 %v982, 0.5
        %v1015 = vsub.f32 %v983, 0.5
        %v1016 = vsel %vm984, %v1000, %v1008
        %v1017 = vsel %vm985, %v1001, %v1009
        %v1018 = vsel %vm986, %v1002, %v1010
        %v1019 = vsel %vm987, %v1003, %v1011
        %v1020 = vsel %vm988, %v1004, %v1012
        %v1021 = vsel %vm989, %v1005, %v1013
        %v1022 = vsel %vm990, %v1006, %v1014
        %v1023 = vsel %vm991, %v1007, %v1015
        %v1024 = vadd.f32 %v1016, %v1018
        %v1025 = vadd.f32 %v1017, %v1019
        %v1026 = vadd.f32 %v1020, %v1022
        %v1027 = vadd.f32 %v1021, %v1023
        %v1028 = vadd.f32 %v1024, %v1026
        %v1029 = vadd.f32 %v1025, %v1027
        %v1030 = vadd.f32 %v799, %v1028
        %v1031 = vadd.f32 %v800, %v1029
        %vm1032 = vcmp.ne.f32.partialorder %v844, 0.0
        %vm1033 = vcmp.ne.f32.partialorder %v845, 0.0
        %vm1034 = vcmp.ne.f32.partialorder %v846, 0.0
        %vm1035 = vcmp.ne.f32.partialorder %v847, 0.0
        %vm1036 = vcmp.ne.f32.partialorder %v848, 0.0
        %vm1037 = vcmp.ne.f32.partialorder %v849, 0.0
        %vm1038 = vcmp.ne.f32.partialorder %v850, 0.0
        %vm1039 = vcmp.ne.f32.partialorder %v851, 0.0
        %v1040 = vsel %vm1032, 1, 0
        %v1041 = vsel %vm1033, 1, 0
        %v1042 = vsel %vm1034, 1, 0
        %v1043 = vsel %vm1035, 1, 0
        %v1044 = vsel %vm1036, 1, 0
        %v1045 = vsel %vm1037, 1, 0
        %v1046 = vsel %vm1038, 1, 0
        %v1047 = vsel %vm1039, 1, 0
        %v1048 = vcvt.s32.f32 %v1040
        %v1049 = vcvt.s32.f32 %v1041
        %v1050 = vcvt.s32.f32 %v1042
        %v1051 = vcvt.s32.f32 %v1043
        %v1052 = vcvt.s32.f32 %v1044
        %v1053 = vcvt.s32.f32 %v1045
        %v1054 = vcvt.s32.f32 %v1046
        %v1055 = vcvt.s32.f32 %v1047
        %v1056 = vadd.f32 %v1048, %v1050
        %v1057 = vadd.f32 %v1049, %v1051
        %v1058 = vadd.f32 %v1052, %v1054
        %v1059 = vadd.f32 %v1053, %v1055
        %v1060 = vadd.f32 %v1056, %v1058
        %v1061 = vadd.f32 %v1057, %v1059
        %v1062 = vadd.f32 %v831, %v1060
        %v1063 = vadd.f32 %v832, %v1061
        %v1064 = vld [vmem:[%s833 + $0x10] sm:$0xff]
        %v1065 = vld [vmem:[%s833 + $0x18] sm:$0xff]
        %v1066 = vunpack.c.0.s8 %v1064
        %v1067 = vunpack.c.0.s8 %v1065
        %v1068 = vunpack.c.1.s8 %v1064
        %v1069 = vunpack.c.1.s8 %v1065
        %v1070 = vunpack.c.2.s8 %v1064
        %v1071 = vunpack.c.2.s8 %v1065
        %v1072 = vunpack.c.3.s8 %v1064
        %v1073 = vunpack.c.3.s8 %v1065
        %v1074 = vcvt.s32.f32 %v1066
        %v1075 = vcvt.s32.f32 %v1067
        %v1076 = vcvt.s32.f32 %v1068
        %v1077 = vcvt.s32.f32 %v1069
        %v1078 = vcvt.s32.f32 %v1070
        %v1079 = vcvt.s32.f32 %v1071
        %v1080 = vcvt.s32.f32 %v1072
        %v1081 = vcvt.s32.f32 %v1073
        %v1082 = vld [vmem:[%s852 + $0x40] sm:$0xff]
        %v1083 = vld [vmem:[%s852 + $0x48] sm:$0xff]
        %v1084 = vld [vmem:[%s852 + $0x50] sm:$0xff]
        %v1085 = vld [vmem:[%s852 + $0x58] sm:$0xff]
        %v1086 = vld [vmem:[%s852 + $0x60] sm:$0xff]
        %v1087 = vld [vmem:[%s852 + $0x68] sm:$0xff]
        %v1088 = vld [vmem:[%s852 + $0x70] sm:$0xff]
        %v1089 = vld [vmem:[%s852 + $0x78] sm:$0xff]
        %v1090 = vld [vmem:[%s861 + $0x40] sm:$0xff]
        %v1091 = vld [vmem:[%s861 + $0x48] sm:$0xff]
        %v1092 = vld [vmem:[%s861 + $0x50] sm:$0xff]
        %v1093 = vld [vmem:[%s861 + $0x58] sm:$0xff]
        %v1094 = vld [vmem:[%s861 + $0x60] sm:$0xff]
        %v1095 = vld [vmem:[%s861 + $0x68] sm:$0xff]
        %v1096 = vld [vmem:[%s861 + $0x70] sm:$0xff]
        %v1097 = vld [vmem:[%s861 + $0x78] sm:$0xff]
        %v1098 = vsub.f32 %v1082, %v1090
        %v1099 = vsub.f32 %v1083, %v1091
        %v1100 = vsub.f32 %v1084, %v1092
        %v1101 = vsub.f32 %v1085, %v1093
        %v1102 = vsub.f32 %v1086, %v1094
        %v1103 = vsub.f32 %v1087, %v1095
        %v1104 = vsub.f32 %v1088, %v1096
        %v1105 = vsub.f32 %v1089, %v1097
        %v1106 = vmul.f32 %v1098, %v1074
        %v1107 = vmul.f32 %v1099, %v1075
        %v1108 = vmul.f32 %v1100, %v1076
        %v1109 = vmul.f32 %v1101, %v1077
        %v1110 = vmul.f32 %v1102, %v1078
        %v1111 = vmul.f32 %v1103, %v1079
        %v1112 = vmul.f32 %v1104, %v1080
        %v1113 = vmul.f32 %v1105, %v1081
        %v1114 = vand.u32 2147483647, %v1106
        %v1115 = vand.u32 2147483647, %v1107
        %v1116 = vand.u32 2147483647, %v1108
        %v1117 = vand.u32 2147483647, %v1109
        %v1118 = vand.u32 2147483647, %v1110
        %v1119 = vand.u32 2147483647, %v1111
        %v1120 = vand.u32 2147483647, %v1112
        %v1121 = vand.u32 2147483647, %v1113
        %vm1122 = vcmp.lt.f32.partialorder %v1114, 1.0
        %vm1123 = vcmp.lt.f32.partialorder %v1115, 1.0
        %vm1124 = vcmp.lt.f32.partialorder %v1116, 1.0
        %vm1125 = vcmp.lt.f32.partialorder %v1117, 1.0
        %vm1126 = vcmp.lt.f32.partialorder %v1118, 1.0
        %vm1127 = vcmp.lt.f32.partialorder %v1119, 1.0
        %vm1128 = vcmp.lt.f32.partialorder %v1120, 1.0
        %vm1129 = vcmp.lt.f32.partialorder %v1121, 1.0
        %v1130 = vmul.f32 %v1106, 0.5
        %v1131 = vmul.f32 %v1107, 0.5
        %v1132 = vmul.f32 %v1108, 0.5
        %v1133 = vmul.f32 %v1109, 0.5
        %v1134 = vmul.f32 %v1110, 0.5
        %v1135 = vmul.f32 %v1111, 0.5
        %v1136 = vmul.f32 %v1112, 0.5
        %v1137 = vmul.f32 %v1113, 0.5
        %v1138 = vmul.f32 %v1130, %v1106
        %v1139 = vmul.f32 %v1131, %v1107
        %v1140 = vmul.f32 %v1132, %v1108
        %v1141 = vmul.f32 %v1133, %v1109
        %v1142 = vmul.f32 %v1134, %v1110
        %v1143 = vmul.f32 %v1135, %v1111
        %v1144 = vmul.f32 %v1136, %v1112
        %v1145 = vmul.f32 %v1137, %v1113
        %v1146 = vsub.f32 %v1114, 0.5
        %v1147 = vsub.f32 %v1115, 0.5
        %v1148 = vsub.f32 %v1116, 0.5
        %v1149 = vsub.f32 %v1117, 0.5
        %v1150 = vsub.f32 %v1118, 0.5
        %v1151 = vsub.f32 %v1119, 0.5
        %v1152 = vsub.f32 %v1120, 0.5
        %v1153 = vsub.f32 %v1121, 0.5
        %v1154 = vsel %vm1122, %v1138, %v1146
        %v1155 = vsel %vm1123, %v1139, %v1147
        %v1156 = vsel %vm1124, %v1140, %v1148
        %v1157 = vsel %vm1125, %v1141, %v1149
        %v1158 = vsel %vm1126, %v1142, %v1150
        %v1159 = vsel %vm1127, %v1143, %v1151
        %v1160 = vsel %vm1128, %v1144, %v1152
        %v1161 = vsel %vm1129, %v1145, %v1153
        %v1162 = vadd.f32 %v1154, %v1156
        %v1163 = vadd.f32 %v1155, %v1157
        %v1164 = vadd.f32 %v1158, %v1160
        %v1165 = vadd.f32 %v1159, %v1161
        %v1166 = vadd.f32 %v1162, %v1164
        %v1167 = vadd.f32 %v1163, %v1165
        %v1168 = vadd.f32 %v940, %v1166
        %v1169 = vadd.f32 %v941, %v1167
        %v1170 = vld [vmem:[%s942 + $0x40] sm:$0xff]
        %v1171 = vld [vmem:[%s942 + $0x48] sm:$0xff]
        %v1172 = vld [vmem:[%s942 + $0x50] sm:$0xff]
        %v1173 = vld [vmem:[%s942 + $0x58] sm:$0xff]
        %v1174 = vld [vmem:[%s942 + $0x60] sm:$0xff]
        %v1175 = vld [vmem:[%s942 + $0x68] sm:$0xff]
        %v1176 = vld [vmem:[%s942 + $0x70] sm:$0xff]
        %v1177 = vld [vmem:[%s942 + $0x78] sm:$0xff]
        %v1178 = vld [vmem:[%s951 + $0x40] sm:$0xff]
        %v1179 = vld [vmem:[%s951 + $0x48] sm:$0xff]
        %v1180 = vld [vmem:[%s951 + $0x50] sm:$0xff]
        %v1181 = vld [vmem:[%s951 + $0x58] sm:$0xff]
        %v1182 = vld [vmem:[%s951 + $0x60] sm:$0xff]
        %v1183 = vld [vmem:[%s951 + $0x68] sm:$0xff]
        %v1184 = vld [vmem:[%s951 + $0x70] sm:$0xff]
        %v1185 = vld [vmem:[%s951 + $0x78] sm:$0xff]
        %v1186 = vsub.f32 %v1170, %v1178
        %v1187 = vsub.f32 %v1171, %v1179
        %v1188 = vsub.f32 %v1172, %v1180
        %v1189 = vsub.f32 %v1173, %v1181
        %v1190 = vsub.f32 %v1174, %v1182
        %v1191 = vsub.f32 %v1175, %v1183
        %v1192 = vsub.f32 %v1176, %v1184
        %v1193 = vsub.f32 %v1177, %v1185
        %v1194 = vmul.f32 %v1186, %v1074
        %v1195 = vmul.f32 %v1187, %v1075
        %v1196 = vmul.f32 %v1188, %v1076
        %v1197 = vmul.f32 %v1189, %v1077
        %v1198 = vmul.f32 %v1190, %v1078
        %v1199 = vmul.f32 %v1191, %v1079
        %v1200 = vmul.f32 %v1192, %v1080
        %v1201 = vmul.f32 %v1193, %v1081
        %v1202 = vand.u32 2147483647, %v1194
        %v1203 = vand.u32 2147483647, %v1195
        %v1204 = vand.u32 2147483647, %v1196
        %v1205 = vand.u32 2147483647, %v1197
        %v1206 = vand.u32 2147483647, %v1198
        %v1207 = vand.u32 2147483647, %v1199
        %v1208 = vand.u32 2147483647, %v1200
        %v1209 = vand.u32 2147483647, %v1201
        %vm1210 = vcmp.lt.f32.partialorder %v1202, 1.0
        %vm1211 = vcmp.lt.f32.partialorder %v1203, 1.0
        %vm1212 = vcmp.lt.f32.partialorder %v1204, 1.0
        %vm1213 = vcmp.lt.f32.partialorder %v1205, 1.0
        %vm1214 = vcmp.lt.f32.partialorder %v1206, 1.0
        %vm1215 = vcmp.lt.f32.partialorder %v1207, 1.0
        %vm1216 = vcmp.lt.f32.partialorder %v1208, 1.0
        %vm1217 = vcmp.lt.f32.partialorder %v1209, 1.0
        %v1218 = vmul.f32 %v1194, 0.5
        %v1219 = vmul.f32 %v1195, 0.5
        %v1220 = vmul.f32 %v1196, 0.5
        %v1221 = vmul.f32 %v1197, 0.5
        %v1222 = vmul.f32 %v1198, 0.5
        %v1223 = vmul.f32 %v1199, 0.5
        %v1224 = vmul.f32 %v1200, 0.5
        %v1225 = vmul.f32 %v1201, 0.5
        %v1226 = vmul.f32 %v1218, %v1194
        %v1227 = vmul.f32 %v1219, %v1195
        %v1228 = vmul.f32 %v1220, %v1196
        %v1229 = vmul.f32 %v1221, %v1197
        %v1230 = vmul.f32 %v1222, %v1198
        %v1231 = vmul.f32 %v1223, %v1199
        %v1232 = vmul.f32 %v1224, %v1200
        %v1233 = vmul.f32 %v1225, %v1201
        %v1234 = vsub.f32 %v1202, 0.5
        %v1235 = vsub.f32 %v1203, 0.5
        %v1236 = vsub.f32 %v1204, 0.5
        %v1237 = vsub.f32 %v1205, 0.5
        %v1238 = vsub.f32 %v1206, 0.5
        %v1239 = vsub.f32 %v1207, 0.5
        %v1240 = vsub.f32 %v1208, 0.5
        %v1241 = vsub.f32 %v1209, 0.5
        %v1242 = vsel %vm1210, %v1226, %v1234
        %v1243 = vsel %vm1211, %v1227, %v1235
        %v1244 = vsel %vm1212, %v1228, %v1236
        %v1245 = vsel %vm1213, %v1229, %v1237
        %v1246 = vsel %vm1214, %v1230, %v1238
        %v1247 = vsel %vm1215, %v1231, %v1239
        %v1248 = vsel %vm1216, %v1232, %v1240
        %v1249 = vsel %vm1217, %v1233, %v1241
        %v1250 = vadd.f32 %v1242, %v1244
        %v1251 = vadd.f32 %v1243, %v1245
        %v1252 = vadd.f32 %v1246, %v1248
        %v1253 = vadd.f32 %v1247, %v1249
        %v1254 = vadd.f32 %v1250, %v1252
        %v1255 = vadd.f32 %v1251, %v1253
        %v1256 = vadd.f32 %v1030, %v1254
        %v1257 = vadd.f32 %v1031, %v1255
        %vm1258 = vcmp.ne.f32.partialorder %v1074, 0.0
        %vm1259 = vcmp.ne.f32.partialorder %v1075, 0.0
        %vm1260 = vcmp.ne.f32.partialorder %v1076, 0.0
        %vm1261 = vcmp.ne.f32.partialorder %v1077, 0.0
        %vm1262 = vcmp.ne.f32.partialorder %v1078, 0.0
        %vm1263 = vcmp.ne.f32.partialorder %v1079, 0.0
        %vm1264 = vcmp.ne.f32.partialorder %v1080, 0.0
        %vm1265 = vcmp.ne.f32.partialorder %v1081, 0.0
        %v1266 = vsel %vm1258, 1, 0
        %v1267 = vsel %vm1259, 1, 0
        %v1268 = vsel %vm1260, 1, 0
        %v1269 = vsel %vm1261, 1, 0
        %v1270 = vsel %vm1262, 1, 0
        %v1271 = vsel %vm1263, 1, 0
        %v1272 = vsel %vm1264, 1, 0
        %v1273 = vsel %vm1265, 1, 0
        %v1274 = vcvt.s32.f32 %v1266
        %v1275 = vcvt.s32.f32 %v1267
        %v1276 = vcvt.s32.f32 %v1268
        %v1277 = vcvt.s32.f32 %v1269
        %v1278 = vcvt.s32.f32 %v1270
        %v1279 = vcvt.s32.f32 %v1271
        %v1280 = vcvt.s32.f32 %v1272
        %v1281 = vcvt.s32.f32 %v1273
        %v1282 = vadd.f32 %v1274, %v1276
        %v1283 = vadd.f32 %v1275, %v1277
        %v1284 = vadd.f32 %v1278, %v1280
        %v1285 = vadd.f32 %v1279, %v1281
        %v1286 = vadd.f32 %v1282, %v1284
        %v1287 = vadd.f32 %v1283, %v1285
        %v1288 = vadd.f32 %v1062, %v1286
        %v1289 = vadd.f32 %v1063, %v1287
        %s1290 = scalar_lea.vmem %s340, 64 [#allocation7]
        %v1291 = vld [vmem:[%s1290] sm:$0xff]
        %v1292 = vld [vmem:[%s1290 + $0x8] sm:$0xff]
        %v1293 = vunpack.c.0.s8 %v1291
        %v1294 = vunpack.c.0.s8 %v1292
        %v1295 = vunpack.c.1.s8 %v1291
        %v1296 = vunpack.c.1.s8 %v1292
        %v1297 = vunpack.c.2.s8 %v1291
        %v1298 = vunpack.c.2.s8 %v1292
        %v1299 = vunpack.c.3.s8 %v1291
        %v1300 = vunpack.c.3.s8 %v1292
        %v1301 = vcvt.s32.f32 %v1293
        %v1302 = vcvt.s32.f32 %v1294
        %v1303 = vcvt.s32.f32 %v1295
        %v1304 = vcvt.s32.f32 %v1296
        %v1305 = vcvt.s32.f32 %v1297
        %v1306 = vcvt.s32.f32 %v1298
        %v1307 = vcvt.s32.f32 %v1299
        %v1308 = vcvt.s32.f32 %v1300
        %s1309 = scalar_lea.vmem %s322, 512 [#allocation2]
        %v1310 = vld [vmem:[%s1309] sm:$0xff]
        %v1311 = vld [vmem:[%s1309 + $0x8] sm:$0xff]
        %v1312 = vld [vmem:[%s1309 + $0x10] sm:$0xff]
        %v1313 = vld [vmem:[%s1309 + $0x18] sm:$0xff]
        %v1314 = vld [vmem:[%s1309 + $0x20] sm:$0xff]
        %v1315 = vld [vmem:[%s1309 + $0x28] sm:$0xff]
        %v1316 = vld [vmem:[%s1309 + $0x30] sm:$0xff]
        %v1317 = vld [vmem:[%s1309 + $0x38] sm:$0xff]
        %s1318 = scalar_lea.vmem %s331, 512 [#allocation5]
        %v1319 = vld [vmem:[%s1318] sm:$0xff]
        %v1320 = vld [vmem:[%s1318 + $0x8] sm:$0xff]
        %v1321 = vld [vmem:[%s1318 + $0x10] sm:$0xff]
        %v1322 = vld [vmem:[%s1318 + $0x18] sm:$0xff]
        %v1323 = vld [vmem:[%s1318 + $0x20] sm:$0xff]
        %v1324 = vld [vmem:[%s1318 + $0x28] sm:$0xff]
        %v1325 = vld [vmem:[%s1318 + $0x30] sm:$0xff]
        %v1326 = vld [vmem:[%s1318 + $0x38] sm:$0xff]
        %v1327 = vsub.f32 %v1310, %v1319
        %v1328 = vsub.f32 %v1311, %v1320
        %v1329 = vsub.f32 %v1312, %v1321
        %v1330 = vsub.f32 %v1313, %v1322
        %v1331 = vsub.f32 %v1314, %v1323
        %v1332 = vsub.f32 %v1315, %v1324
        %v1333 = vsub.f32 %v1316, %v1325
        %v1334 = vsub.f32 %v1317, %v1326
        %v1335 = vmul.f32 %v1327, %v1301
        %v1336 = vmul.f32 %v1328, %v1302
        %v1337 = vmul.f32 %v1329, %v1303
        %v1338 = vmul.f32 %v1330, %v1304
        %v1339 = vmul.f32 %v1331, %v1305
        %v1340 = vmul.f32 %v1332, %v1306
        %v1341 = vmul.f32 %v1333, %v1307
        %v1342 = vmul.f32 %v1334, %v1308
        %v1343 = vand.u32 2147483647, %v1335
        %v1344 = vand.u32 2147483647, %v1336
        %v1345 = vand.u32 2147483647, %v1337
        %v1346 = vand.u32 2147483647, %v1338
        %v1347 = vand.u32 2147483647, %v1339
        %v1348 = vand.u32 2147483647, %v1340
        %v1349 = vand.u32 2147483647, %v1341
        %v1350 = vand.u32 2147483647, %v1342
        %vm1351 = vcmp.lt.f32.partialorder %v1343, 1.0
        %vm1352 = vcmp.lt.f32.partialorder %v1344, 1.0
        %vm1353 = vcmp.lt.f32.partialorder %v1345, 1.0
        %vm1354 = vcmp.lt.f32.partialorder %v1346, 1.0
        %vm1355 = vcmp.lt.f32.partialorder %v1347, 1.0
        %vm1356 = vcmp.lt.f32.partialorder %v1348, 1.0
        %vm1357 = vcmp.lt.f32.partialorder %v1349, 1.0
        %vm1358 = vcmp.lt.f32.partialorder %v1350, 1.0
        %v1359 = vmul.f32 %v1335, 0.5
        %v1360 = vmul.f32 %v1336, 0.5
        %v1361 = vmul.f32 %v1337, 0.5
        %v1362 = vmul.f32 %v1338, 0.5
        %v1363 = vmul.f32 %v1339, 0.5
        %v1364 = vmul.f32 %v1340, 0.5
        %v1365 = vmul.f32 %v1341, 0.5
        %v1366 = vmul.f32 %v1342, 0.5
        %v1367 = vmul.f32 %v1359, %v1335
        %v1368 = vmul.f32 %v1360, %v1336
        %v1369 = vmul.f32 %v1361, %v1337
        %v1370 = vmul.f32 %v1362, %v1338
        %v1371 = vmul.f32 %v1363, %v1339
        %v1372 = vmul.f32 %v1364, %v1340
        %v1373 = vmul.f32 %v1365, %v1341
        %v1374 = vmul.f32 %v1366, %v1342
        %v1375 = vsub.f32 %v1343, 0.5
        %v1376 = vsub.f32 %v1344, 0.5
        %v1377 = vsub.f32 %v1345, 0.5
        %v1378 = vsub.f32 %v1346, 0.5
        %v1379 = vsub.f32 %v1347, 0.5
        %v1380 = vsub.f32 %v1348, 0.5
        %v1381 = vsub.f32 %v1349, 0.5
        %v1382 = vsub.f32 %v1350, 0.5
        %v1383 = vsel %vm1351, %v1367, %v1375
        %v1384 = vsel %vm1352, %v1368, %v1376
        %v1385 = vsel %vm1353, %v1369, %v1377
        %v1386 = vsel %vm1354, %v1370, %v1378
        %v1387 = vsel %vm1355, %v1371, %v1379
        %v1388 = vsel %vm1356, %v1372, %v1380
        %v1389 = vsel %vm1357, %v1373, %v1381
        %v1390 = vsel %vm1358, %v1374, %v1382
        %v1391 = vadd.f32 %v1383, %v1385
        %v1392 = vadd.f32 %v1384, %v1386
        %v1393 = vadd.f32 %v1387, %v1389
        %v1394 = vadd.f32 %v1388, %v1390
        %v1395 = vadd.f32 %v1391, %v1393
        %v1396 = vadd.f32 %v1392, %v1394
        %v1397 = vadd.f32 %v1168, %v1395
        %v1398 = vadd.f32 %v1169, %v1396
        %s1399 = scalar_lea.vmem %s322, 640 [#allocation2]
        %v1400 = vld [vmem:[%s1399] sm:$0xff]
        %v1401 = vld [vmem:[%s1399 + $0x8] sm:$0xff]
        %v1402 = vld [vmem:[%s1399 + $0x10] sm:$0xff]
        %v1403 = vld [vmem:[%s1399 + $0x18] sm:$0xff]
        %v1404 = vld [vmem:[%s1399 + $0x20] sm:$0xff]
        %v1405 = vld [vmem:[%s1399 + $0x28] sm:$0xff]
        %v1406 = vld [vmem:[%s1399 + $0x30] sm:$0xff]
        %v1407 = vld [vmem:[%s1399 + $0x38] sm:$0xff]
        %s1408 = scalar_lea.vmem %s331, 640 [#allocation5]
        %v1409 = vld [vmem:[%s1408] sm:$0xff]
        %v1410 = vld [vmem:[%s1408 + $0x8] sm:$0xff]
        %v1411 = vld [vmem:[%s1408 + $0x10] sm:$0xff]
        %v1412 = vld [vmem:[%s1408 + $0x18] sm:$0xff]
        %v1413 = vld [vmem:[%s1408 + $0x20] sm:$0xff]
        %v1414 = vld [vmem:[%s1408 + $0x28] sm:$0xff]
        %v1415 = vld [vmem:[%s1408 + $0x30] sm:$0xff]
        %v1416 = vld [vmem:[%s1408 + $0x38] sm:$0xff]
        %v1417 = vsub.f32 %v1400, %v1409
        %v1418 = vsub.f32 %v1401, %v1410
        %v1419 = vsub.f32 %v1402, %v1411
        %v1420 = vsub.f32 %v1403, %v1412
        %v1421 = vsub.f32 %v1404, %v1413
        %v1422 = vsub.f32 %v1405, %v1414
        %v1423 = vsub.f32 %v1406, %v1415
        %v1424 = vsub.f32 %v1407, %v1416
        %v1425 = vmul.f32 %v1417, %v1301
        %v1426 = vmul.f32 %v1418, %v1302
        %v1427 = vmul.f32 %v1419, %v1303
        %v1428 = vmul.f32 %v1420, %v1304
        %v1429 = vmul.f32 %v1421, %v1305
        %v1430 = vmul.f32 %v1422, %v1306
        %v1431 = vmul.f32 %v1423, %v1307
        %v1432 = vmul.f32 %v1424, %v1308
        %v1433 = vand.u32 2147483647, %v1425
        %v1434 = vand.u32 2147483647, %v1426
        %v1435 = vand.u32 2147483647, %v1427
        %v1436 = vand.u32 2147483647, %v1428
        %v1437 = vand.u32 2147483647, %v1429
        %v1438 = vand.u32 2147483647, %v1430
        %v1439 = vand.u32 2147483647, %v1431
        %v1440 = vand.u32 2147483647, %v1432
        %vm1441 = vcmp.lt.f32.partialorder %v1433, 1.0
        %vm1442 = vcmp.lt.f32.partialorder %v1434, 1.0
        %vm1443 = vcmp.lt.f32.partialorder %v1435, 1.0
        %vm1444 = vcmp.lt.f32.partialorder %v1436, 1.0
        %vm1445 = vcmp.lt.f32.partialorder %v1437, 1.0
        %vm1446 = vcmp.lt.f32.partialorder %v1438, 1.0
        %vm1447 = vcmp.lt.f32.partialorder %v1439, 1.0
        %vm1448 = vcmp.lt.f32.partialorder %v1440, 1.0
        %v1449 = vmul.f32 %v1425, 0.5
        %v1450 = vmul.f32 %v1426, 0.5
        %v1451 = vmul.f32 %v1427, 0.5
        %v1452 = vmul.f32 %v1428, 0.5
        %v1453 = vmul.f32 %v1429, 0.5
        %v1454 = vmul.f32 %v1430, 0.5
        %v1455 = vmul.f32 %v1431, 0.5
        %v1456 = vmul.f32 %v1432, 0.5
        %v1457 = vmul.f32 %v1449, %v1425
        %v1458 = vmul.f32 %v1450, %v1426
        %v1459 = vmul.f32 %v1451, %v1427
        %v1460 = vmul.f32 %v1452, %v1428
        %v1461 = vmul.f32 %v1453, %v1429
        %v1462 = vmul.f32 %v1454, %v1430
        %v1463 = vmul.f32 %v1455, %v1431
        %v1464 = vmul.f32 %v1456, %v1432
        %v1465 = vsub.f32 %v1433, 0.5
        %v1466 = vsub.f32 %v1434, 0.5
        %v1467 = vsub.f32 %v1435, 0.5
        %v1468 = vsub.f32 %v1436, 0.5
        %v1469 = vsub.f32 %v1437, 0.5
        %v1470 = vsub.f32 %v1438, 0.5
        %v1471 = vsub.f32 %v1439, 0.5
        %v1472 = vsub.f32 %v1440, 0.5
        %v1473 = vsel %vm1441, %v1457, %v1465
        %v1474 = vsel %vm1442, %v1458, %v1466
        %v1475 = vsel %vm1443, %v1459, %v1467
        %v1476 = vsel %vm1444, %v1460, %v1468
        %v1477 = vsel %vm1445, %v1461, %v1469
        %v1478 = vsel %vm1446, %v1462, %v1470
        %v1479 = vsel %vm1447, %v1463, %v1471
        %v1480 = vsel %vm1448, %v1464, %v1472
        %v1481 = vadd.f32 %v1473, %v1475
        %v1482 = vadd.f32 %v1474, %v1476
        %v1483 = vadd.f32 %v1477, %v1479
        %v1484 = vadd.f32 %v1478, %v1480
        %v1485 = vadd.f32 %v1481, %v1483
        %v1486 = vadd.f32 %v1482, %v1484
        %v1487 = vadd.f32 %v1256, %v1485
        %v1488 = vadd.f32 %v1257, %v1486
        %vm1489 = vcmp.ne.f32.partialorder %v1301, 0.0
        %vm1490 = vcmp.ne.f32.partialorder %v1302, 0.0
        %vm1491 = vcmp.ne.f32.partialorder %v1303, 0.0
        %vm1492 = vcmp.ne.f32.partialorder %v1304, 0.0
        %vm1493 = vcmp.ne.f32.partialorder %v1305, 0.0
        %vm1494 = vcmp.ne.f32.partialorder %v1306, 0.0
        %vm1495 = vcmp.ne.f32.partialorder %v1307, 0.0
        %vm1496 = vcmp.ne.f32.partialorder %v1308, 0.0
        %v1497 = vsel %vm1489, 1, 0
        %v1498 = vsel %vm1490, 1, 0
        %v1499 = vsel %vm1491, 1, 0
        %v1500 = vsel %vm1492, 1, 0
        %v1501 = vsel %vm1493, 1, 0
        %v1502 = vsel %vm1494, 1, 0
        %v1503 = vsel %vm1495, 1, 0
        %v1504 = vsel %vm1496, 1, 0
        %v1505 = vcvt.s32.f32 %v1497
        %v1506 = vcvt.s32.f32 %v1498
        %v1507 = vcvt.s32.f32 %v1499
        %v1508 = vcvt.s32.f32 %v1500
        %v1509 = vcvt.s32.f32 %v1501
        %v1510 = vcvt.s32.f32 %v1502
        %v1511 = vcvt.s32.f32 %v1503
        %v1512 = vcvt.s32.f32 %v1504
        %v1513 = vadd.f32 %v1505, %v1507
        %v1514 = vadd.f32 %v1506, %v1508
        %v1515 = vadd.f32 %v1509, %v1511
        %v1516 = vadd.f32 %v1510, %v1512
        %v1517 = vadd.f32 %v1513, %v1515
        %v1518 = vadd.f32 %v1514, %v1516
        %v1519 = vadd.f32 %v1288, %v1517
        %v1520 = vadd.f32 %v1289, %v1518
        %v1521 = vld [vmem:[%s1290 + $0x10] sm:$0xff]
        %v1522 = vld [vmem:[%s1290 + $0x18] sm:$0xff]
        %v1523 = vunpack.c.0.s8 %v1521
        %v1524 = vunpack.c.0.s8 %v1522
        %v1525 = vunpack.c.1.s8 %v1521
        %v1526 = vunpack.c.1.s8 %v1522
        %v1527 = vunpack.c.2.s8 %v1521
        %v1528 = vunpack.c.2.s8 %v1522
        %v1529 = vunpack.c.3.s8 %v1521
        %v1530 = vunpack.c.3.s8 %v1522
        %v1531 = vcvt.s32.f32 %v1523
        %v1532 = vcvt.s32.f32 %v1524
        %v1533 = vcvt.s32.f32 %v1525
        %v1534 = vcvt.s32.f32 %v1526
        %v1535 = vcvt.s32.f32 %v1527
        %v1536 = vcvt.s32.f32 %v1528
        %v1537 = vcvt.s32.f32 %v1529
        %v1538 = vcvt.s32.f32 %v1530
        %v1539 = vld [vmem:[%s1309 + $0x40] sm:$0xff]
        %v1540 = vld [vmem:[%s1309 + $0x48] sm:$0xff]
        %v1541 = vld [vmem:[%s1309 + $0x50] sm:$0xff]
        %v1542 = vld [vmem:[%s1309 + $0x58] sm:$0xff]
        %v1543 = vld [vmem:[%s1309 + $0x60] sm:$0xff]
        %v1544 = vld [vmem:[%s1309 + $0x68] sm:$0xff]
        %v1545 = vld [vmem:[%s1309 + $0x70] sm:$0xff]
        %v1546 = vld [vmem:[%s1309 + $0x78] sm:$0xff]
        %v1547 = vld [vmem:[%s1318 + $0x40] sm:$0xff]
        %v1548 = vld [vmem:[%s1318 + $0x48] sm:$0xff]
        %v1549 = vld [vmem:[%s1318 + $0x50] sm:$0xff]
        %v1550 = vld [vmem:[%s1318 + $0x58] sm:$0xff]
        %v1551 = vld [vmem:[%s1318 + $0x60] sm:$0xff]
        %v1552 = vld [vmem:[%s1318 + $0x68] sm:$0xff]
        %v1553 = vld [vmem:[%s1318 + $0x70] sm:$0xff]
        %v1554 = vld [vmem:[%s1318 + $0x78] sm:$0xff]
        %v1555 = vsub.f32 %v1539, %v1547
        %v1556 = vsub.f32 %v1540, %v1548
        %v1557 = vsub.f32 %v1541, %v1549
        %v1558 = vsub.f32 %v1542, %v1550
        %v1559 = vsub.f32 %v1543, %v1551
        %v1560 = vsub.f32 %v1544, %v1552
        %v1561 = vsub.f32 %v1545, %v1553
        %v1562 = vsub.f32 %v1546, %v1554
        %v1563 = vmul.f32 %v1555, %v1531
        %v1564 = vmul.f32 %v1556, %v1532
        %v1565 = vmul.f32 %v1557, %v1533
        %v1566 = vmul.f32 %v1558, %v1534
        %v1567 = vmul.f32 %v1559, %v1535
        %v1568 = vmul.f32 %v1560, %v1536
        %v1569 = vmul.f32 %v1561, %v1537
        %v1570 = vmul.f32 %v1562, %v1538
        %v1571 = vand.u32 2147483647, %v1563
        %v1572 = vand.u32 2147483647, %v1564
        %v1573 = vand.u32 2147483647, %v1565
        %v1574 = vand.u32 2147483647, %v1566
        %v1575 = vand.u32 2147483647, %v1567
        %v1576 = vand.u32 2147483647, %v1568
        %v1577 = vand.u32 2147483647, %v1569
        %v1578 = vand.u32 2147483647, %v1570
        %vm1579 = vcmp.lt.f32.partialorder %v1571, 1.0
        %vm1580 = vcmp.lt.f32.partialorder %v1572, 1.0
        %vm1581 = vcmp.lt.f32.partialorder %v1573, 1.0
        %vm1582 = vcmp.lt.f32.partialorder %v1574, 1.0
        %vm1583 = vcmp.lt.f32.partialorder %v1575, 1.0
        %vm1584 = vcmp.lt.f32.partialorder %v1576, 1.0
        %vm1585 = vcmp.lt.f32.partialorder %v1577, 1.0
        %vm1586 = vcmp.lt.f32.partialorder %v1578, 1.0
        %v1587 = vmul.f32 %v1563, 0.5
        %v1588 = vmul.f32 %v1564, 0.5
        %v1589 = vmul.f32 %v1565, 0.5
        %v1590 = vmul.f32 %v1566, 0.5
        %v1591 = vmul.f32 %v1567, 0.5
        %v1592 = vmul.f32 %v1568, 0.5
        %v1593 = vmul.f32 %v1569, 0.5
        %v1594 = vmul.f32 %v1570, 0.5
        %v1595 = vmul.f32 %v1587, %v1563
        %v1596 = vmul.f32 %v1588, %v1564
        %v1597 = vmul.f32 %v1589, %v1565
        %v1598 = vmul.f32 %v1590, %v1566
        %v1599 = vmul.f32 %v1591, %v1567
        %v1600 = vmul.f32 %v1592, %v1568
        %v1601 = vmul.f32 %v1593, %v1569
        %v1602 = vmul.f32 %v1594, %v1570
        %v1603 = vsub.f32 %v1571, 0.5
        %v1604 = vsub.f32 %v1572, 0.5
        %v1605 = vsub.f32 %v1573, 0.5
        %v1606 = vsub.f32 %v1574, 0.5
        %v1607 = vsub.f32 %v1575, 0.5
        %v1608 = vsub.f32 %v1576, 0.5
        %v1609 = vsub.f32 %v1577, 0.5
        %v1610 = vsub.f32 %v1578, 0.5
        %v1611 = vsel %vm1579, %v1595, %v1603
        %v1612 = vsel %vm1580, %v1596, %v1604
        %v1613 = vsel %vm1581, %v1597, %v1605
        %v1614 = vsel %vm1582, %v1598, %v1606
        %v1615 = vsel %vm1583, %v1599, %v1607
        %v1616 = vsel %vm1584, %v1600, %v1608
        %v1617 = vsel %vm1585, %v1601, %v1609
        %v1618 = vsel %vm1586, %v1602, %v1610
        %v1619 = vadd.f32 %v1611, %v1613
        %v1620 = vadd.f32 %v1612, %v1614
        %v1621 = vadd.f32 %v1615, %v1617
        %v1622 = vadd.f32 %v1616, %v1618
        %v1623 = vadd.f32 %v1619, %v1621
        %v1624 = vadd.f32 %v1620, %v1622
        %v1625 = vadd.f32 %v1397, %v1623
        %v1626 = vadd.f32 %v1398, %v1624
        %v1627 = vld [vmem:[%s1399 + $0x40] sm:$0xff]
        %v1628 = vld [vmem:[%s1399 + $0x48] sm:$0xff]
        %v1629 = vld [vmem:[%s1399 + $0x50] sm:$0xff]
        %v1630 = vld [vmem:[%s1399 + $0x58] sm:$0xff]
        %v1631 = vld [vmem:[%s1399 + $0x60] sm:$0xff]
        %v1632 = vld [vmem:[%s1399 + $0x68] sm:$0xff]
        %v1633 = vld [vmem:[%s1399 + $0x70] sm:$0xff]
        %v1634 = vld [vmem:[%s1399 + $0x78] sm:$0xff]
        %v1635 = vld [vmem:[%s1408 + $0x40] sm:$0xff]
        %v1636 = vld [vmem:[%s1408 + $0x48] sm:$0xff]
        %v1637 = vld [vmem:[%s1408 + $0x50] sm:$0xff]
        %v1638 = vld [vmem:[%s1408 + $0x58] sm:$0xff]
        %v1639 = vld [vmem:[%s1408 + $0x60] sm:$0xff]
        %v1640 = vld [vmem:[%s1408 + $0x68] sm:$0xff]
        %v1641 = vld [vmem:[%s1408 + $0x70] sm:$0xff]
        %v1642 = vld [vmem:[%s1408 + $0x78] sm:$0xff]
        %v1643 = vsub.f32 %v1627, %v1635
        %v1644 = vsub.f32 %v1628, %v1636
        %v1645 = vsub.f32 %v1629, %v1637
        %v1646 = vsub.f32 %v1630, %v1638
        %v1647 = vsub.f32 %v1631, %v1639
        %v1648 = vsub.f32 %v1632, %v1640
        %v1649 = vsub.f32 %v1633, %v1641
        %v1650 = vsub.f32 %v1634, %v1642
        %v1651 = vmul.f32 %v1643, %v1531
        %v1652 = vmul.f32 %v1644, %v1532
        %v1653 = vmul.f32 %v1645, %v1533
        %v1654 = vmul.f32 %v1646, %v1534
        %v1655 = vmul.f32 %v1647, %v1535
        %v1656 = vmul.f32 %v1648, %v1536
        %v1657 = vmul.f32 %v1649, %v1537
        %v1658 = vmul.f32 %v1650, %v1538
        %v1659 = vand.u32 2147483647, %v1651
        %v1660 = vand.u32 2147483647, %v1652
        %v1661 = vand.u32 2147483647, %v1653
        %v1662 = vand.u32 2147483647, %v1654
        %v1663 = vand.u32 2147483647, %v1655
        %v1664 = vand.u32 2147483647, %v1656
        %v1665 = vand.u32 2147483647, %v1657
        %v1666 = vand.u32 2147483647, %v1658
        %vm1667 = vcmp.lt.f32.partialorder %v1659, 1.0
        %vm1668 = vcmp.lt.f32.partialorder %v1660, 1.0
        %vm1669 = vcmp.lt.f32.partialorder %v1661, 1.0
        %vm1670 = vcmp.lt.f32.partialorder %v1662, 1.0
        %vm1671 = vcmp.lt.f32.partialorder %v1663, 1.0
        %vm1672 = vcmp.lt.f32.partialorder %v1664, 1.0
        %vm1673 = vcmp.lt.f32.partialorder %v1665, 1.0
        %vm1674 = vcmp.lt.f32.partialorder %v1666, 1.0
        %v1675 = vmul.f32 %v1651, 0.5
        %v1676 = vmul.f32 %v1652, 0.5
        %v1677 = vmul.f32 %v1653, 0.5
        %v1678 = vmul.f32 %v1654, 0.5
        %v1679 = vmul.f32 %v1655, 0.5
        %v1680 = vmul.f32 %v1656, 0.5
        %v1681 = vmul.f32 %v1657, 0.5
        %v1682 = vmul.f32 %v1658, 0.5
        %v1683 = vmul.f32 %v1675, %v1651
        %v1684 = vmul.f32 %v1676, %v1652
        %v1685 = vmul.f32 %v1677, %v1653
        %v1686 = vmul.f32 %v1678, %v1654
        %v1687 = vmul.f32 %v1679, %v1655
        %v1688 = vmul.f32 %v1680, %v1656
        %v1689 = vmul.f32 %v1681, %v1657
        %v1690 = vmul.f32 %v1682, %v1658
        %v1691 = vsub.f32 %v1659, 0.5
        %v1692 = vsub.f32 %v1660, 0.5
        %v1693 = vsub.f32 %v1661, 0.5
        %v1694 = vsub.f32 %v1662, 0.5
        %v1695 = vsub.f32 %v1663, 0.5
        %v1696 = vsub.f32 %v1664, 0.5
        %v1697 = vsub.f32 %v1665, 0.5
        %v1698 = vsub.f32 %v1666, 0.5
        %v1699 = vsel %vm1667, %v1683, %v1691
        %v1700 = vsel %vm1668, %v1684, %v1692
        %v1701 = vsel %vm1669, %v1685, %v1693
        %v1702 = vsel %vm1670, %v1686, %v1694
        %v1703 = vsel %vm1671, %v1687, %v1695
        %v1704 = vsel %vm1672, %v1688, %v1696
        %v1705 = vsel %vm1673, %v1689, %v1697
        %v1706 = vsel %vm1674, %v1690, %v1698
        %v1707 = vadd.f32 %v1699, %v1701
        %v1708 = vadd.f32 %v1700, %v1702
        %v1709 = vadd.f32 %v1703, %v1705
        %v1710 = vadd.f32 %v1704, %v1706
        %v1711 = vadd.f32 %v1707, %v1709
        %v1712 = vadd.f32 %v1708, %v1710
        %v1713 = vadd.f32 %v1487, %v1711
        %v1714 = vadd.f32 %v1488, %v1712
        %vm1715 = vcmp.ne.f32.partialorder %v1531, 0.0
        %vm1716 = vcmp.ne.f32.partialorder %v1532, 0.0
        %vm1717 = vcmp.ne.f32.partialorder %v1533, 0.0
        %vm1718 = vcmp.ne.f32.partialorder %v1534, 0.0
        %vm1719 = vcmp.ne.f32.partialorder %v1535, 0.0
        %vm1720 = vcmp.ne.f32.partialorder %v1536, 0.0
        %vm1721 = vcmp.ne.f32.partialorder %v1537, 0.0
        %vm1722 = vcmp.ne.f32.partialorder %v1538, 0.0
        %v1723 = vsel %vm1715, 1, 0
        %v1724 = vsel %vm1716, 1, 0
        %v1725 = vsel %vm1717, 1, 0
        %v1726 = vsel %vm1718, 1, 0
        %v1727 = vsel %vm1719, 1, 0
        %v1728 = vsel %vm1720, 1, 0
        %v1729 = vsel %vm1721, 1, 0
        %v1730 = vsel %vm1722, 1, 0
        %v1731 = vcvt.s32.f32 %v1723
        %v1732 = vcvt.s32.f32 %v1724
        %v1733 = vcvt.s32.f32 %v1725
        %v1734 = vcvt.s32.f32 %v1726
        %v1735 = vcvt.s32.f32 %v1727
        %v1736 = vcvt.s32.f32 %v1728
        %v1737 = vcvt.s32.f32 %v1729
        %v1738 = vcvt.s32.f32 %v1730
        %v1739 = vadd.f32 %v1731, %v1733
        %v1740 = vadd.f32 %v1732, %v1734
        %v1741 = vadd.f32 %v1735, %v1737
        %v1742 = vadd.f32 %v1736, %v1738
        %v1743 = vadd.f32 %v1739, %v1741
        %v1744 = vadd.f32 %v1740, %v1742
        %v1745 = vadd.f32 %v1519, %v1743
        %v1746 = vadd.f32 %v1520, %v1744
        %s1747 = scalar_lea.vmem %s340, 96 [#allocation7]
        %v1748 = vld [vmem:[%s1747] sm:$0xff]
        %v1749 = vld [vmem:[%s1747 + $0x8] sm:$0xff]
        %v1750 = vunpack.c.0.s8 %v1748
        %v1751 = vunpack.c.0.s8 %v1749
        %v1752 = vunpack.c.1.s8 %v1748
        %v1753 = vunpack.c.1.s8 %v1749
        %v1754 = vunpack.c.2.s8 %v1748
        %v1755 = vunpack.c.2.s8 %v1749
        %v1756 = vunpack.c.3.s8 %v1748
        %v1757 = vunpack.c.3.s8 %v1749
        %v1758 = vcvt.s32.f32 %v1750
        %v1759 = vcvt.s32.f32 %v1751
        %v1760 = vcvt.s32.f32 %v1752
        %v1761 = vcvt.s32.f32 %v1753
        %v1762 = vcvt.s32.f32 %v1754
        %v1763 = vcvt.s32.f32 %v1755
        %v1764 = vcvt.s32.f32 %v1756
        %v1765 = vcvt.s32.f32 %v1757
        %s1766 = scalar_lea.vmem %s322, 768 [#allocation2]
        %v1767 = vld [vmem:[%s1766] sm:$0xff]
        %v1768 = vld [vmem:[%s1766 + $0x8] sm:$0xff]
        %v1769 = vld [vmem:[%s1766 + $0x10] sm:$0xff]
        %v1770 = vld [vmem:[%s1766 + $0x18] sm:$0xff]
        %v1771 = vld [vmem:[%s1766 + $0x20] sm:$0xff]
        %v1772 = vld [vmem:[%s1766 + $0x28] sm:$0xff]
        %v1773 = vld [vmem:[%s1766 + $0x30] sm:$0xff]
        %v1774 = vld [vmem:[%s1766 + $0x38] sm:$0xff]
        %s1775 = scalar_lea.vmem %s331, 768 [#allocation5]
        %v1776 = vld [vmem:[%s1775] sm:$0xff]
        %v1777 = vld [vmem:[%s1775 + $0x8] sm:$0xff]
        %v1778 = vld [vmem:[%s1775 + $0x10] sm:$0xff]
        %v1779 = vld [vmem:[%s1775 + $0x18] sm:$0xff]
        %v1780 = vld [vmem:[%s1775 + $0x20] sm:$0xff]
        %v1781 = vld [vmem:[%s1775 + $0x28] sm:$0xff]
        %v1782 = vld [vmem:[%s1775 + $0x30] sm:$0xff]
        %v1783 = vld [vmem:[%s1775 + $0x38] sm:$0xff]
        %v1784 = vsub.f32 %v1767, %v1776
        %v1785 = vsub.f32 %v1768, %v1777
        %v1786 = vsub.f32 %v1769, %v1778
        %v1787 = vsub.f32 %v1770, %v1779
        %v1788 = vsub.f32 %v1771, %v1780
        %v1789 = vsub.f32 %v1772, %v1781
        %v1790 = vsub.f32 %v1773, %v1782
        %v1791 = vsub.f32 %v1774, %v1783
        %v1792 = vmul.f32 %v1784, %v1758
        %v1793 = vmul.f32 %v1785, %v1759
        %v1794 = vmul.f32 %v1786, %v1760
        %v1795 = vmul.f32 %v1787, %v1761
        %v1796 = vmul.f32 %v1788, %v1762
        %v1797 = vmul.f32 %v1789, %v1763
        %v1798 = vmul.f32 %v1790, %v1764
        %v1799 = vmul.f32 %v1791, %v1765
        %v1800 = vand.u32 2147483647, %v1792
        %v1801 = vand.u32 2147483647, %v1793
        %v1802 = vand.u32 2147483647, %v1794
        %v1803 = vand.u32 2147483647, %v1795
        %v1804 = vand.u32 2147483647, %v1796
        %v1805 = vand.u32 2147483647, %v1797
        %v1806 = vand.u32 2147483647, %v1798
        %v1807 = vand.u32 2147483647, %v1799
        %vm1808 = vcmp.lt.f32.partialorder %v1800, 1.0
        %vm1809 = vcmp.lt.f32.partialorder %v1801, 1.0
        %vm1810 = vcmp.lt.f32.partialorder %v1802, 1.0
        %vm1811 = vcmp.lt.f32.partialorder %v1803, 1.0
        %vm1812 = vcmp.lt.f32.partialorder %v1804, 1.0
        %vm1813 = vcmp.lt.f32.partialorder %v1805, 1.0
        %vm1814 = vcmp.lt.f32.partialorder %v1806, 1.0
        %vm1815 = vcmp.lt.f32.partialorder %v1807, 1.0
        %v1816 = vmul.f32 %v1792, 0.5
        %v1817 = vmul.f32 %v1793, 0.5
        %v1818 = vmul.f32 %v1794, 0.5
        %v1819 = vmul.f32 %v1795, 0.5
        %v1820 = vmul.f32 %v1796, 0.5
        %v1821 = vmul.f32 %v1797, 0.5
        %v1822 = vmul.f32 %v1798, 0.5
        %v1823 = vmul.f32 %v1799, 0.5
        %v1824 = vmul.f32 %v1816, %v1792
        %v1825 = vmul.f32 %v1817, %v1793
        %v1826 = vmul.f32 %v1818, %v1794
        %v1827 = vmul.f32 %v1819, %v1795
        %v1828 = vmul.f32 %v1820, %v1796
        %v1829 = vmul.f32 %v1821, %v1797
        %v1830 = vmul.f32 %v1822, %v1798
        %v1831 = vmul.f32 %v1823, %v1799
        %v1832 = vsub.f32 %v1800, 0.5
        %v1833 = vsub.f32 %v1801, 0.5
        %v1834 = vsub.f32 %v1802, 0.5
        %v1835 = vsub.f32 %v1803, 0.5
        %v1836 = vsub.f32 %v1804, 0.5
        %v1837 = vsub.f32 %v1805, 0.5
        %v1838 = vsub.f32 %v1806, 0.5
        %v1839 = vsub.f32 %v1807, 0.5
        %v1840 = vsel %vm1808, %v1824, %v1832
        %v1841 = vsel %vm1809, %v1825, %v1833
        %v1842 = vsel %vm1810, %v1826, %v1834
        %v1843 = vsel %vm1811, %v1827, %v1835
        %v1844 = vsel %vm1812, %v1828, %v1836
        %v1845 = vsel %vm1813, %v1829, %v1837
        %v1846 = vsel %vm1814, %v1830, %v1838
        %v1847 = vsel %vm1815, %v1831, %v1839
        %v1848 = vadd.f32 %v1840, %v1842
        %v1849 = vadd.f32 %v1841, %v1843
        %v1850 = vadd.f32 %v1844, %v1846
        %v1851 = vadd.f32 %v1845, %v1847
        %v1852 = vadd.f32 %v1848, %v1850
        %v1853 = vadd.f32 %v1849, %v1851
        %v1854 = vadd.f32 %v1625, %v1852
        %v1855 = vadd.f32 %v1626, %v1853
        %s1856 = scalar_lea.vmem %s322, 896 [#allocation2]
        %v1857 = vld [vmem:[%s1856] sm:$0xff]
        %v1858 = vld [vmem:[%s1856 + $0x8] sm:$0xff]
        %v1859 = vld [vmem:[%s1856 + $0x10] sm:$0xff]
        %v1860 = vld [vmem:[%s1856 + $0x18] sm:$0xff]
        %v1861 = vld [vmem:[%s1856 + $0x20] sm:$0xff]
        %v1862 = vld [vmem:[%s1856 + $0x28] sm:$0xff]
        %v1863 = vld [vmem:[%s1856 + $0x30] sm:$0xff]
        %v1864 = vld [vmem:[%s1856 + $0x38] sm:$0xff]
        %s1865 = scalar_lea.vmem %s331, 896 [#allocation5]
        %v1866 = vld [vmem:[%s1865] sm:$0xff]
        %v1867 = vld [vmem:[%s1865 + $0x8] sm:$0xff]
        %v1868 = vld [vmem:[%s1865 + $0x10] sm:$0xff]
        %v1869 = vld [vmem:[%s1865 + $0x18] sm:$0xff]
        %v1870 = vld [vmem:[%s1865 + $0x20] sm:$0xff]
        %v1871 = vld [vmem:[%s1865 + $0x28] sm:$0xff]
        %v1872 = vld [vmem:[%s1865 + $0x30] sm:$0xff]
        %v1873 = vld [vmem:[%s1865 + $0x38] sm:$0xff]
        %v1874 = vsub.f32 %v1857, %v1866
        %v1875 = vsub.f32 %v1858, %v1867
        %v1876 = vsub.f32 %v1859, %v1868
        %v1877 = vsub.f32 %v1860, %v1869
        %v1878 = vsub.f32 %v1861, %v1870
        %v1879 = vsub.f32 %v1862, %v1871
        %v1880 = vsub.f32 %v1863, %v1872
        %v1881 = vsub.f32 %v1864, %v1873
        %v1882 = vmul.f32 %v1874, %v1758
        %v1883 = vmul.f32 %v1875, %v1759
        %v1884 = vmul.f32 %v1876, %v1760
        %v1885 = vmul.f32 %v1877, %v1761
        %v1886 = vmul.f32 %v1878, %v1762
        %v1887 = vmul.f32 %v1879, %v1763
        %v1888 = vmul.f32 %v1880, %v1764
        %v1889 = vmul.f32 %v1881, %v1765
        %v1890 = vand.u32 2147483647, %v1882
        %v1891 = vand.u32 2147483647, %v1883
        %v1892 = vand.u32 2147483647, %v1884
        %v1893 = vand.u32 2147483647, %v1885
        %v1894 = vand.u32 2147483647, %v1886
        %v1895 = vand.u32 2147483647, %v1887
        %v1896 = vand.u32 2147483647, %v1888
        %v1897 = vand.u32 2147483647, %v1889
        %vm1898 = vcmp.lt.f32.partialorder %v1890, 1.0
        %vm1899 = vcmp.lt.f32.partialorder %v1891, 1.0
        %vm1900 = vcmp.lt.f32.partialorder %v1892, 1.0
        %vm1901 = vcmp.lt.f32.partialorder %v1893, 1.0
        %vm1902 = vcmp.lt.f32.partialorder %v1894, 1.0
        %vm1903 = vcmp.lt.f32.partialorder %v1895, 1.0
        %vm1904 = vcmp.lt.f32.partialorder %v1896, 1.0
        %vm1905 = vcmp.lt.f32.partialorder %v1897, 1.0
        %v1906 = vmul.f32 %v1882, 0.5
        %v1907 = vmul.f32 %v1883, 0.5
        %v1908 = vmul.f32 %v1884, 0.5
        %v1909 = vmul.f32 %v1885, 0.5
        %v1910 = vmul.f32 %v1886, 0.5
        %v1911 = vmul.f32 %v1887, 0.5
        %v1912 = vmul.f32 %v1888, 0.5
        %v1913 = vmul.f32 %v1889, 0.5
        %v1914 = vmul.f32 %v1906, %v1882
        %v1915 = vmul.f32 %v1907, %v1883
        %v1916 = vmul.f32 %v1908, %v1884
        %v1917 = vmul.f32 %v1909, %v1885
        %v1918 = vmul.f32 %v1910, %v1886
        %v1919 = vmul.f32 %v1911, %v1887
        %v1920 = vmul.f32 %v1912, %v1888
        %v1921 = vmul.f32 %v1913, %v1889
        %v1922 = vsub.f32 %v1890, 0.5
        %v1923 = vsub.f32 %v1891, 0.5
        %v1924 = vsub.f32 %v1892, 0.5
        %v1925 = vsub.f32 %v1893, 0.5
        %v1926 = vsub.f32 %v1894, 0.5
        %v1927 = vsub.f32 %v1895, 0.5
        %v1928 = vsub.f32 %v1896, 0.5
        %v1929 = vsub.f32 %v1897, 0.5
        %v1930 = vsel %vm1898, %v1914, %v1922
        %v1931 = vsel %vm1899, %v1915, %v1923
        %v1932 = vsel %vm1900, %v1916, %v1924
        %v1933 = vsel %vm1901, %v1917, %v1925
        %v1934 = vsel %vm1902, %v1918, %v1926
        %v1935 = vsel %vm1903, %v1919, %v1927
        %v1936 = vsel %vm1904, %v1920, %v1928
        %v1937 = vsel %vm1905, %v1921, %v1929
        %v1938 = vadd.f32 %v1930, %v1932
        %v1939 = vadd.f32 %v1931, %v1933
        %v1940 = vadd.f32 %v1934, %v1936
        %v1941 = vadd.f32 %v1935, %v1937
        %v1942 = vadd.f32 %v1938, %v1940
        %v1943 = vadd.f32 %v1939, %v1941
        %v1944 = vadd.f32 %v1713, %v1942
        %v1945 = vadd.f32 %v1714, %v1943
        %vm1946 = vcmp.ne.f32.partialorder %v1758, 0.0
        %vm1947 = vcmp.ne.f32.partialorder %v1759, 0.0
        %vm1948 = vcmp.ne.f32.partialorder %v1760, 0.0
        %vm1949 = vcmp.ne.f32.partialorder %v1761, 0.0
        %vm1950 = vcmp.ne.f32.partialorder %v1762, 0.0
        %vm1951 = vcmp.ne.f32.partialorder %v1763, 0.0
        %vm1952 = vcmp.ne.f32.partialorder %v1764, 0.0
        %vm1953 = vcmp.ne.f32.partialorder %v1765, 0.0
        %v1954 = vsel %vm1946, 1, 0
        %v1955 = vsel %vm1947, 1, 0
        %v1956 = vsel %vm1948, 1, 0
        %v1957 = vsel %vm1949, 1, 0
        %v1958 = vsel %vm1950, 1, 0
        %v1959 = vsel %vm1951, 1, 0
        %v1960 = vsel %vm1952, 1, 0
        %v1961 = vsel %vm1953, 1, 0
        %v1962 = vcvt.s32.f32 %v1954
        %v1963 = vcvt.s32.f32 %v1955
        %v1964 = vcvt.s32.f32 %v1956
        %v1965 = vcvt.s32.f32 %v1957
        %v1966 = vcvt.s32.f32 %v1958
        %v1967 = vcvt.s32.f32 %v1959
        %v1968 = vcvt.s32.f32 %v1960
        %v1969 = vcvt.s32.f32 %v1961
        %v1970 = vadd.f32 %v1962, %v1964
        %v1971 = vadd.f32 %v1963, %v1965
        %v1972 = vadd.f32 %v1966, %v1968
        %v1973 = vadd.f32 %v1967, %v1969
        %v1974 = vadd.f32 %v1970, %v1972
        %v1975 = vadd.f32 %v1971, %v1973
        %v1976 = vadd.f32 %v1745, %v1974
        %v1977 = vadd.f32 %v1746, %v1975
        %v1978 = vld [vmem:[%s1747 + $0x10] sm:$0xff]
        %v1979 = vld [vmem:[%s1747 + $0x18] sm:$0xff]
        %v1980 = vunpack.c.0.s8 %v1978
        %v1981 = vunpack.c.0.s8 %v1979
        %v1982 = vunpack.c.1.s8 %v1978
        %v1983 = vunpack.c.1.s8 %v1979
        %v1984 = vunpack.c.2.s8 %v1978
        %v1985 = vunpack.c.2.s8 %v1979
        %v1986 = vunpack.c.3.s8 %v1978
        %v1987 = vunpack.c.3.s8 %v1979
        %v1988 = vcvt.s32.f32 %v1980
        %v1989 = vcvt.s32.f32 %v1981
        %v1990 = vcvt.s32.f32 %v1982
        %v1991 = vcvt.s32.f32 %v1983
        %v1992 = vcvt.s32.f32 %v1984
        %v1993 = vcvt.s32.f32 %v1985
        %v1994 = vcvt.s32.f32 %v1986
        %v1995 = vcvt.s32.f32 %v1987
        %v1996 = vld [vmem:[%s1766 + $0x40] sm:$0xff]
        %v1997 = vld [vmem:[%s1766 + $0x48] sm:$0xff]
        %v1998 = vld [vmem:[%s1766 + $0x50] sm:$0xff]
        %v1999 = vld [vmem:[%s1766 + $0x58] sm:$0xff]
        %v2000 = vld [vmem:[%s1766 + $0x60] sm:$0xff]
        %v2001 = vld [vmem:[%s1766 + $0x68] sm:$0xff]
        %v2002 = vld [vmem:[%s1766 + $0x70] sm:$0xff]
        %v2003 = vld [vmem:[%s1766 + $0x78] sm:$0xff]
        %v2004 = vld [vmem:[%s1775 + $0x40] sm:$0xff]
        %v2005 = vld [vmem:[%s1775 + $0x48] sm:$0xff]
        %v2006 = vld [vmem:[%s1775 + $0x50] sm:$0xff]
        %v2007 = vld [vmem:[%s1775 + $0x58] sm:$0xff]
        %v2008 = vld [vmem:[%s1775 + $0x60] sm:$0xff]
        %v2009 = vld [vmem:[%s1775 + $0x68] sm:$0xff]
        %v2010 = vld [vmem:[%s1775 + $0x70] sm:$0xff]
        %v2011 = vld [vmem:[%s1775 + $0x78] sm:$0xff]
        %v2012 = vsub.f32 %v1996, %v2004
        %v2013 = vsub.f32 %v1997, %v2005
        %v2014 = vsub.f32 %v1998, %v2006
        %v2015 = vsub.f32 %v1999, %v2007
        %v2016 = vsub.f32 %v2000, %v2008
        %v2017 = vsub.f32 %v2001, %v2009
        %v2018 = vsub.f32 %v2002, %v2010
        %v2019 = vsub.f32 %v2003, %v2011
        %v2020 = vmul.f32 %v2012, %v1988
        %v2021 = vmul.f32 %v2013, %v1989
        %v2022 = vmul.f32 %v2014, %v1990
        %v2023 = vmul.f32 %v2015, %v1991
        %v2024 = vmul.f32 %v2016, %v1992
        %v2025 = vmul.f32 %v2017, %v1993
        %v2026 = vmul.f32 %v2018, %v1994
        %v2027 = vmul.f32 %v2019, %v1995
        %v2028 = vand.u32 2147483647, %v2020
        %v2029 = vand.u32 2147483647, %v2021
        %v2030 = vand.u32 2147483647, %v2022
        %v2031 = vand.u32 2147483647, %v2023
        %v2032 = vand.u32 2147483647, %v2024
        %v2033 = vand.u32 2147483647, %v2025
        %v2034 = vand.u32 2147483647, %v2026
        %v2035 = vand.u32 2147483647, %v2027
        %vm2036 = vcmp.lt.f32.partialorder %v2028, 1.0
        %vm2037 = vcmp.lt.f32.partialorder %v2029, 1.0
        %vm2038 = vcmp.lt.f32.partialorder %v2030, 1.0
        %vm2039 = vcmp.lt.f32.partialorder %v2031, 1.0
        %vm2040 = vcmp.lt.f32.partialorder %v2032, 1.0
        %vm2041 = vcmp.lt.f32.partialorder %v2033, 1.0
        %vm2042 = vcmp.lt.f32.partialorder %v2034, 1.0
        %vm2043 = vcmp.lt.f32.partialorder %v2035, 1.0
        %v2044 = vmul.f32 %v2020, 0.5
        %v2045 = vmul.f32 %v2021, 0.5
        %v2046 = vmul.f32 %v2022, 0.5
        %v2047 = vmul.f32 %v2023, 0.5
        %v2048 = vmul.f32 %v2024, 0.5
        %v2049 = vmul.f32 %v2025, 0.5
        %v2050 = vmul.f32 %v2026, 0.5
        %v2051 = vmul.f32 %v2027, 0.5
        %v2052 = vmul.f32 %v2044, %v2020
        %v2053 = vmul.f32 %v2045, %v2021
        %v2054 = vmul.f32 %v2046, %v2022
        %v2055 = vmul.f32 %v2047, %v2023
        %v2056 = vmul.f32 %v2048, %v2024
        %v2057 = vmul.f32 %v2049, %v2025
        %v2058 = vmul.f32 %v2050, %v2026
        %v2059 = vmul.f32 %v2051, %v2027
        %v2060 = vsub.f32 %v2028, 0.5
        %v2061 = vsub.f32 %v2029, 0.5
        %v2062 = vsub.f32 %v2030, 0.5
        %v2063 = vsub.f32 %v2031, 0.5
        %v2064 = vsub.f32 %v2032, 0.5
        %v2065 = vsub.f32 %v2033, 0.5
        %v2066 = vsub.f32 %v2034, 0.5
        %v2067 = vsub.f32 %v2035, 0.5
        %v2068 = vsel %vm2036, %v2052, %v2060
        %v2069 = vsel %vm2037, %v2053, %v2061
        %v2070 = vsel %vm2038, %v2054, %v2062
        %v2071 = vsel %vm2039, %v2055, %v2063
        %v2072 = vsel %vm2040, %v2056, %v2064
        %v2073 = vsel %vm2041, %v2057, %v2065
        %v2074 = vsel %vm2042, %v2058, %v2066
        %v2075 = vsel %vm2043, %v2059, %v2067
        %v2076 = vadd.f32 %v2068, %v2070
        %v2077 = vadd.f32 %v2069, %v2071
        %v2078 = vadd.f32 %v2072, %v2074
        %v2079 = vadd.f32 %v2073, %v2075
        %v2080 = vadd.f32 %v2076, %v2078
        %v2081 = vadd.f32 %v2077, %v2079
        %v2082 = vadd.f32 %v1854, %v2080
        %v2083 = vadd.f32 %v1855, %v2081
        %v2084 = vld [vmem:[%s1856 + $0x40] sm:$0xff]
        %v2085 = vld [vmem:[%s1856 + $0x48] sm:$0xff]
        %v2086 = vld [vmem:[%s1856 + $0x50] sm:$0xff]
        %v2087 = vld [vmem:[%s1856 + $0x58] sm:$0xff]
        %v2088 = vld [vmem:[%s1856 + $0x60] sm:$0xff]
        %v2089 = vld [vmem:[%s1856 + $0x68] sm:$0xff]
        %v2090 = vld [vmem:[%s1856 + $0x70] sm:$0xff]
        %v2091 = vld [vmem:[%s1856 + $0x78] sm:$0xff]
        %v2092 = vld [vmem:[%s1865 + $0x40] sm:$0xff]
        %v2093 = vld [vmem:[%s1865 + $0x48] sm:$0xff]
        %v2094 = vld [vmem:[%s1865 + $0x50] sm:$0xff]
        %v2095 = vld [vmem:[%s1865 + $0x58] sm:$0xff]
        %v2096 = vld [vmem:[%s1865 + $0x60] sm:$0xff]
        %v2097 = vld [vmem:[%s1865 + $0x68] sm:$0xff]
        %v2098 = vld [vmem:[%s1865 + $0x70] sm:$0xff]
        %v2099 = vld [vmem:[%s1865 + $0x78] sm:$0xff]
        %v2100 = vsub.f32 %v2084, %v2092
        %v2101 = vsub.f32 %v2085, %v2093
        %v2102 = vsub.f32 %v2086, %v2094
        %v2103 = vsub.f32 %v2087, %v2095
        %v2104 = vsub.f32 %v2088, %v2096
        %v2105 = vsub.f32 %v2089, %v2097
        %v2106 = vsub.f32 %v2090, %v2098
        %v2107 = vsub.f32 %v2091, %v2099
        %v2108 = vmul.f32 %v2100, %v1988
        %v2109 = vmul.f32 %v2101, %v1989
        %v2110 = vmul.f32 %v2102, %v1990
        %v2111 = vmul.f32 %v2103, %v1991
        %v2112 = vmul.f32 %v2104, %v1992
        %v2113 = vmul.f32 %v2105, %v1993
        %v2114 = vmul.f32 %v2106, %v1994
        %v2115 = vmul.f32 %v2107, %v1995
        %v2116 = vand.u32 2147483647, %v2108
        %v2117 = vand.u32 2147483647, %v2109
        %v2118 = vand.u32 2147483647, %v2110
        %v2119 = vand.u32 2147483647, %v2111
        %v2120 = vand.u32 2147483647, %v2112
        %v2121 = vand.u32 2147483647, %v2113
        %v2122 = vand.u32 2147483647, %v2114
        %v2123 = vand.u32 2147483647, %v2115
        %vm2124 = vcmp.lt.f32.partialorder %v2116, 1.0
        %vm2125 = vcmp.lt.f32.partialorder %v2117, 1.0
        %vm2126 = vcmp.lt.f32.partialorder %v2118, 1.0
        %vm2127 = vcmp.lt.f32.partialorder %v2119, 1.0
        %vm2128 = vcmp.lt.f32.partialorder %v2120, 1.0
        %vm2129 = vcmp.lt.f32.partialorder %v2121, 1.0
        %vm2130 = vcmp.lt.f32.partialorder %v2122, 1.0
        %vm2131 = vcmp.lt.f32.partialorder %v2123, 1.0
        %v2132 = vmul.f32 %v2108, 0.5
        %v2133 = vmul.f32 %v2109, 0.5
        %v2134 = vmul.f32 %v2110, 0.5
        %v2135 = vmul.f32 %v2111, 0.5
        %v2136 = vmul.f32 %v2112, 0.5
        %v2137 = vmul.f32 %v2113, 0.5
        %v2138 = vmul.f32 %v2114, 0.5
        %v2139 = vmul.f32 %v2115, 0.5
        %v2140 = vmul.f32 %v2132, %v2108
        %v2141 = vmul.f32 %v2133, %v2109
        %v2142 = vmul.f32 %v2134, %v2110
        %v2143 = vmul.f32 %v2135, %v2111
        %v2144 = vmul.f32 %v2136, %v2112
        %v2145 = vmul.f32 %v2137, %v2113
        %v2146 = vmul.f32 %v2138, %v2114
        %v2147 = vmul.f32 %v2139, %v2115
        %v2148 = vsub.f32 %v2116, 0.5
        %v2149 = vsub.f32 %v2117, 0.5
        %v2150 = vsub.f32 %v2118, 0.5
        %v2151 = vsub.f32 %v2119, 0.5
        %v2152 = vsub.f32 %v2120, 0.5
        %v2153 = vsub.f32 %v2121, 0.5
        %v2154 = vsub.f32 %v2122, 0.5
        %v2155 = vsub.f32 %v2123, 0.5
        %v2156 = vsel %vm2124, %v2140, %v2148
        %v2157 = vsel %vm2125, %v2141, %v2149
        %v2158 = vsel %vm2126, %v2142, %v2150
        %v2159 = vsel %vm2127, %v2143, %v2151
        %v2160 = vsel %vm2128, %v2144, %v2152
        %v2161 = vsel %vm2129, %v2145, %v2153
        %v2162 = vsel %vm2130, %v2146, %v2154
        %v2163 = vsel %vm2131, %v2147, %v2155
        %v2164 = vadd.f32 %v2156, %v2158
        %v2165 = vadd.f32 %v2157, %v2159
        %v2166 = vadd.f32 %v2160, %v2162
        %v2167 = vadd.f32 %v2161, %v2163
        %v2168 = vadd.f32 %v2164, %v2166
        %v2169 = vadd.f32 %v2165, %v2167
        %v2170 = vadd.f32 %v1944, %v2168
        %v2171 = vadd.f32 %v1945, %v2169
        %vm2172 = vcmp.ne.f32.partialorder %v1988, 0.0
        %vm2173 = vcmp.ne.f32.partialorder %v1989, 0.0
        %vm2174 = vcmp.ne.f32.partialorder %v1990, 0.0
        %vm2175 = vcmp.ne.f32.partialorder %v1991, 0.0
        %vm2176 = vcmp.ne.f32.partialorder %v1992, 0.0
        %vm2177 = vcmp.ne.f32.partialorder %v1993, 0.0
        %vm2178 = vcmp.ne.f32.partialorder %v1994, 0.0
        %vm2179 = vcmp.ne.f32.partialorder %v1995, 0.0
        %v2180 = vsel %vm2172, 1, 0
        %v2181 = vsel %vm2173, 1, 0
        %v2182 = vsel %vm2174, 1, 0
        %v2183 = vsel %vm2175, 1, 0
        %v2184 = vsel %vm2176, 1, 0
        %v2185 = vsel %vm2177, 1, 0
        %v2186 = vsel %vm2178, 1, 0
        %v2187 = vsel %vm2179, 1, 0
        %v2188 = vcvt.s32.f32 %v2180
        %v2189 = vcvt.s32.f32 %v2181
        %v2190 = vcvt.s32.f32 %v2182
        %v2191 = vcvt.s32.f32 %v2183
        %v2192 = vcvt.s32.f32 %v2184
        %v2193 = vcvt.s32.f32 %v2185
        %v2194 = vcvt.s32.f32 %v2186
        %v2195 = vcvt.s32.f32 %v2187
        %v2196 = vadd.f32 %v2188, %v2190
        %v2197 = vadd.f32 %v2189, %v2191
        %v2198 = vadd.f32 %v2192, %v2194
        %v2199 = vadd.f32 %v2193, %v2195
        %v2200 = vadd.f32 %v2196, %v2198
        %v2201 = vadd.f32 %v2197, %v2199
        %v2202 = vadd.f32 %v1976, %v2200
        %v2203 = vadd.f32 %v1977, %v2201
        %2204 = vst [vmem:[%s372] sm:$0xff] %v2082
        %2205 = vst [vmem:[%s372 + $0x8] sm:$0xff] %v2083
        %2206 = vst [vmem:[%s372 + $0x10] sm:$0xff] %v2170
        %2207 = vst [vmem:[%s372 + $0x18] sm:$0xff] %v2171
        %2208 = vst [vmem:[%s372 + $0x20] sm:$0xff] %v2202
        %2209 = vst [vmem:[%s372 + $0x28] sm:$0xff] %v2203
        %s2210 = sand.u32 %s129, 1
        %s2211 = scalar_lea.sflag [#allocation4], %s2210
        %s2212 = sand.u32 %s129, 1
        %s2213 = smul.addr %s2212, 48
        %s2214 = scalar_lea.vmem [#allocation8], %s2213
        // Predicated region
        $region45: #{tpu_custom_call.1} parent=31 // pred_check
          %p2215 = pneg %p139
        $region46: #{tpu_custom_call.1} parent=31 // pred_check_branch
          %2217 = sbr.rel (%p2215) target = $region48
        $region47: #{tpu_custom_call.1} parent=31 // pred_region
          %s2219 = ssub.s32 768, 768
          %2220 = vsyncadd %s2211, %s2219
          %s2221 = smul.addr %s28, 6
          %s2222 = smul.addr %s27, 24
          %s2223 = sadd.s32 %s2221, %s2222
          %s2224 = smul.addr %s2223, 128
          %s2225 = scalar_lea.hbm %s3, %s2224
          %s2226 = sshll.u32 %s2214, 4
          %s2227 = int_to_ptr.vmem [resolvable:$true] %s2226
          %2232 = dma.vmem_to_hbm [thread:$0]  %s2227, 768, %s2225, %s2211, 256, 256, 16
        $region48: #{tpu_custom_call.1} parent=31 // pred_fallthru
          _
      $region32: #{tpu_custom_call.1} parent=5 // pred_fallthru
        _
      %p2233 = scmp.le.s32.totalorder 2, %s18
      // Predicated region
      $region49: #{tpu_custom_call.1} parent=5 // pred_check
        %p2234 = pneg %p2233
      $region50: #{tpu_custom_call.1} parent=5 // pred_check_branch
        %2236 = sbr.rel (%p2234) target = $region52
      $region51: #{tpu_custom_call.1} parent=5 // pred_region
        %s2237 = ssub.s32 %s18, 2
        // Predicated region
        $region53: #{tpu_custom_call.1} parent=51 // pred_check
          %p2238 = pneg %p145
        $region54: #{tpu_custom_call.1} parent=51 // pred_check_branch
          %2240 = sbr.rel (%p2238) target = $region56
        $region55: #{tpu_custom_call.1} parent=51 // pred_region
          %s2241 = sand.u32 %s130, 1
          %s2242 = scalar_lea.sflag [#allocation4], %s2241
          %s2243 = sand.u32 %s130, 1
          %s2244 = smul.addr %s2243, 48
          %s2245 = scalar_lea.vmem [#allocation8], %s2244
          %2246 = dma.done %s2242, 768
        $region56: #{tpu_custom_call.1} parent=51 // pred_fallthru
          _
      $region52: #{tpu_custom_call.1} parent=5 // pred_fallthru
        _
    $region6: #{tpu_custom_call.1} parent=1 // loop_footer
      %s22 = sadd.s32 1, %s18
    $region7: #{tpu_custom_call.1} parent=1 // loop_footer_branch
      %17 = sbr.rel target = $region3
    $region8: #{tpu_custom_call.1} parent=1 // loop_exit
      _
    %2247 = vsyncpa [#allocation3], 1
    %s2248 = scalar_lea.sflag [#allocation3], 1
    %2249 = vsyncpa %s2248, 1
    %2250 = vsyncpa [#allocation6], 1
    %s2251 = scalar_lea.sflag [#allocation6], 1
    %2252 = vsyncpa %s2251, 1
    %2253 = vsyncpa [#allocation4], 1
    %s2254 = scalar_lea.sflag [#allocation4], 1
    %2255 = vsyncpa %s2254, 1

</llo_original>
